<compile_context>
chip_gen: v6e
topology: v6e:2x2x1
jax: 0.10.0
libtpu: 0.0.40
codegen_flags: <defaults>
</compile_context>

<pallas_src>
import functools
import math

import jax
import jax.numpy as jnp
from jax import lax
from jax.experimental import pallas as pl
from jax.experimental.pallas import tpu as pltpu

# ---------------------------------------------------------------------------
# Model hyper-parameters (small, deterministic synthetic instantiation)
# ---------------------------------------------------------------------------
B = 2          # batch
L = 8          # query sequence length  (feat1)
S = 8          # key/value sequence len (feat2)
D = 32         # d_model
H = 4          # n_heads per layer
DH = D // H    # head dim
DFF = 64       # FFN hidden dim
N_LAYERS = 2
EPS = 1e-5

NH = N_LAYERS * H          # all layers' heads, merged into one attention pass
QW = NH * DH               # 64: Q projection width (all layers)
KW = NH * DH               # 64: K projection width (all layers)
VW = H * DH                # 32: V projection width (LAST layer only; rest dead)

# ---------------------------------------------------------------------------
# Packed parameter slab layout: a single (P_ROWS, 128) f32 array
# ---------------------------------------------------------------------------
R_WKV = 0                  # rows [0,32):    [Wk_all | Wv_last]        cols [0,96)
R_WQ = 32                  # rows [32,64):   [Wq_all | W1_last]        cols [0,128)
R_WO = 64                  # rows [64,96):   Wo_last                   cols [0,32)
R_W2 = 96                  # rows [96,160):  W2_last                   cols [0,32)
R_B = 160                  # rows [160,171): bq|bkv|bo|b1|b2|g1|be1|g2|be2|gf|bf
P_ROWS, P_COLS = 176, 128

assert R_W2 + DFF <= R_B
assert QW + DFF <= P_COLS and KW + VW <= P_COLS
assert R_B + 11 <= P_ROWS


# ---------------------------------------------------------------------------
# Fused Pallas kernel: both layers' attention + last layer's FFN + final LN
# ---------------------------------------------------------------------------
def _layernorm(z, g, b):
    mu = jnp.mean(z, axis=-1, keepdims=True)
    var = jnp.mean((z - mu) ** 2, axis=-1, keepdims=True)
    return (z - mu) * lax.rsqrt(var + EPS) * g + b


def fused_encoder_kernel(x_ref, y_ref, p_ref, xo_ref, *maybe_attn_ref, emit_attn):
    """Full Encoder3 forward, whole batch in one invocation.

    x_ref: (B*L, D) feat1 rows (queries), y_ref: (B*S, D) feat2 rows (K/V).
    p_ref: (P_ROWS, 128) packed parameter slab (single DMA for all params).
    xo_ref: (B*L, D).  Optional attn_ref: (B, L, NH*S), heads lane-concatenated.
    """
    attn_ref = maybe_attn_ref[0] if emit_attn else None

    f1 = x_ref[...].astype(jnp.float32)            # (B*L, D)
    f2 = y_ref[...].astype(jnp.float32)            # (B*S, D)
    scale = 1.0 / math.sqrt(DH)

    # ---- parameters: aligned 128-lane row-block loads, static column slices
    w_kv_blk = p_ref[R_WKV:R_WKV + D, :]           # (D, 128)
    w_q1_blk = p_ref[R_WQ:R_WQ + D, :]             # (D, 128)
    wo = p_ref[R_WO:R_WO + H * DH, 0:D]            # (H*DH, D)
    w2 = p_ref[R_W2:R_W2 + DFF, 0:D]               # (DFF, D)
    bias = p_ref[R_B:R_B + 11, :]                  # (11, 128)

    wq, w1 = w_q1_blk[:, :QW], w_q1_blk[:, QW:QW + DFF]
    wkv = w_kv_blk[:, :KW + VW]
    bq, bkv = bias[0:1, :QW], bias[1:2, :KW + VW]
    bo, b1, b2 = bias[2:3, :D], bias[3:4, :DFF], bias[4:5, :D]
    g1, be1 = bias[5:6, :D], bias[6:7, :D]
    g2, be2 = bias[7:8, :D], bias[8:9, :D]
    gf, bf = bias[9:10, :D], bias[10:11, :D]

    # ---- fused 2-D projections (one MXU push each; all layers' heads at once)
    q = (jnp.dot(f1, wq, preferred_element_type=jnp.float32) + bq) * scale   # (B*L, QW)
    kv = jnp.dot(f2, wkv, preferred_element_type=jnp.float32) + bkv          # (B*S, KW+VW)

    first_live = (N_LAYERS - 1) * H                # first head of the last layer
    heads = range(NH) if emit_attn else range(first_live, NH)

    probs, ctxs = [], []
    for n in heads:                                # static, tiny unrolled loop
        qn = q[:, n * DH:(n + 1) * DH].reshape(B, L, DH)      # lane slice + leading split
        kn = kv[:, n * DH:(n + 1) * DH].reshape(B, S, DH)
        s = jnp.einsum('bld,bsd->bls', qn, kn,
                       preferred_element_type=jnp.float32)    # (B, L, S)
        s = s - jnp.max(s, axis=-1, keepdims=True)
        e = jnp.exp(s)
        p = e * pl.reciprocal(jnp.sum(e, axis=-1, keepdims=True), approx=True)
        if emit_attn:
            probs.append(p)
        if n >= first_live:                        # dead-compute skip: last layer only
            h = n - first_live
            vn = kv[:, KW + h * DH:KW + (h + 1) * DH].reshape(B, S, DH)
            ctxs.append(jnp.einsum('bls,bsd->bld', p, vn,
                                   preferred_element_type=jnp.float32))

    if emit_attn:
        # One store of all NH heads, lane-concatenated -> 64-lane minor dim.
        attn_ref[...] = jnp.concatenate(probs, axis=-1).astype(attn_ref.dtype)

    # ---- last layer's output path only -----------------------------------
    # Head reduction folded into the MXU: (B*L, H*DH) @ (H*DH, D).
    ctx = jnp.concatenate(ctxs, axis=-1).reshape(B * L, H * DH)
    attn_out = jnp.dot(ctx, wo, preferred_element_type=jnp.float32) + bo

    x1 = _layernorm(f1 + attn_out, g1, be1)

    ff = jnp.maximum(jnp.dot(x1, w1, preferred_element_type=jnp.float32) + b1, 0.0)
    ff = jnp.dot(ff, w2, preferred_element_type=jnp.float32) + b2

    x2 = _layernorm(x1 + ff, g2, be2)
    xo_ref[...] = _layernorm(x2, gf, bf).astype(xo_ref.dtype)   # final norm_layer


# ---------------------------------------------------------------------------
# pallas_call wrapper
# ---------------------------------------------------------------------------
def encoder3_forward(feat1, feat2, params, return_attn=True):
    """Mirror of Encoder3.forward (attn_mask=None, eval-mode dropout)."""
    kernel = functools.partial(fused_encoder_kernel, emit_attn=return_attn)

    f1 = feat1.reshape(B * L, D)           # fold batch into the block (single TC step)
    f2 = feat2.reshape(B * S, D)

    in_specs = [
        pl.BlockSpec((B * L, D), lambda i: (0, 0)),
        pl.BlockSpec((B * S, D), lambda i: (0, 0)),
        pl.BlockSpec((P_ROWS, P_COLS), lambda i: (0, 0)),
    ]
    out_shapes = [jax.ShapeDtypeStruct((B * L, D), jnp.float32)]
    out_specs = [pl.BlockSpec((B * L, D), lambda i: (0, 0))]
    if return_attn:
        out_shapes.append(jax.ShapeDtypeStruct((B, L, NH * S), jnp.float32))
        out_specs.append(pl.BlockSpec((B, L, NH * S), lambda i: (0, 0, 0)))

    flops = 2 * (B * L * D * QW + B * S * D * (KW + VW)
                 + B * NH * L * S * DH + B * H * L * S * DH
                 + B * L * H * DH * D + B * L * D * DFF + B * L * DFF * D)
    bytes_accessed = 4 * (B * L * D * 2 + B * S * D + P_ROWS * P_COLS
                          + (B * L * NH * S if return_attn else 0))
    cost = pl.CostEstimate(flops=flops,
                           transcendentals=B * NH * L * S + 3 * B * L,
                           bytes_accessed=bytes_accessed)

    results = pl.pallas_call(
        kernel,
        out_shape=tuple(out_shapes),
        grid=(1,),
        in_specs=in_specs,
        out_specs=tuple(out_specs),
        cost_estimate=cost,
        compiler_params=pltpu.CompilerParams(dimension_semantics=("arbitrary",)),
    )(f1, f2, params)

    if return_attn:
        xf, attn_cat = results
        # (B, L, NH*S) -> (B, NH, L, S); per-layer slices of the merged head axis.
        attn_all = attn_cat.reshape(B, L, NH, S).transpose(0, 2, 1, 3)
        attns = [attn_all[:, l * H:(l + 1) * H] for l in range(N_LAYERS)]
    else:
        xf = results[0]
        attns = []
    return xf.reshape(B, L, D), attns


# ---------------------------------------------------------------------------
# Parameter construction (torch-like layout) + packing into the slab
# ---------------------------------------------------------------------------
def make_params(key):
    layer_params = []
    for _ in range(N_LAYERS):
        key, *ks = jax.random.split(key, 17)
        it = iter(ks)

        def rnd(shape, s=0.05, _it=it):
            return s * jax.random.normal(next(_it), shape, jnp.float32)

        p = {
            "wq": rnd((D, D)), "wk": rnd((D, D)), "wv": rnd((D, D)), "wo": rnd((D, D)),
            "bq": rnd((D,), 0.02), "bk": rnd((D,), 0.02),
            "bv": rnd((D,), 0.02), "bo": rnd((D,), 0.02),
            "w1": rnd((D, DFF)), "b1": rnd((DFF,), 0.02),
            "w2": rnd((DFF, D)), "b2": rnd((D,), 0.02),
            "g1": 1.0 + rnd((D,), 0.05), "be1": rnd((D,), 0.02),
            "g2": 1.0 + rnd((D,), 0.05), "be2": rnd((D,), 0.02),
        }
        layer_params.append(p)
    key, k1, k2 = jax.random.split(key, 3)
    norm_params = {"g": 1.0 + 0.05 * jax.random.normal(k1, (D,), jnp.float32),
                   "b": 0.02 * jax.random.normal(k2, (D,), jnp.float32)}
    return layer_params, norm_params


def pack_params(layer_params, norm_params):
    """Pack every weight/bias/LN parameter into ONE (P_ROWS, 128) f32 slab.

    Only the LAST layer's Wo/FFN/LayerNorm/V parameters are packed: the other
    layers contribute nothing to Encoder3's x output (dead work removed).
    """
    last = layer_params[-1]
    wq_all = jnp.concatenate([p["wq"] for p in layer_params], axis=1)   # (D, QW)
    wk_all = jnp.concatenate([p["wk"] for p in layer_params], axis=1)   # (D, KW)
    bq_all = jnp.concatenate([p["bq"] for p in layer_params])           # (QW,)
    bk_all = jnp.concatenate([p["bk"] for p in layer_params])           # (KW,)

    slab = jnp.zeros((P_ROWS, P_COLS), jnp.float32)

    def put(s, r, c, a):
        a = jnp.asarray(a, jnp.float32)
        if a.ndim == 1:
            a = a[None, :]
        return s.at[r:r + a.shape[0], c:c + a.shape[1]].set(a)

    slab = put(slab, R_WKV, 0, jnp.concatenate([wk_all, last["wv"]], axis=1))
    slab = put(slab, R_WQ, 0, wq_all)
    slab = put(slab, R_WQ, QW, last["w1"])
    slab = put(slab, R_WO, 0, last["wo"])
    slab = put(slab, R_W2, 0, last["w2"])
    slab = put(slab, R_B + 0, 0, bq_all)
    slab = put(slab, R_B + 1, 0, jnp.concatenate([bk_all, last["bv"]]))
    slab = put(slab, R_B + 2, 0, last["bo"])
    slab = put(slab, R_B + 3, 0, last["b1"])
    slab = put(slab, R_B + 4, 0, last["b2"])
    slab = put(slab, R_B + 5, 0, last["g1"])
    slab = put(slab, R_B + 6, 0, last["be1"])
    slab = put(slab, R_B + 7, 0, last["g2"])
    slab = put(slab, R_B + 8, 0, last["be2"])
    slab = put(slab, R_B + 9, 0, norm_params["g"])
    slab = put(slab, R_B + 10, 0, norm_params["b"])
    return slab


# ---------------------------------------------------------------------------
# Pure-JAX reference (Encoder3 semantics: every layer sees feat1, feat2)
# ---------------------------------------------------------------------------
def _ref_ln(z, g, b):
    mu = z.mean(-1, keepdims=True)
    var = ((z - mu) ** 2).mean(-1, keepdims=True)
    return (z - mu) / jnp.sqrt(var + EPS) * g + b


def _ref_layer(feat1, feat2, p):
    q = feat1 @ p["wq"] + p["bq"]
    k = feat2 @ p["wk"] + p["bk"]
    v = feat2 @ p["wv"] + p["bv"]
    qh = q.reshape(B, L, H, DH).transpose(0, 2, 1, 3)
    kh = k.reshape(B, S, H, DH).transpose(0, 2, 1, 3)
    vh = v.reshape(B, S, H, DH).transpose(0, 2, 1, 3)
    sc = jnp.einsum("bhld,bhsd->bhls", qh, kh) / math.sqrt(DH)
    a = jax.nn.softmax(sc, axis=-1)
    ctx = jnp.einsum("bhls,bhsd->bhld", a, vh).transpose(0, 2, 1, 3).reshape(B, L, D)
    out = ctx @ p["wo"] + p["bo"]
    x1 = _ref_ln(feat1 + out, p["g1"], p["be1"])
    ff = jnp.maximum(x1 @ p["w1"] + p["b1"], 0.0) @ p["w2"] + p["b2"]
    x2 = _ref_ln(x1 + ff, p["g2"], p["be2"])
    return x2, a


def _ref_forward(feat1, feat2, layer_params, norm_params):
    attns = []
    x = None
    for p in layer_params:                 # NOTE: Encoder3 re-feeds (feat1, feat2)
        x, a = _ref_layer(feat1, feat2, p)
        attns.append(a)
    x = _ref_ln(x, norm_params["g"], norm_params["b"])
    return x, attns


# ---------------------------------------------------------------------------
if __name__ == "__main__":
    root = jax.random.PRNGKey(0)
    kx, ky, kp = jax.random.split(root, 3)
    feat1 = jax.random.normal(kx, (B, L, D), jnp.float32)
    feat2 = jax.random.normal(ky, (B, S, D), jnp.float32)

    layer_params, norm_params = make_params(kp)
    params = pack_params(layer_params, norm_params)

    # Fused kernel (with attention probabilities for every layer).
    x, attns = encoder3_forward(feat1, feat2, params, return_attn=True)
    x = jax.block_until_ready(x)
    attns = [jax.block_until_ready(a) for a in attns]

    # Reference.
    ref_x, ref_attns = _ref_forward(feat1, feat2, layer_params, norm_params)

    assert x.shape == (B, L, D)
    assert len(attns) == N_LAYERS and attns[0].shape == (B, H, L, S)
    assert jnp.allclose(x, ref_x, atol=2e-3, rtol=2e-3)
    for a, ra in zip(attns, ref_attns):
        assert jnp.allclose(a, ra, atol=2e-3, rtol=2e-3)

    # Attention-free fast path (only the last layer's heads run at all).
    x_fast, _ = encoder3_forward(feat1, feat2, params, return_attn=False)
    x_fast = jax.block_until_ready(x_fast)
    assert jnp.allclose(x_fast, ref_x, atol=2e-3, rtol=2e-3)

    print("KERNEL_OK")
</pallas_src>

<mosaic_0001>
module attributes {stable_mosaic.version = 11 : i64} {
  func.func @fused_encoder_kernel(%arg0: i32, %arg1: memref<16x32xf32, #tpu.memory_space<vmem>>, %arg2: memref<16x32xf32, #tpu.memory_space<vmem>>, %arg3: memref<176x128xf32, #tpu.memory_space<vmem>>, %arg4: memref<16x32xf32, #tpu.memory_space<vmem>>, %arg5: memref<2x8x64xf32, #tpu.memory_space<vmem>>) attributes {dimension_semantics = [#tpu.dimension_semantics<arbitrary>], iteration_bounds = array<i64: 1>, scalar_prefetch = 0 : i64, scratch_operands = 0 : i64, tpu.core_type = #tpu.core_type<tc>, window_params = [{pipeline_mode = #tpu.pipeline_mode<synchronous>, transform_indices = @transform_0, window_bounds = array<i64: 16, 32>}, {pipeline_mode = #tpu.pipeline_mode<synchronous>, transform_indices = @transform_1, window_bounds = array<i64: 16, 32>}, {pipeline_mode = #tpu.pipeline_mode<synchronous>, transform_indices = @transform_2, window_bounds = array<i64: 176, 128>}, {pipeline_mode = #tpu.pipeline_mode<synchronous>, transform_indices = @transform_3, window_bounds = array<i64: 16, 32>}, {pipeline_mode = #tpu.pipeline_mode<synchronous>, transform_indices = @transform_4, window_bounds = array<i64: 2, 8, 64>}]} {
    %c0 = arith.constant 0 : index
    %c0_0 = arith.constant 0 : index
    %0 = vector.load %arg1[%c0, %c0_0] : memref<16x32xf32, #tpu.memory_space<vmem>>, vector<16x32xf32>
    %c0_1 = arith.constant 0 : index
    %c0_2 = arith.constant 0 : index
    %1 = vector.load %arg2[%c0_1, %c0_2] : memref<16x32xf32, #tpu.memory_space<vmem>>, vector<16x32xf32>
    %c0_3 = arith.constant 0 : index
    %c0_4 = arith.constant 0 : index
    %2 = vector.load %arg3[%c0_3, %c0_4] : memref<176x128xf32, #tpu.memory_space<vmem>>, vector<32x128xf32>
    %c32 = arith.constant 32 : index
    %c0_5 = arith.constant 0 : index
    %3 = vector.load %arg3[%c32, %c0_5] : memref<176x128xf32, #tpu.memory_space<vmem>>, vector<32x128xf32>
    %c64 = arith.constant 64 : index
    %c0_6 = arith.constant 0 : index
    %4 = vector.load %arg3[%c64, %c0_6] : memref<176x128xf32, #tpu.memory_space<vmem>>, vector<32x32xf32>
    %c96 = arith.constant 96 : index
    %c0_7 = arith.constant 0 : index
    %5 = vector.load %arg3[%c96, %c0_7] : memref<176x128xf32, #tpu.memory_space<vmem>>, vector<64x32xf32>
    %c160 = arith.constant 160 : index
    %c0_8 = arith.constant 0 : index
    %6 = vector.load %arg3[%c160, %c0_8] : memref<176x128xf32, #tpu.memory_space<vmem>>, vector<11x128xf32>
    %7 = vector.extract_strided_slice %3 {offsets = [0, 0], sizes = [32, 64], strides = [1, 1]} : vector<32x128xf32> to vector<32x64xf32>
    %8 = vector.extract_strided_slice %3 {offsets = [0, 64], sizes = [32, 64], strides = [1, 1]} : vector<32x128xf32> to vector<32x64xf32>
    %9 = vector.extract_strided_slice %2 {offsets = [0, 0], sizes = [32, 96], strides = [1, 1]} : vector<32x128xf32> to vector<32x96xf32>
    %10 = vector.extract_strided_slice %6 {offsets = [0, 0], sizes = [1, 64], strides = [1, 1]} : vector<11x128xf32> to vector<1x64xf32>
    %11 = vector.extract_strided_slice %6 {offsets = [1, 0], sizes = [1, 96], strides = [1, 1]} : vector<11x128xf32> to vector<1x96xf32>
    %12 = vector.extract_strided_slice %6 {offsets = [2, 0], sizes = [1, 32], strides = [1, 1]} : vector<11x128xf32> to vector<1x32xf32>
    %13 = vector.extract_strided_slice %6 {offsets = [3, 0], sizes = [1, 64], strides = [1, 1]} : vector<11x128xf32> to vector<1x64xf32>
    %14 = vector.extract_strided_slice %6 {offsets = [4, 0], sizes = [1, 32], strides = [1, 1]} : vector<11x128xf32> to vector<1x32xf32>
    %15 = vector.extract_strided_slice %6 {offsets = [5, 0], sizes = [1, 32], strides = [1, 1]} : vector<11x128xf32> to vector<1x32xf32>
    %16 = vector.extract_strided_slice %6 {offsets = [6, 0], sizes = [1, 32], strides = [1, 1]} : vector<11x128xf32> to vector<1x32xf32>
    %17 = vector.extract_strided_slice %6 {offsets = [7, 0], sizes = [1, 32], strides = [1, 1]} : vector<11x128xf32> to vector<1x32xf32>
    %18 = vector.extract_strided_slice %6 {offsets = [8, 0], sizes = [1, 32], strides = [1, 1]} : vector<11x128xf32> to vector<1x32xf32>
    %19 = vector.extract_strided_slice %6 {offsets = [9, 0], sizes = [1, 32], strides = [1, 1]} : vector<11x128xf32> to vector<1x32xf32>
    %20 = vector.extract_strided_slice %6 {offsets = [10, 0], sizes = [1, 32], strides = [1, 1]} : vector<11x128xf32> to vector<1x32xf32>
    %cst = arith.constant dense<0.000000e+00> : vector<16x64xf32>
    %21 = tpu.matmul %0, %7, %cst {dimension_numbers = #tpu.dot_dimension_numbers<[1], [0], [0], [1], [0, 0, 1, 1], [], []>} : vector<16x32xf32>, vector<32x64xf32>, vector<16x64xf32> -> vector<16x64xf32>
    %22 = vector.broadcast %10 : vector<1x64xf32> to vector<16x64xf32>
    %23 = arith.addf %21, %22 : vector<16x64xf32>
    %cst_9 = arith.constant 0.353553385 : f32
    %24 = vector.broadcast %cst_9 : f32 to vector<16x64xf32>
    %25 = arith.mulf %23, %24 : vector<16x64xf32>
    %cst_10 = arith.constant dense<0.000000e+00> : vector<16x96xf32>
    %26 = tpu.matmul %1, %9, %cst_10 {dimension_numbers = #tpu.dot_dimension_numbers<[1], [0], [0], [1], [0, 0, 1, 1], [], []>} : vector<16x32xf32>, vector<32x96xf32>, vector<16x96xf32> -> vector<16x96xf32>
    %27 = vector.broadcast %11 : vector<1x96xf32> to vector<16x96xf32>
    %28 = arith.addf %26, %27 : vector<16x96xf32>
    %29 = vector.extract_strided_slice %25 {offsets = [0, 0], sizes = [16, 8], strides = [1, 1]} : vector<16x64xf32> to vector<16x8xf32>
    %30 = vector.shape_cast %29 : vector<16x8xf32> to vector<2x8x8xf32>
    %31 = vector.extract_strided_slice %28 {offsets = [0, 0], sizes = [16, 8], strides = [1, 1]} : vector<16x96xf32> to vector<16x8xf32>
    %32 = vector.shape_cast %31 : vector<16x8xf32> to vector<2x8x8xf32>
    "tpu.trace_start"() <{level = 10 : i32, message = "bld,bsd->bls"}> : () -> ()
    %cst_11 = arith.constant dense<0.000000e+00> : vector<2x8x8xf32>
    %33 = tpu.matmul %30, %32, %cst_11 {dimension_numbers = #tpu.dot_dimension_numbers<[2], [2], [1], [1], [0, 0, 0, 1, 1, 1], [0], [0]>} : vector<2x8x8xf32>, vector<2x8x8xf32>, vector<2x8x8xf32> -> vector<2x8x8xf32>
    "tpu.trace_stop"() : () -> ()
    %cst_12 = arith.constant dense<0xFF800000> : vector<2x8xf32>
    %34 = vector.multi_reduction <maximumf>, %33, %cst_12 [2] : vector<2x8x8xf32> to vector<2x8xf32>
    %35 = vector.shape_cast %34 : vector<2x8xf32> to vector<2x8x1xf32>
    %36 = vector.broadcast %35 : vector<2x8x1xf32> to vector<2x8x8xf32>
    %37 = arith.subf %33, %36 : vector<2x8x8xf32>
    %38 = math.exp %37 : vector<2x8x8xf32>
    %cst_13 = arith.constant dense<0.000000e+00> : vector<2x8xf32>
    %39 = vector.multi_reduction <add>, %38, %cst_13 [2] : vector<2x8x8xf32> to vector<2x8xf32>
    %40 = vector.shape_cast %39 : vector<2x8xf32> to vector<2x8x1xf32>
    %41 = tpu.reciprocal %40 {approx = true} : vector<2x8x1xf32> -> vector<2x8x1xf32>
    %42 = vector.broadcast %41 : vector<2x8x1xf32> to vector<2x8x8xf32>
    %43 = arith.mulf %38, %42 : vector<2x8x8xf32>
    %44 = vector.extract_strided_slice %25 {offsets = [0, 8], sizes = [16, 8], strides = [1, 1]} : vector<16x64xf32> to vector<16x8xf32>
    %45 = vector.shape_cast %44 : vector<16x8xf32> to vector<2x8x8xf32>
    %46 = vector.extract_strided_slice %28 {offsets = [0, 8], sizes = [16, 8], strides = [1, 1]} : vector<16x96xf32> to vector<16x8xf32>
    %47 = vector.shape_cast %46 : vector<16x8xf32> to vector<2x8x8xf32>
    "tpu.trace_start"() <{level = 10 : i32, message = "bld,bsd->bls"}> : () -> ()
    %cst_14 = arith.constant dense<0.000000e+00> : vector<2x8x8xf32>
    %48 = tpu.matmul %45, %47, %cst_14 {dimension_numbers = #tpu.dot_dimension_numbers<[2], [2], [1], [1], [0, 0, 0, 1, 1, 1], [0], [0]>} : vector<2x8x8xf32>, vector<2x8x8xf32>, vector<2x8x8xf32> -> vector<2x8x8xf32>
    "tpu.trace_stop"() : () -> ()
    %cst_15 = arith.constant dense<0xFF800000> : vector<2x8xf32>
    %49 = vector.multi_reduction <maximumf>, %48, %cst_15 [2] : vector<2x8x8xf32> to vector<2x8xf32>
    %50 = vector.shape_cast %49 : vector<2x8xf32> to vector<2x8x1xf32>
    %51 = vector.broadcast %50 : vector<2x8x1xf32> to vector<2x8x8xf32>
    %52 = arith.subf %48, %51 : vector<2x8x8xf32>
    %53 = math.exp %52 : vector<2x8x8xf32>
    %cst_16 = arith.constant dense<0.000000e+00> : vector<2x8xf32>
    %54 = vector.multi_reduction <add>, %53, %cst_16 [2] : vector<2x8x8xf32> to vector<2x8xf32>
    %55 = vector.shape_cast %54 : vector<2x8xf32> to vector<2x8x1xf32>
    %56 = tpu.reciprocal %55 {approx = true} : vector<2x8x1xf32> -> vector<2x8x1xf32>
    %57 = vector.broadcast %56 : vector<2x8x1xf32> to vector<2x8x8xf32>
    %58 = arith.mulf %53, %57 : vector<2x8x8xf32>
    %59 = vector.extract_strided_slice %25 {offsets = [0, 16], sizes = [16, 8], strides = [1, 1]} : vector<16x64xf32> to vector<16x8xf32>
    %60 = vector.shape_cast %59 : vector<16x8xf32> to vector<2x8x8xf32>
    %61 = vector.extract_strided_slice %28 {offsets = [0, 16], sizes = [16, 8], strides = [1, 1]} : vector<16x96xf32> to vector<16x8xf32>
    %62 = vector.shape_cast %61 : vector<16x8xf32> to vector<2x8x8xf32>
    "tpu.trace_start"() <{level = 10 : i32, message = "bld,bsd->bls"}> : () -> ()
    %cst_17 = arith.constant dense<0.000000e+00> : vector<2x8x8xf32>
    %63 = tpu.matmul %60, %62, %cst_17 {dimension_numbers = #tpu.dot_dimension_numbers<[2], [2], [1], [1], [0, 0, 0, 1, 1, 1], [0], [0]>} : vector<2x8x8xf32>, vector<2x8x8xf32>, vector<2x8x8xf32> -> vector<2x8x8xf32>
    "tpu.trace_stop"() : () -> ()
    %cst_18 = arith.constant dense<0xFF800000> : vector<2x8xf32>
    %64 = vector.multi_reduction <maximumf>, %63, %cst_18 [2] : vector<2x8x8xf32> to vector<2x8xf32>
    %65 = vector.shape_cast %64 : vector<2x8xf32> to vector<2x8x1xf32>
    %66 = vector.broadcast %65 : vector<2x8x1xf32> to vector<2x8x8xf32>
    %67 = arith.subf %63, %66 : vector<2x8x8xf32>
    %68 = math.exp %67 : vector<2x8x8xf32>
    %cst_19 = arith.constant dense<0.000000e+00> : vector<2x8xf32>
    %69 = vector.multi_reduction <add>, %68, %cst_19 [2] : vector<2x8x8xf32> to vector<2x8xf32>
    %70 = vector.shape_cast %69 : vector<2x8xf32> to vector<2x8x1xf32>
    %71 = tpu.reciprocal %70 {approx = true} : vector<2x8x1xf32> -> vector<2x8x1xf32>
    %72 = vector.broadcast %71 : vector<2x8x1xf32> to vector<2x8x8xf32>
    %73 = arith.mulf %68, %72 : vector<2x8x8xf32>
    %74 = vector.extract_strided_slice %25 {offsets = [0, 24], sizes = [16, 8], strides = [1, 1]} : vector<16x64xf32> to vector<16x8xf32>
    %75 = vector.shape_cast %74 : vector<16x8xf32> to vector<2x8x8xf32>
    %76 = vector.extract_strided_slice %28 {offsets = [0, 24], sizes = [16, 8], strides = [1, 1]} : vector<16x96xf32> to vector<16x8xf32>
    %77 = vector.shape_cast %76 : vector<16x8xf32> to vector<2x8x8xf32>
    "tpu.trace_start"() <{level = 10 : i32, message = "bld,bsd->bls"}> : () -> ()
    %cst_20 = arith.constant dense<0.000000e+00> : vector<2x8x8xf32>
    %78 = tpu.matmul %75, %77, %cst_20 {dimension_numbers = #tpu.dot_dimension_numbers<[2], [2], [1], [1], [0, 0, 0, 1, 1, 1], [0], [0]>} : vector<2x8x8xf32>, vector<2x8x8xf32>, vector<2x8x8xf32> -> vector<2x8x8xf32>
    "tpu.trace_stop"() : () -> ()
    %cst_21 = arith.constant dense<0xFF800000> : vector<2x8xf32>
    %79 = vector.multi_reduction <maximumf>, %78, %cst_21 [2] : vector<2x8x8xf32> to vector<2x8xf32>
    %80 = vector.shape_cast %79 : vector<2x8xf32> to vector<2x8x1xf32>
    %81 = vector.broadcast %80 : vector<2x8x1xf32> to vector<2x8x8xf32>
    %82 = arith.subf %78, %81 : vector<2x8x8xf32>
    %83 = math.exp %82 : vector<2x8x8xf32>
    %cst_22 = arith.constant dense<0.000000e+00> : vector<2x8xf32>
    %84 = vector.multi_reduction <add>, %83, %cst_22 [2] : vector<2x8x8xf32> to vector<2x8xf32>
    %85 = vector.shape_cast %84 : vector<2x8xf32> to vector<2x8x1xf32>
    %86 = tpu.reciprocal %85 {approx = true} : vector<2x8x1xf32> -> vector<2x8x1xf32>
    %87 = vector.broadcast %86 : vector<2x8x1xf32> to vector<2x8x8xf32>
    %88 = arith.mulf %83, %87 : vector<2x8x8xf32>
    %89 = vector.extract_strided_slice %25 {offsets = [0, 32], sizes = [16, 8], strides = [1, 1]} : vector<16x64xf32> to vector<16x8xf32>
    %90 = vector.shape_cast %89 : vector<16x8xf32> to vector<2x8x8xf32>
    %91 = vector.extract_strided_slice %28 {offsets = [0, 32], sizes = [16, 8], strides = [1, 1]} : vector<16x96xf32> to vector<16x8xf32>
    %92 = vector.shape_cast %91 : vector<16x8xf32> to vector<2x8x8xf32>
    "tpu.trace_start"() <{level = 10 : i32, message = "bld,bsd->bls"}> : () -> ()
    %cst_23 = arith.constant dense<0.000000e+00> : vector<2x8x8xf32>
    %93 = tpu.matmul %90, %92, %cst_23 {dimension_numbers = #tpu.dot_dimension_numbers<[2], [2], [1], [1], [0, 0, 0, 1, 1, 1], [0], [0]>} : vector<2x8x8xf32>, vector<2x8x8xf32>, vector<2x8x8xf32> -> vector<2x8x8xf32>
    "tpu.trace_stop"() : () -> ()
    %cst_24 = arith.constant dense<0xFF800000> : vector<2x8xf32>
    %94 = vector.multi_reduction <maximumf>, %93, %cst_24 [2] : vector<2x8x8xf32> to vector<2x8xf32>
    %95 = vector.shape_cast %94 : vector<2x8xf32> to vector<2x8x1xf32>
    %96 = vector.broadcast %95 : vector<2x8x1xf32> to vector<2x8x8xf32>
    %97 = arith.subf %93, %96 : vector<2x8x8xf32>
    %98 = math.exp %97 : vector<2x8x8xf32>
    %cst_25 = arith.constant dense<0.000000e+00> : vector<2x8xf32>
    %99 = vector.multi_reduction <add>, %98, %cst_25 [2] : vector<2x8x8xf32> to vector<2x8xf32>
    %100 = vector.shape_cast %99 : vector<2x8xf32> to vector<2x8x1xf32>
    %101 = tpu.reciprocal %100 {approx = true} : vector<2x8x1xf32> -> vector<2x8x1xf32>
    %102 = vector.broadcast %101 : vector<2x8x1xf32> to vector<2x8x8xf32>
    %103 = arith.mulf %98, %102 : vector<2x8x8xf32>
    %104 = vector.extract_strided_slice %28 {offsets = [0, 64], sizes = [16, 8], strides = [1, 1]} : vector<16x96xf32> to vector<16x8xf32>
    %105 = vector.shape_cast %104 : vector<16x8xf32> to vector<2x8x8xf32>
    "tpu.trace_start"() <{level = 10 : i32, message = "bls,bsd->bld"}> : () -> ()
    %cst_26 = arith.constant dense<0.000000e+00> : vector<2x8x8xf32>
    %106 = tpu.matmul %103, %105, %cst_26 {dimension_numbers = #tpu.dot_dimension_numbers<[2], [1], [1], [2], [0, 0, 0, 1, 1, 2], [0], [0]>} : vector<2x8x8xf32>, vector<2x8x8xf32>, vector<2x8x8xf32> -> vector<2x8x8xf32>
    "tpu.trace_stop"() : () -> ()
    %107 = vector.extract_strided_slice %25 {offsets = [0, 40], sizes = [16, 8], strides = [1, 1]} : vector<16x64xf32> to vector<16x8xf32>
    %108 = vector.shape_cast %107 : vector<16x8xf32> to vector<2x8x8xf32>
    %109 = vector.extract_strided_slice %28 {offsets = [0, 40], sizes = [16, 8], strides = [1, 1]} : vector<16x96xf32> to vector<16x8xf32>
    %110 = vector.shape_cast %109 : vector<16x8xf32> to vector<2x8x8xf32>
    "tpu.trace_start"() <{level = 10 : i32, message = "bld,bsd->bls"}> : () -> ()
    %cst_27 = arith.constant dense<0.000000e+00> : vector<2x8x8xf32>
    %111 = tpu.matmul %108, %110, %cst_27 {dimension_numbers = #tpu.dot_dimension_numbers<[2], [2], [1], [1], [0, 0, 0, 1, 1, 1], [0], [0]>} : vector<2x8x8xf32>, vector<2x8x8xf32>, vector<2x8x8xf32> -> vector<2x8x8xf32>
    "tpu.trace_stop"() : () -> ()
    %cst_28 = arith.constant dense<0xFF800000> : vector<2x8xf32>
    %112 = vector.multi_reduction <maximumf>, %111, %cst_28 [2] : vector<2x8x8xf32> to vector<2x8xf32>
    %113 = vector.shape_cast %112 : vector<2x8xf32> to vector<2x8x1xf32>
    %114 = vector.broadcast %113 : vector<2x8x1xf32> to vector<2x8x8xf32>
    %115 = arith.subf %111, %114 : vector<2x8x8xf32>
    %116 = math.exp %115 : vector<2x8x8xf32>
    %cst_29 = arith.constant dense<0.000000e+00> : vector<2x8xf32>
    %117 = vector.multi_reduction <add>, %116, %cst_29 [2] : vector<2x8x8xf32> to vector<2x8xf32>
    %118 = vector.shape_cast %117 : vector<2x8xf32> to vector<2x8x1xf32>
    %119 = tpu.reciprocal %118 {approx = true} : vector<2x8x1xf32> -> vector<2x8x1xf32>
    %120 = vector.broadcast %119 : vector<2x8x1xf32> to vector<2x8x8xf32>
    %121 = arith.mulf %116, %120 : vector<2x8x8xf32>
    %122 = vector.extract_strided_slice %28 {offsets = [0, 72], sizes = [16, 8], strides = [1, 1]} : vector<16x96xf32> to vector<16x8xf32>
    %123 = vector.shape_cast %122 : vector<16x8xf32> to vector<2x8x8xf32>
    "tpu.trace_start"() <{level = 10 : i32, message = "bls,bsd->bld"}> : () -> ()
    %cst_30 = arith.constant dense<0.000000e+00> : vector<2x8x8xf32>
    %124 = tpu.matmul %121, %123, %cst_30 {dimension_numbers = #tpu.dot_dimension_numbers<[2], [1], [1], [2], [0, 0, 0, 1, 1, 2], [0], [0]>} : vector<2x8x8xf32>, vector<2x8x8xf32>, vector<2x8x8xf32> -> vector<2x8x8xf32>
    "tpu.trace_stop"() : () -> ()
    %125 = vector.extract_strided_slice %25 {offsets = [0, 48], sizes = [16, 8], strides = [1, 1]} : vector<16x64xf32> to vector<16x8xf32>
    %126 = vector.shape_cast %125 : vector<16x8xf32> to vector<2x8x8xf32>
    %127 = vector.extract_strided_slice %28 {offsets = [0, 48], sizes = [16, 8], strides = [1, 1]} : vector<16x96xf32> to vector<16x8xf32>
    %128 = vector.shape_cast %127 : vector<16x8xf32> to vector<2x8x8xf32>
    "tpu.trace_start"() <{level = 10 : i32, message = "bld,bsd->bls"}> : () -> ()
    %cst_31 = arith.constant dense<0.000000e+00> : vector<2x8x8xf32>
    %129 = tpu.matmul %126, %128, %cst_31 {dimension_numbers = #tpu.dot_dimension_numbers<[2], [2], [1], [1], [0, 0, 0, 1, 1, 1], [0], [0]>} : vector<2x8x8xf32>, vector<2x8x8xf32>, vector<2x8x8xf32> -> vector<2x8x8xf32>
    "tpu.trace_stop"() : () -> ()
    %cst_32 = arith.constant dense<0xFF800000> : vector<2x8xf32>
    %130 = vector.multi_reduction <maximumf>, %129, %cst_32 [2] : vector<2x8x8xf32> to vector<2x8xf32>
    %131 = vector.shape_cast %130 : vector<2x8xf32> to vector<2x8x1xf32>
    %132 = vector.broadcast %131 : vector<2x8x1xf32> to vector<2x8x8xf32>
    %133 = arith.subf %129, %132 : vector<2x8x8xf32>
    %134 = math.exp %133 : vector<2x8x8xf32>
    %cst_33 = arith.constant dense<0.000000e+00> : vector<2x8xf32>
    %135 = vector.multi_reduction <add>, %134, %cst_33 [2] : vector<2x8x8xf32> to vector<2x8xf32>
    %136 = vector.shape_cast %135 : vector<2x8xf32> to vector<2x8x1xf32>
    %137 = tpu.reciprocal %136 {approx = true} : vector<2x8x1xf32> -> vector<2x8x1xf32>
    %138 = vector.broadcast %137 : vector<2x8x1xf32> to vector<2x8x8xf32>
    %139 = arith.mulf %134, %138 : vector<2x8x8xf32>
    %140 = vector.extract_strided_slice %28 {offsets = [0, 80], sizes = [16, 8], strides = [1, 1]} : vector<16x96xf32> to vector<16x8xf32>
    %141 = vector.shape_cast %140 : vector<16x8xf32> to vector<2x8x8xf32>
    "tpu.trace_start"() <{level = 10 : i32, message = "bls,bsd->bld"}> : () -> ()
    %cst_34 = arith.constant dense<0.000000e+00> : vector<2x8x8xf32>
    %142 = tpu.matmul %139, %141, %cst_34 {dimension_numbers = #tpu.dot_dimension_numbers<[2], [1], [1], [2], [0, 0, 0, 1, 1, 2], [0], [0]>} : vector<2x8x8xf32>, vector<2x8x8xf32>, vector<2x8x8xf32> -> vector<2x8x8xf32>
    "tpu.trace_stop"() : () -> ()
    %143 = vector.extract_strided_slice %25 {offsets = [0, 56], sizes = [16, 8], strides = [1, 1]} : vector<16x64xf32> to vector<16x8xf32>
    %144 = vector.shape_cast %143 : vector<16x8xf32> to vector<2x8x8xf32>
    %145 = vector.extract_strided_slice %28 {offsets = [0, 56], sizes = [16, 8], strides = [1, 1]} : vector<16x96xf32> to vector<16x8xf32>
    %146 = vector.shape_cast %145 : vector<16x8xf32> to vector<2x8x8xf32>
    "tpu.trace_start"() <{level = 10 : i32, message = "bld,bsd->bls"}> : () -> ()
    %cst_35 = arith.constant dense<0.000000e+00> : vector<2x8x8xf32>
    %147 = tpu.matmul %144, %146, %cst_35 {dimension_numbers = #tpu.dot_dimension_numbers<[2], [2], [1], [1], [0, 0, 0, 1, 1, 1], [0], [0]>} : vector<2x8x8xf32>, vector<2x8x8xf32>, vector<2x8x8xf32> -> vector<2x8x8xf32>
    "tpu.trace_stop"() : () -> ()
    %cst_36 = arith.constant dense<0xFF800000> : vector<2x8xf32>
    %148 = vector.multi_reduction <maximumf>, %147, %cst_36 [2] : vector<2x8x8xf32> to vector<2x8xf32>
    %149 = vector.shape_cast %148 : vector<2x8xf32> to vector<2x8x1xf32>
    %150 = vector.broadcast %149 : vector<2x8x1xf32> to vector<2x8x8xf32>
    %151 = arith.subf %147, %150 : vector<2x8x8xf32>
    %152 = math.exp %151 : vector<2x8x8xf32>
    %cst_37 = arith.constant dense<0.000000e+00> : vector<2x8xf32>
    %153 = vector.multi_reduction <add>, %152, %cst_37 [2] : vector<2x8x8xf32> to vector<2x8xf32>
    %154 = vector.shape_cast %153 : vector<2x8xf32> to vector<2x8x1xf32>
    %155 = tpu.reciprocal %154 {approx = true} : vector<2x8x1xf32> -> vector<2x8x1xf32>
    %156 = vector.broadcast %155 : vector<2x8x1xf32> to vector<2x8x8xf32>
    %157 = arith.mulf %152, %156 : vector<2x8x8xf32>
    %158 = vector.extract_strided_slice %28 {offsets = [0, 88], sizes = [16, 8], strides = [1, 1]} : vector<16x96xf32> to vector<16x8xf32>
    %159 = vector.shape_cast %158 : vector<16x8xf32> to vector<2x8x8xf32>
    "tpu.trace_start"() <{level = 10 : i32, message = "bls,bsd->bld"}> : () -> ()
    %cst_38 = arith.constant dense<0.000000e+00> : vector<2x8x8xf32>
    %160 = tpu.matmul %157, %159, %cst_38 {dimension_numbers = #tpu.dot_dimension_numbers<[2], [1], [1], [2], [0, 0, 0, 1, 1, 2], [0], [0]>} : vector<2x8x8xf32>, vector<2x8x8xf32>, vector<2x8x8xf32> -> vector<2x8x8xf32>
    "tpu.trace_stop"() : () -> ()
    %161 = tpu.concatenate %43, %58, %73, %88, %103, %121, %139, %157 in 2 : vector<2x8x8xf32>, vector<2x8x8xf32>, vector<2x8x8xf32>, vector<2x8x8xf32>, vector<2x8x8xf32>, vector<2x8x8xf32>, vector<2x8x8xf32>, vector<2x8x8xf32> -> vector<2x8x64xf32>
    %c0_39 = arith.constant 0 : index
    %c0_40 = arith.constant 0 : index
    %c0_41 = arith.constant 0 : index
    %162 = vector.load %arg5[%c0_39, %c0_40, %c0_41] : memref<2x8x64xf32, #tpu.memory_space<vmem>>, vector<2x8x64xf32>
    tpu.vector_store %arg5[%c0_39, %c0_40, %c0_41], %161 {strides = array<i32>} : memref<2x8x64xf32, #tpu.memory_space<vmem>>, vector<2x8x64xf32>,
    %163 = tpu.concatenate %106, %124, %142, %160 in 2 : vector<2x8x8xf32>, vector<2x8x8xf32>, vector<2x8x8xf32>, vector<2x8x8xf32> -> vector<2x8x32xf32>
    %164 = vector.shape_cast %163 : vector<2x8x32xf32> to vector<16x32xf32>
    %cst_42 = arith.constant dense<0.000000e+00> : vector<16x32xf32>
    %165 = tpu.matmul %164, %4, %cst_42 {dimension_numbers = #tpu.dot_dimension_numbers<[1], [0], [0], [1], [0, 0, 1, 1], [], []>} : vector<16x32xf32>, vector<32x32xf32>, vector<16x32xf32> -> vector<16x32xf32>
    %166 = vector.broadcast %12 : vector<1x32xf32> to vector<16x32xf32>
    %167 = arith.addf %165, %166 : vector<16x32xf32>
    %168 = arith.addf %0, %167 : vector<16x32xf32>
    %cst_43 = arith.constant dense<0.000000e+00> : vector<16xf32>
    %169 = vector.multi_reduction <add>, %168, %cst_43 [1] : vector<16x32xf32> to vector<16xf32>
    %170 = vector.shape_cast %169 : vector<16xf32> to vector<16x1xf32>
    %cst_44 = arith.constant 3.200000e+01 : f32
    %171 = vector.broadcast %cst_44 : f32 to vector<16x1xf32>
    %172 = arith.divf %170, %171 : vector<16x1xf32>
    %173 = vector.broadcast %172 : vector<16x1xf32> to vector<16x32xf32>
    %174 = arith.subf %168, %173 : vector<16x32xf32>
    %175 = arith.mulf %174, %174 : vector<16x32xf32>
    %cst_45 = arith.constant dense<0.000000e+00> : vector<16xf32>
    %176 = vector.multi_reduction <add>, %175, %cst_45 [1] : vector<16x32xf32> to vector<16xf32>
    %177 = vector.shape_cast %176 : vector<16xf32> to vector<16x1xf32>
    %cst_46 = arith.constant 3.200000e+01 : f32
    %178 = vector.broadcast %cst_46 : f32 to vector<16x1xf32>
    %179 = arith.divf %177, %178 : vector<16x1xf32>
    %180 = vector.broadcast %172 : vector<16x1xf32> to vector<16x32xf32>
    %181 = arith.subf %168, %180 : vector<16x32xf32>
    %cst_47 = arith.constant 9.99999974E-6 : f32
    %182 = vector.broadcast %cst_47 : f32 to vector<16x1xf32>
    %183 = arith.addf %179, %182 : vector<16x1xf32>
    %184 = math.rsqrt %183 : vector<16x1xf32>
    %185 = vector.broadcast %184 : vector<16x1xf32> to vector<16x32xf32>
    %186 = arith.mulf %181, %185 : vector<16x32xf32>
    %187 = vector.broadcast %15 : vector<1x32xf32> to vector<16x32xf32>
    %188 = arith.mulf %186, %187 : vector<16x32xf32>
    %189 = vector.broadcast %16 : vector<1x32xf32> to vector<16x32xf32>
    %190 = arith.addf %188, %189 : vector<16x32xf32>
    %cst_48 = arith.constant dense<0.000000e+00> : vector<16x64xf32>
    %191 = tpu.matmul %190, %8, %cst_48 {dimension_numbers = #tpu.dot_dimension_numbers<[1], [0], [0], [1], [0, 0, 1, 1], [], []>} : vector<16x32xf32>, vector<32x64xf32>, vector<16x64xf32> -> vector<16x64xf32>
    %192 = vector.broadcast %13 : vector<1x64xf32> to vector<16x64xf32>
    %193 = arith.addf %191, %192 : vector<16x64xf32>
    %cst_49 = arith.constant 0.000000e+00 : f32
    %194 = vector.broadcast %cst_49 : f32 to vector<16x64xf32>
    %195 = arith.maximumf %193, %194 : vector<16x64xf32>
    %cst_50 = arith.constant dense<0.000000e+00> : vector<16x32xf32>
    %196 = tpu.matmul %195, %5, %cst_50 {dimension_numbers = #tpu.dot_dimension_numbers<[1], [0], [0], [1], [0, 0, 1, 1], [], []>} : vector<16x64xf32>, vector<64x32xf32>, vector<16x32xf32> -> vector<16x32xf32>
    %197 = vector.broadcast %14 : vector<1x32xf32> to vector<16x32xf32>
    %198 = arith.addf %196, %197 : vector<16x32xf32>
    %199 = arith.addf %190, %198 : vector<16x32xf32>
    %cst_51 = arith.constant dense<0.000000e+00> : vector<16xf32>
    %200 = vector.multi_reduction <add>, %199, %cst_51 [1] : vector<16x32xf32> to vector<16xf32>
    %201 = vector.shape_cast %200 : vector<16xf32> to vector<16x1xf32>
    %cst_52 = arith.constant 3.200000e+01 : f32
    %202 = vector.broadcast %cst_52 : f32 to vector<16x1xf32>
    %203 = arith.divf %201, %202 : vector<16x1xf32>
    %204 = vector.broadcast %203 : vector<16x1xf32> to vector<16x32xf32>
    %205 = arith.subf %199, %204 : vector<16x32xf32>
    %206 = arith.mulf %205, %205 : vector<16x32xf32>
    %cst_53 = arith.constant dense<0.000000e+00> : vector<16xf32>
    %207 = vector.multi_reduction <add>, %206, %cst_53 [1] : vector<16x32xf32> to vector<16xf32>
    %208 = vector.shape_cast %207 : vector<16xf32> to vector<16x1xf32>
    %cst_54 = arith.constant 3.200000e+01 : f32
    %209 = vector.broadcast %cst_54 : f32 to vector<16x1xf32>
    %210 = arith.divf %208, %209 : vector<16x1xf32>
    %211 = vector.broadcast %203 : vector<16x1xf32> to vector<16x32xf32>
    %212 = arith.subf %199, %211 : vector<16x32xf32>
    %cst_55 = arith.constant 9.99999974E-6 : f32
    %213 = vector.broadcast %cst_55 : f32 to vector<16x1xf32>
    %214 = arith.addf %210, %213 : vector<16x1xf32>
    %215 = math.rsqrt %214 : vector<16x1xf32>
    %216 = vector.broadcast %215 : vector<16x1xf32> to vector<16x32xf32>
    %217 = arith.mulf %212, %216 : vector<16x32xf32>
    %218 = vector.broadcast %17 : vector<1x32xf32> to vector<16x32xf32>
    %219 = arith.mulf %217, %218 : vector<16x32xf32>
    %220 = vector.broadcast %18 : vector<1x32xf32> to vector<16x32xf32>
    %221 = arith.addf %219, %220 : vector<16x32xf32>
    %cst_56 = arith.constant dense<0.000000e+00> : vector<16xf32>
    %222 = vector.multi_reduction <add>, %221, %cst_56 [1] : vector<16x32xf32> to vector<16xf32>
    %223 = vector.shape_cast %222 : vector<16xf32> to vector<16x1xf32>
    %cst_57 = arith.constant 3.200000e+01 : f32
    %224 = vector.broadcast %cst_57 : f32 to vector<16x1xf32>
    %225 = arith.divf %223, %224 : vector<16x1xf32>
    %226 = vector.broadcast %225 : vector<16x1xf32> to vector<16x32xf32>
    %227 = arith.subf %221, %226 : vector<16x32xf32>
    %228 = arith.mulf %227, %227 : vector<16x32xf32>
    %cst_58 = arith.constant dense<0.000000e+00> : vector<16xf32>
    %229 = vector.multi_reduction <add>, %228, %cst_58 [1] : vector<16x32xf32> to vector<16xf32>
    %230 = vector.shape_cast %229 : vector<16xf32> to vector<16x1xf32>
    %cst_59 = arith.constant 3.200000e+01 : f32
    %231 = vector.broadcast %cst_59 : f32 to vector<16x1xf32>
    %232 = arith.divf %230, %231 : vector<16x1xf32>
    %233 = vector.broadcast %225 : vector<16x1xf32> to vector<16x32xf32>
    %234 = arith.subf %221, %233 : vector<16x32xf32>
    %cst_60 = arith.constant 9.99999974E-6 : f32
    %235 = vector.broadcast %cst_60 : f32 to vector<16x1xf32>
    %236 = arith.addf %232, %235 : vector<16x1xf32>
    %237 = math.rsqrt %236 : vector<16x1xf32>
    %238 = vector.broadcast %237 : vector<16x1xf32> to vector<16x32xf32>
    %239 = arith.mulf %234, %238 : vector<16x32xf32>
    %240 = vector.broadcast %19 : vector<1x32xf32> to vector<16x32xf32>
    %241 = arith.mulf %239, %240 : vector<16x32xf32>
    %242 = vector.broadcast %20 : vector<1x32xf32> to vector<16x32xf32>
    %243 = arith.addf %241, %242 : vector<16x32xf32>
    %c0_61 = arith.constant 0 : index
    %c0_62 = arith.constant 0 : index
    %244 = vector.load %arg4[%c0_61, %c0_62] : memref<16x32xf32, #tpu.memory_space<vmem>>, vector<16x32xf32>
    tpu.vector_store %arg4[%c0_61, %c0_62], %243 {strides = array<i32>} : memref<16x32xf32, #tpu.memory_space<vmem>>, vector<16x32xf32>,
    return
  }
  func.func @transform_0(%arg0: i32) -> (i32, i32) {
    %c0_i32 = arith.constant 0 : i32
    %c0_i32_0 = arith.constant 0 : i32
    %c0_i32_1 = arith.constant 0 : i32
    return %c0_i32, %c0_i32_0 : i32, i32
  }
  func.func @transform_1(%arg0: i32) -> (i32, i32) {
    %c0_i32 = arith.constant 0 : i32
    %c0_i32_0 = arith.constant 0 : i32
    %c0_i32_1 = arith.constant 0 : i32
    return %c0_i32, %c0_i32_0 : i32, i32
  }
  func.func @transform_2(%arg0: i32) -> (i32, i32) {
    %c0_i32 = arith.constant 0 : i32
    %c0_i32_0 = arith.constant 0 : i32
    %c0_i32_1 = arith.constant 0 : i32
    return %c0_i32, %c0_i32_0 : i32, i32
  }
  func.func @transform_3(%arg0: i32) -> (i32, i32) {
    %c0_i32 = arith.constant 0 : i32
    %c0_i32_0 = arith.constant 0 : i32
    %c0_i32_1 = arith.constant 0 : i32
    return %c0_i32, %c0_i32_0 : i32, i32
  }
  func.func @transform_4(%arg0: i32) -> (i32, i32, i32) {
    %c0_i32 = arith.constant 0 : i32
    %c0_i32_0 = arith.constant 0 : i32
    %c0_i32_1 = arith.constant 0 : i32
    %c0_i32_2 = arith.constant 0 : i32
    return %c0_i32, %c0_i32_0, %c0_i32_1 : i32, i32, i32
  }
}

</mosaic_0001>

<llo_original>
// kernel: tpu_custom_call.1
$region0: #{tpu_custom_call.1}
  #allocation0 [shape = 'u32[]', space=smem, size = 0x4, offset = 0x4, fixed_abs, tag = 'smem constant byte address 0x4 - core index']
  #allocation1 [shape = 'u32[144,128]{1,0:T(1,128)}', space=vmem, size = 0x12000, scoped, tag = 'internal scratch']
  %s0 = inlined_call_operand.hbm [shape: f32[16,32], index: 0, kind: input, shape index: {}]
  %s1 = inlined_call_operand.hbm [shape: f32[16,32], index: 1, kind: input, shape index: {}]
  %s2 = inlined_call_operand.hbm [shape: f32[176,128], index: 2, kind: input, shape index: {}]
  %s3 = inlined_call_operand.hbm [shape: f32[16,32], index: 3, kind: output, shape index: {0}]
  %s4 = inlined_call_operand.hbm [shape: f32[2,8,64], index: 4, kind: output, shape index: {1}]
  %5 = xla_tuple %s3, %s4
  %s6 = sld [smem:[#allocation0]]
  $region42: #{tpu_custom_call.1} parent=0
    _
  %s8 = ssub.s32 1, %s6
  %s9 = scalar_select 0, %s8, %s6
  $region1: #{tpu_custom_call.1} parent=0
    #allocation2 [shape = 'u8[8192]{0}', space=vmem, size = 0x2000, scoped, tag = 'input window, operand 0, single buffered']
    #allocation3 [shape = 's32[1]{0}', space=sflag, size = 0x4, scoped, tag = 'scoped memory for tpu_custom_call.1']
    #allocation4 [shape = 's32[1]{0}', space=sflag, size = 0x4, scoped, tag = 'scoped memory for tpu_custom_call.1']
    #allocation5 [shape = 'u8[8192]{0}', space=vmem, size = 0x2000, scoped, tag = 'input window, operand 1, single buffered']
    #allocation6 [shape = 's32[1]{0}', space=sflag, size = 0x4, scoped, tag = 'scoped memory for tpu_custom_call.1']
    #allocation7 [shape = 'u8[90112]{0}', space=vmem, size = 0x16000, scoped, tag = 'input window, operand 2, single buffered']
    #allocation8 [shape = 'u8[8192]{0}', space=vmem, size = 0x2000, scoped, tag = 'output window, operand 0, single buffered']
    #allocation9 [shape = 'u8[8192]{0}', space=vmem, size = 0x2000, scoped, tag = 'output window, operand 1, single buffered']
    #allocation10 [shape = 's32[1]{0}', space=sflag, size = 0x4, scoped, tag = 'scoped memory for tpu_custom_call.1']
    %10 = vsyncpa [#allocation3], 0
    %11 = vsyncpa [#allocation6], 0
    %12 = vsyncpa [#allocation4], 0
    %13 = vsyncpa [#allocation10], 0
    // Predicated region
    $region2: #{tpu_custom_call.1} parent=1 // pred_check
      _
    $region3: #{tpu_custom_call.1} parent=1 // pred_check_branch
      %15 = sbr.rel (0) target = $region5
    $region4: #{tpu_custom_call.1} parent=1 // pred_region
      %s17 = ssub.s32 256, 256
      %18 = vsyncadd [#allocation3], %s17
      %s19 = sshll.u32 [#allocation2], 4
      %s20 = int_to_ptr.vmem [resolvable:$true] %s19
      %25 = dma.hbm_to_vmem [thread:$0]  %s0, 256, %s20, [#allocation3], 128, 128, 8
    $region5: #{tpu_custom_call.1} parent=1 // pred_fallthru
      _
    // Predicated region
    $region6: #{tpu_custom_call.1} parent=1 // pred_check
      _
    $region7: #{tpu_custom_call.1} parent=1 // pred_check_branch
      %27 = sbr.rel (0) target = $region9
    $region8: #{tpu_custom_call.1} parent=1 // pred_region
      %s29 = ssub.s32 256, 256
      %30 = vsyncadd [#allocation6], %s29
      %s31 = sshll.u32 [#allocation5], 4
      %s32 = int_to_ptr.vmem [resolvable:$true] %s31
      %37 = dma.hbm_to_vmem [thread:$0]  %s1, 256, %s32, [#allocation6], 128, 128, 8
    $region9: #{tpu_custom_call.1} parent=1 // pred_fallthru
      _
    // Predicated region
    $region10: #{tpu_custom_call.1} parent=1 // pred_check
      _
    $region11: #{tpu_custom_call.1} parent=1 // pred_check_branch
      %39 = sbr.rel (0) target = $region13
    $region12: #{tpu_custom_call.1} parent=1 // pred_region
      %s41 = ssub.s32 2816, 2816
      %42 = vsyncadd [#allocation6], %s41
      %s43 = sshll.u32 [#allocation7], 4
      %s44 = int_to_ptr.vmem [resolvable:$true] %s43
      %49 = dma.hbm_to_vmem [thread:$0]  %s2, 2816, %s44, [#allocation6], 128, 128, 8
    $region13: #{tpu_custom_call.1} parent=1 // pred_fallthru
      _
    // Predicated region
    $region14: #{tpu_custom_call.1} parent=1 // pred_check
      _
    $region15: #{tpu_custom_call.1} parent=1 // pred_check_branch
      %51 = sbr.rel (0) target = $region17
    $region16: #{tpu_custom_call.1} parent=1 // pred_region
      %52 = dma.done [#allocation3], 256
    $region17: #{tpu_custom_call.1} parent=1 // pred_fallthru
      _
    // Predicated region
    $region18: #{tpu_custom_call.1} parent=1 // pred_check
      _
    $region19: #{tpu_custom_call.1} parent=1 // pred_check_branch
      %54 = sbr.rel (0) target = $region21
    $region20: #{tpu_custom_call.1} parent=1 // pred_region
      %55 = dma.done [#allocation6], 256
    $region21: #{tpu_custom_call.1} parent=1 // pred_fallthru
      _
    // Predicated region
    $region22: #{tpu_custom_call.1} parent=1 // pred_check
      _
    $region23: #{tpu_custom_call.1} parent=1 // pred_check_branch
      %57 = sbr.rel (0) target = $region25
    $region24: #{tpu_custom_call.1} parent=1 // pred_region
      %58 = dma.done [#allocation6], 2816
    $region25: #{tpu_custom_call.1} parent=1 // pred_fallthru
      _
    %v59 = vld [vmem:[#allocation2] sm:$0xff]
    %v60 = vld [vmem:[#allocation2 + $0x8] sm:$0xff]
    %v61 = vld [vmem:[#allocation5] sm:$0xff]
    %v62 = vld [vmem:[#allocation5 + $0x8] sm:$0xff]
    %v63 = vld [vmem:[#allocation7] sm:$0xff]
    %v64 = vld [vmem:[#allocation7 + $0x8] sm:$0xff]
    %v65 = vld [vmem:[#allocation7 + $0x10] sm:$0xff]
    %v66 = vld [vmem:[#allocation7 + $0x18] sm:$0xff]
    %v67 = vld [vmem:[#allocation7 + $0x20] sm:$0xff]
    %v68 = vld [vmem:[#allocation7 + $0x28] sm:$0xff]
    %v69 = vld [vmem:[#allocation7 + $0x30] sm:$0xff]
    %v70 = vld [vmem:[#allocation7 + $0x38] sm:$0xff]
    %v71 = vld [vmem:[#allocation7 + $0x40] sm:$0xff]
    %v72 = vld [vmem:[#allocation7 + $0x48] sm:$0xff]
    %v73 = vld [vmem:[#allocation7 + $0x50] sm:$0xff]
    %v74 = vld [vmem:[#allocation7 + $0x58] sm:$0xff]
    %v75 = vld [vmem:[#allocation7 + $0x60] sm:$0xff]
    %v76 = vld [vmem:[#allocation7 + $0x68] sm:$0xff]
    %v77 = vld [vmem:[#allocation7 + $0x70] sm:$0xff]
    %v78 = vld [vmem:[#allocation7 + $0x78] sm:$0xff]
    %v79 = vld [vmem:[#allocation7 + $0x80] sm:$0xff]
    %v80 = vld [vmem:[#allocation7 + $0x88] sm:$0xff]
    %v81 = vld [vmem:[#allocation7 + $0x90] sm:$0xff]
    %v82 = vld [vmem:[#allocation7 + $0x98] sm:$0xff]
    %v83 = vld [vmem:[#allocation7 + $0xa0] sm:$0xff]
    %v84 = vld [vmem:[#allocation7 + $0xa8] sm:$0x7]
    %v85 = vlaneseq
    %v86 = vshrl.u32 %v85, 7
    %v87 = vsub.s32 0, %v86
    %v88 = vrot.slane %v83, %v87
    %vm89 = vcmask 261120
    %v91 = vsel %vm89, %v59, 0
    %v94 = vsel %vm89, %v60, 0
    %96 = vmatprep.subr.mxu0 0.0
    %97 = vmatpush1.msra.mxu0 0.0
    %98 = vmatprep.subr.mxu0 0.0
    %99 = vmatpush1.msra.mxu0 0.0
    %100 = vmatprep.subr.mxu0 0.0
    %101 = vmatpush1.msra.mxu0 0.0
    %102 = vmatprep.subr.mxu0 0.0
    %103 = vmatpush1.msra.mxu0 0.0
    %104 = vmatprep.subr.mxu0 0.0
    %105 = vmatpush1.msra.mxu0 0.0
    %106 = vmatprep.subr.mxu0 0.0
    %107 = vmatpush1.msra.mxu0 0.0
    %108 = vmatprep.subr.mxu0 0.0
    %109 = vmatpush1.msra.mxu0 0.0
    %110 = vmatprep.subr.mxu0 0.0
    %111 = vmatpush1.msra.mxu0 0.0
    %112 = vmatprep.subr.mxu0 0.0
    %113 = vmatpush1.msra.mxu0 0.0
    %114 = vmatprep.subr.mxu0 0.0
    %115 = vmatpush1.msra.mxu0 0.0
    %116 = vmatprep.subr.mxu0 0.0
    %117 = vmatpush1.msra.mxu0 0.0
    %118 = vmatprep.subr.mxu0 0.0
    %119 = vmatpush1.msra.mxu0 0.0
    %120 = vmatprep.subr.mxu0 0.0
    %121 = vmatpush1.msra.mxu0 %v70
    %122 = vmatprep.subr.mxu0 0.0
    %123 = vmatpush1.msra.mxu0 %v69
    %124 = vmatprep.subr.mxu0 0.0
    %125 = vmatpush1.msra.mxu0 %v68
    %126 = vmatprep.subr.mxu0 0.0
    %127 = vmatpush1.msra.mxu0 %v67
    %128 = vmatprep.subr.mxu0 0.0
    %129 = vmatpush2.msra.mxu0 0.0
    %130 = vmatprep.subr.mxu0 0.0
    %131 = vmatpush2.msra.mxu0 0.0
    %132 = vmatprep.subr.mxu0 0.0
    %133 = vmatpush2.msra.mxu0 0.0
    %134 = vmatprep.subr.mxu0 0.0
    %135 = vmatpush2.msra.mxu0 0.0
    %136 = vmatprep.subr.mxu0 0.0
    %137 = vmatpush2.msra.mxu0 0.0
    %138 = vmatprep.subr.mxu0 0.0
    %139 = vmatpush2.msra.mxu0 0.0
    %140 = vmatprep.subr.mxu0 0.0
    %141 = vmatpush2.msra.mxu0 0.0
    %142 = vmatprep.subr.mxu0 0.0
    %143 = vmatpush2.msra.mxu0 0.0
    %144 = vmatprep.subr.mxu0 0.0
    %145 = vmatpush2.msra.mxu0 0.0
    %146 = vmatprep.subr.mxu0 0.0
    %147 = vmatpush2.msra.mxu0 0.0
    %148 = vmatprep.subr.mxu0 0.0
    %149 = vmatpush2.msra.mxu0 0.0
    %150 = vmatprep.subr.mxu0 0.0
    %151 = vmatpush2.msra.mxu0 0.0
    %152 = vmatprep.subr.mxu0 0.0
    %153 = vmatpush2.msra.mxu0 0.0
    %154 = vmatprep.subr.mxu0 0.0
    %155 = vmatpush2.msra.mxu0 0.0
    %156 = vmatprep.subr.mxu0 0.0
    %157 = vmatpush2.msra.mxu0 0.0
    %158 = vmatprep.subr.mxu0 0.0
    %159 = vmatpush2.msra.mxu0 0.0
    %160 = vmatprep.mubr.f32.mxu0 0.0
    %161 = vmatmul.mubr.f32.gmra.mxu0 %v91
    %v162 = vpop.f32.mrf.mxu0
    %v163 = vadd.f32 %v88, %v162
    %v164 = vpop.f32.mrf.mxu0
    %165 = vmatprep.mubr.f32.mxu0 0.0
    %166 = vmatmul.mubr.f32.gmra.mxu0 %v94
    %v167 = vpop.f32.mrf.mxu0
    %v168 = vadd.f32 %v88, %v167
    %v169 = vpop.f32.mrf.mxu0
    %170 = vdwg.mxu0
    %v171 = vmul.f32 %v163, 0.35355338
    %v172 = vmul.f32 %v168, 0.35355338
    %v173 = vlaneseq
    %v174 = vshrl.u32 %v173, 7
    %v175 = vsub.s32 1, %v174
    %v176 = vrot.slane %v83, %v175
    %v178 = vsel %vm89, %v61, 0
    %v181 = vsel %vm89, %v62, 0
    %183 = vmatprep.subr.mxu0 0.0
    %184 = vmatpush1.msra.mxu0 0.0
    %185 = vmatprep.subr.mxu0 0.0
    %186 = vmatpush1.msra.mxu0 0.0
    %187 = vmatprep.subr.mxu0 0.0
    %188 = vmatpush1.msra.mxu0 0.0
    %189 = vmatprep.subr.mxu0 0.0
    %190 = vmatpush1.msra.mxu0 0.0
    %191 = vmatprep.subr.mxu0 0.0
    %192 = vmatpush1.msra.mxu0 0.0
    %193 = vmatprep.subr.mxu0 0.0
    %194 = vmatpush1.msra.mxu0 0.0
    %195 = vmatprep.subr.mxu0 0.0
    %196 = vmatpush1.msra.mxu0 0.0
    %197 = vmatprep.subr.mxu0 0.0
    %198 = vmatpush1.msra.mxu0 0.0
    %199 = vmatprep.subr.mxu0 0.0
    %200 = vmatpush1.msra.mxu0 0.0
    %201 = vmatprep.subr.mxu0 0.0
    %202 = vmatpush1.msra.mxu0 0.0
    %203 = vmatprep.subr.mxu0 0.0
    %204 = vmatpush1.msra.mxu0 0.0
    %205 = vmatprep.subr.mxu0 0.0
    %206 = vmatpush1.msra.mxu0 0.0
    %207 = vmatprep.subr.mxu0 0.0
    %208 = vmatpush1.msra.mxu0 %v66
    %209 = vmatprep.subr.mxu0 0.0
    %210 = vmatpush1.msra.mxu0 %v65
    %211 = vmatprep.subr.mxu0 0.0
    %212 = vmatpush1.msra.mxu0 %v64
    %213 = vmatprep.subr.mxu0 0.0
    %214 = vmatpush1.msra.mxu0 %v63
    %215 = vmatprep.subr.mxu0 0.0
    %216 = vmatpush2.msra.mxu0 0.0
    %217 = vmatprep.subr.mxu0 0.0
    %218 = vmatpush2.msra.mxu0 0.0
    %219 = vmatprep.subr.mxu0 0.0
    %220 = vmatpush2.msra.mxu0 0.0
    %221 = vmatprep.subr.mxu0 0.0
    %222 = vmatpush2.msra.mxu0 0.0
    %223 = vmatprep.subr.mxu0 0.0
    %224 = vmatpush2.msra.mxu0 0.0
    %225 = vmatprep.subr.mxu0 0.0
    %226 = vmatpush2.msra.mxu0 0.0
    %227 = vmatprep.subr.mxu0 0.0
    %228 = vmatpush2.msra.mxu0 0.0
    %229 = vmatprep.subr.mxu0 0.0
    %230 = vmatpush2.msra.mxu0 0.0
    %231 = vmatprep.subr.mxu0 0.0
    %232 = vmatpush2.msra.mxu0 0.0
    %233 = vmatprep.subr.mxu0 0.0
    %234 = vmatpush2.msra.mxu0 0.0
    %235 = vmatprep.subr.mxu0 0.0
    %236 = vmatpush2.msra.mxu0 0.0
    %237 = vmatprep.subr.mxu0 0.0
    %238 = vmatpush2.msra.mxu0 0.0
    %239 = vmatprep.subr.mxu0 0.0
    %240 = vmatpush2.msra.mxu0 0.0
    %241 = vmatprep.subr.mxu0 0.0
    %242 = vmatpush2.msra.mxu0 0.0
    %243 = vmatprep.subr.mxu0 0.0
    %244 = vmatpush2.msra.mxu0 0.0
    %245 = vmatprep.subr.mxu0 0.0
    %246 = vmatpush2.msra.mxu0 0.0
    %247 = vmatprep.mubr.f32.mxu0 0.0
    %248 = vmatmul.mubr.f32.gmra.mxu0 %v178
    %v249 = vpop.f32.mrf.mxu0
    %v250 = vadd.f32 %v176, %v249
    %v251 = vpop.f32.mrf.mxu0
    %252 = vmatprep.mubr.f32.mxu0 0.0
    %253 = vmatmul.mubr.f32.gmra.mxu0 %v181
    %v254 = vpop.f32.mrf.mxu0
    %v255 = vadd.f32 %v176, %v254
    %v256 = vpop.f32.mrf.mxu0
    %257 = vdwg.mxu0
    %vm258 = vcmask 64512
    %v260 = vsel %vm258, %v171, 0
    %v263 = vsel %vm258, %v250, 0
    %265 = vmatprep.subr.mxu0 0.0
    %266 = vmatpush1.xpose.msra.mxu0 0.0
    %267 = vmatprep.subr.mxu0 0.0
    %268 = vmatpush1.xpose.msra.mxu0 0.0
    %269 = vmatprep.subr.mxu0 0.0
    %270 = vmatpush1.xpose.msra.mxu0 0.0
    %271 = vmatprep.subr.mxu0 0.0
    %272 = vmatpush1.xpose.msra.mxu0 0.0
    %273 = vmatprep.subr.mxu0 0.0
    %274 = vmatpush1.xpose.msra.mxu0 0.0
    %275 = vmatprep.subr.mxu0 0.0
    %276 = vmatpush1.xpose.msra.mxu0 0.0
    %277 = vmatprep.subr.mxu0 0.0
    %278 = vmatpush1.xpose.msra.mxu0 0.0
    %279 = vmatprep.subr.mxu0 0.0
    %280 = vmatpush1.xpose.msra.mxu0 0.0
    %281 = vmatprep.subr.mxu0 0.0
    %282 = vmatpush1.xpose.msra.mxu0 0.0
    %283 = vmatprep.subr.mxu0 0.0
    %284 = vmatpush1.xpose.msra.mxu0 0.0
    %285 = vmatprep.subr.mxu0 0.0
    %286 = vmatpush1.xpose.msra.mxu0 0.0
    %287 = vmatprep.subr.mxu0 0.0
    %288 = vmatpush1.xpose.msra.mxu0 0.0
    %289 = vmatprep.subr.mxu0 0.0
    %290 = vmatpush1.xpose.msra.mxu0 0.0
    %291 = vmatprep.subr.mxu0 0.0
    %292 = vmatpush1.xpose.msra.mxu0 0.0
    %293 = vmatprep.subr.mxu0 0.0
    %294 = vmatpush1.xpose.msra.mxu0 0.0
    %295 = vmatprep.subr.mxu0 0.0
    %296 = vmatpush1.xpose.msra.mxu0 %v263
    %297 = vmatprep.subr.mxu0 0.0
    %298 = vmatpush2.xpose.msra.mxu0 0.0
    %299 = vmatprep.subr.mxu0 0.0
    %300 = vmatpush2.xpose.msra.mxu0 0.0
    %301 = vmatprep.subr.mxu0 0.0
    %302 = vmatpush2.xpose.msra.mxu0 0.0
    %303 = vmatprep.subr.mxu0 0.0
    %304 = vmatpush2.xpose.msra.mxu0 0.0
    %305 = vmatprep.subr.mxu0 0.0
    %306 = vmatpush2.xpose.msra.mxu0 0.0
    %307 = vmatprep.subr.mxu0 0.0
    %308 = vmatpush2.xpose.msra.mxu0 0.0
    %309 = vmatprep.subr.mxu0 0.0
    %310 = vmatpush2.xpose.msra.mxu0 0.0
    %311 = vmatprep.subr.mxu0 0.0
    %312 = vmatpush2.xpose.msra.mxu0 0.0
    %313 = vmatprep.subr.mxu0 0.0
    %314 = vmatpush2.xpose.msra.mxu0 0.0
    %315 = vmatprep.subr.mxu0 0.0
    %316 = vmatpush2.xpose.msra.mxu0 0.0
    %317 = vmatprep.subr.mxu0 0.0
    %318 = vmatpush2.xpose.msra.mxu0 0.0
    %319 = vmatprep.subr.mxu0 0.0
    %320 = vmatpush2.xpose.msra.mxu0 0.0
    %321 = vmatprep.subr.mxu0 0.0
    %322 = vmatpush2.xpose.msra.mxu0 0.0
    %323 = vmatprep.subr.mxu0 0.0
    %324 = vmatpush2.xpose.msra.mxu0 0.0
    %325 = vmatprep.subr.mxu0 0.0
    %326 = vmatpush2.xpose.msra.mxu0 0.0
    %327 = vmatprep.subr.mxu0 0.0
    %328 = vmatpush2.xpose.msra.mxu0 0.0
    %329 = vmatprep.mubr.f32.mxu0 0.0
    %330 = vmatmul.mubr.f32.gmra.mxu0 %v260
    %v331 = vpop.f32.mrf.mxu0
    %v332 = vadd.f32 0.0, %v331
    %v333 = vpop.f32.mrf.mxu0
    %334 = vdwg.mxu0
    %v336 = vsel %vm258, %v172, 0
    %v339 = vsel %vm258, %v255, 0
    %341 = vmatprep.subr.mxu0 0.0
    %342 = vmatpush1.xpose.msra.mxu0 0.0
    %343 = vmatprep.subr.mxu0 0.0
    %344 = vmatpush1.xpose.msra.mxu0 0.0
    %345 = vmatprep.subr.mxu0 0.0
    %346 = vmatpush1.xpose.msra.mxu0 0.0
    %347 = vmatprep.subr.mxu0 0.0
    %348 = vmatpush1.xpose.msra.mxu0 0.0
    %349 = vmatprep.subr.mxu0 0.0
    %350 = vmatpush1.xpose.msra.mxu0 0.0
    %351 = vmatprep.subr.mxu0 0.0
    %352 = vmatpush1.xpose.msra.mxu0 0.0
    %353 = vmatprep.subr.mxu0 0.0
    %354 = vmatpush1.xpose.msra.mxu0 0.0
    %355 = vmatprep.subr.mxu0 0.0
    %356 = vmatpush1.xpose.msra.mxu0 0.0
    %357 = vmatprep.subr.mxu0 0.0
    %358 = vmatpush1.xpose.msra.mxu0 0.0
    %359 = vmatprep.subr.mxu0 0.0
    %360 = vmatpush1.xpose.msra.mxu0 0.0
    %361 = vmatprep.subr.mxu0 0.0
    %362 = vmatpush1.xpose.msra.mxu0 0.0
    %363 = vmatprep.subr.mxu0 0.0
    %364 = vmatpush1.xpose.msra.mxu0 0.0
    %365 = vmatprep.subr.mxu0 0.0
    %366 = vmatpush1.xpose.msra.mxu0 0.0
    %367 = vmatprep.subr.mxu0 0.0
    %368 = vmatpush1.xpose.msra.mxu0 0.0
    %369 = vmatprep.subr.mxu0 0.0
    %370 = vmatpush1.xpose.msra.mxu0 0.0
    %371 = vmatprep.subr.mxu0 0.0
    %372 = vmatpush1.xpose.msra.mxu0 %v339
    %373 = vmatprep.subr.mxu0 0.0
    %374 = vmatpush2.xpose.msra.mxu0 0.0
    %375 = vmatprep.subr.mxu0 0.0
    %376 = vmatpush2.xpose.msra.mxu0 0.0
    %377 = vmatprep.subr.mxu0 0.0
    %378 = vmatpush2.xpose.msra.mxu0 0.0
    %379 = vmatprep.subr.mxu0 0.0
    %380 = vmatpush2.xpose.msra.mxu0 0.0
    %381 = vmatprep.subr.mxu0 0.0
    %382 = vmatpush2.xpose.msra.mxu0 0.0
    %383 = vmatprep.subr.mxu0 0.0
    %384 = vmatpush2.xpose.msra.mxu0 0.0
    %385 = vmatprep.subr.mxu0 0.0
    %386 = vmatpush2.xpose.msra.mxu0 0.0
    %387 = vmatprep.subr.mxu0 0.0
    %388 = vmatpush2.xpose.msra.mxu0 0.0
    %389 = vmatprep.subr.mxu0 0.0
    %390 = vmatpush2.xpose.msra.mxu0 0.0
    %391 = vmatprep.subr.mxu0 0.0
    %392 = vmatpush2.xpose.msra.mxu0 0.0
    %393 = vmatprep.subr.mxu0 0.0
    %394 = vmatpush2.xpose.msra.mxu0 0.0
    %395 = vmatprep.subr.mxu0 0.0
    %396 = vmatpush2.xpose.msra.mxu0 0.0
    %397 = vmatprep.subr.mxu0 0.0
    %398 = vmatpush2.xpose.msra.mxu0 0.0
    %399 = vmatprep.subr.mxu0 0.0
    %400 = vmatpush2.xpose.msra.mxu0 0.0
    %401 = vmatprep.subr.mxu0 0.0
    %402 = vmatpush2.xpose.msra.mxu0 0.0
    %403 = vmatprep.subr.mxu0 0.0
    %404 = vmatpush2.xpose.msra.mxu0 0.0
    %405 = vmatprep.mubr.f32.mxu0 0.0
    %406 = vmatmul.mubr.f32.gmra.mxu0 %v336
    %v407 = vpop.f32.mrf.mxu0
    %v408 = vadd.f32 0.0, %v407
    %v409 = vpop.f32.mrf.mxu0
    %410 = vdwg.mxu0
    %v411 = vsel %vm258, %v332, -inf
    %412 = vmax.xlane.f32.xlu0 %v411
    %v413 = vpop.xlane.xlu0 %412
    %v414 = vsel %vm258, %v408, -inf
    %415 = vmax.xlane.f32.xlu0 %v414
    %v416 = vpop.xlane.xlu0 %415
    %v417 = vsub.f32 %v332, %v413
    %v418 = vsub.f32 %v408, %v416
    %v419 = vmul.f32 %v417, 1.442695
    %v420 = vpow.pop %v419
    %v421 = vmul.f32 %v418, 1.442695
    %v422 = vpow.pop %v421
    %v423 = vsel %vm258, %v420, 0.0
    %424 = vadd.xlane.f32.xlu0 %v423
    %v425 = vpop.xlane.xlu0 %424
    %v426 = vsel %vm258, %v422, 0.0
    %427 = vadd.xlane.f32.xlu0 %v426
    %v428 = vpop.xlane.xlu0 %427
    %v429 = vrcp.pop %v425
    %v430 = vrcp.pop %v428
    %v431 = vmul.f32 %v420, %v429
    %v432 = vmul.f32 %v422, %v430
    %433 = vrot.lane.b32.xlu0 %v171, 120
    %v434 = vpop.permute.xlu0 %433
    %435 = vrot.lane.b32.xlu0 %v250, 120
    %v436 = vpop.permute.xlu0 %435
    %v437 = vsel %vm258, %v434, 0
    %v439 = vsel %vm258, %v436, 0
    %441 = vmatprep.subr.mxu0 0.0
    %442 = vmatpush1.xpose.msra.mxu0 0.0
    %443 = vmatprep.subr.mxu0 0.0
    %444 = vmatpush1.xpose.msra.mxu0 0.0
    %445 = vmatprep.subr.mxu0 0.0
    %446 = vmatpush1.xpose.msra.mxu0 0.0
    %447 = vmatprep.subr.mxu0 0.0
    %448 = vmatpush1.xpose.msra.mxu0 0.0
    %449 = vmatprep.subr.mxu0 0.0
    %450 = vmatpush1.xpose.msra.mxu0 0.0
    %451 = vmatprep.subr.mxu0 0.0
    %452 = vmatpush1.xpose.msra.mxu0 0.0
    %453 = vmatprep.subr.mxu0 0.0
    %454 = vmatpush1.xpose.msra.mxu0 0.0
    %455 = vmatprep.subr.mxu0 0.0
    %456 = vmatpush1.xpose.msra.mxu0 0.0
    %457 = vmatprep.subr.mxu0 0.0
    %458 = vmatpush1.xpose.msra.mxu0 0.0
    %459 = vmatprep.subr.mxu0 0.0
    %460 = vmatpush1.xpose.msra.mxu0 0.0
    %461 = vmatprep.subr.mxu0 0.0
    %462 = vmatpush1.xpose.msra.mxu0 0.0
    %463 = vmatprep.subr.mxu0 0.0
    %464 = vmatpush1.xpose.msra.mxu0 0.0
    %465 = vmatprep.subr.mxu0 0.0
    %466 = vmatpush1.xpose.msra.mxu0 0.0
    %467 = vmatprep.subr.mxu0 0.0
    %468 = vmatpush1.xpose.msra.mxu0 0.0
    %469 = vmatprep.subr.mxu0 0.0
    %470 = vmatpush1.xpose.msra.mxu0 0.0
    %471 = vmatprep.subr.mxu0 0.0
    %472 = vmatpush1.xpose.msra.mxu0 %v439
    %473 = vmatprep.subr.mxu0 0.0
    %474 = vmatpush2.xpose.msra.mxu0 0.0
    %475 = vmatprep.subr.mxu0 0.0
    %476 = vmatpush2.xpose.msra.mxu0 0.0
    %477 = vmatprep.subr.mxu0 0.0
    %478 = vmatpush2.xpose.msra.mxu0 0.0
    %479 = vmatprep.subr.mxu0 0.0
    %480 = vmatpush2.xpose.msra.mxu0 0.0
    %481 = vmatprep.subr.mxu0 0.0
    %482 = vmatpush2.xpose.msra.mxu0 0.0
    %483 = vmatprep.subr.mxu0 0.0
    %484 = vmatpush2.xpose.msra.mxu0 0.0
    %485 = vmatprep.subr.mxu0 0.0
    %486 = vmatpush2.xpose.msra.mxu0 0.0
    %487 = vmatprep.subr.mxu0 0.0
    %488 = vmatpush2.xpose.msra.mxu0 0.0
    %489 = vmatprep.subr.mxu0 0.0
    %490 = vmatpush2.xpose.msra.mxu0 0.0
    %491 = vmatprep.subr.mxu0 0.0
    %492 = vmatpush2.xpose.msra.mxu0 0.0
    %493 = vmatprep.subr.mxu0 0.0
    %494 = vmatpush2.xpose.msra.mxu0 0.0
    %495 = vmatprep.subr.mxu0 0.0
    %496 = vmatpush2.xpose.msra.mxu0 0.0
    %497 = vmatprep.subr.mxu0 0.0
    %498 = vmatpush2.xpose.msra.mxu0 0.0
    %499 = vmatprep.subr.mxu0 0.0
    %500 = vmatpush2.xpose.msra.mxu0 0.0
    %501 = vmatprep.subr.mxu0 0.0
    %502 = vmatpush2.xpose.msra.mxu0 0.0
    %503 = vmatprep.subr.mxu0 0.0
    %504 = vmatpush2.xpose.msra.mxu0 0.0
    %505 = vmatprep.mubr.f32.mxu0 0.0
    %506 = vmatmul.mubr.f32.gmra.mxu0 %v437
    %v507 = vpop.f32.mrf.mxu0
    %v508 = vadd.f32 0.0, %v507
    %v509 = vpop.f32.mrf.mxu0
    %510 = vdwg.mxu0
    %511 = vrot.lane.b32.xlu0 %v172, 120
    %v512 = vpop.permute.xlu0 %511
    %513 = vrot.lane.b32.xlu0 %v255, 120
    %v514 = vpop.permute.xlu0 %513
    %v515 = vsel %vm258, %v512, 0
    %v517 = vsel %vm258, %v514, 0
    %519 = vmatprep.subr.mxu0 0.0
    %520 = vmatpush1.xpose.msra.mxu0 0.0
    %521 = vmatprep.subr.mxu0 0.0
    %522 = vmatpush1.xpose.msra.mxu0 0.0
    %523 = vmatprep.subr.mxu0 0.0
    %524 = vmatpush1.xpose.msra.mxu0 0.0
    %525 = vmatprep.subr.mxu0 0.0
    %526 = vmatpush1.xpose.msra.mxu0 0.0
    %527 = vmatprep.subr.mxu0 0.0
    %528 = vmatpush1.xpose.msra.mxu0 0.0
    %529 = vmatprep.subr.mxu0 0.0
    %530 = vmatpush1.xpose.msra.mxu0 0.0
    %531 = vmatprep.subr.mxu0 0.0
    %532 = vmatpush1.xpose.msra.mxu0 0.0
    %533 = vmatprep.subr.mxu0 0.0
    %534 = vmatpush1.xpose.msra.mxu0 0.0
    %535 = vmatprep.subr.mxu0 0.0
    %536 = vmatpush1.xpose.msra.mxu0 0.0
    %537 = vmatprep.subr.mxu0 0.0
    %538 = vmatpush1.xpose.msra.mxu0 0.0
    %539 = vmatprep.subr.mxu0 0.0
    %540 = vmatpush1.xpose.msra.mxu0 0.0
    %541 = vmatprep.subr.mxu0 0.0
    %542 = vmatpush1.xpose.msra.mxu0 0.0
    %543 = vmatprep.subr.mxu0 0.0
    %544 = vmatpush1.xpose.msra.mxu0 0.0
    %545 = vmatprep.subr.mxu0 0.0
    %546 = vmatpush1.xpose.msra.mxu0 0.0
    %547 = vmatprep.subr.mxu0 0.0
    %548 = vmatpush1.xpose.msra.mxu0 0.0
    %549 = vmatprep.subr.mxu0 0.0
    %550 = vmatpush1.xpose.msra.mxu0 %v517
    %551 = vmatprep.subr.mxu0 0.0
    %552 = vmatpush2.xpose.msra.mxu0 0.0
    %553 = vmatprep.subr.mxu0 0.0
    %554 = vmatpush2.xpose.msra.mxu0 0.0
    %555 = vmatprep.subr.mxu0 0.0
    %556 = vmatpush2.xpose.msra.mxu0 0.0
    %557 = vmatprep.subr.mxu0 0.0
    %558 = vmatpush2.xpose.msra.mxu0 0.0
    %559 = vmatprep.subr.mxu0 0.0
    %560 = vmatpush2.xpose.msra.mxu0 0.0
    %561 = vmatprep.subr.mxu0 0.0
    %562 = vmatpush2.xpose.msra.mxu0 0.0
    %563 = vmatprep.subr.mxu0 0.0
    %564 = vmatpush2.xpose.msra.mxu0 0.0
    %565 = vmatprep.subr.mxu0 0.0
    %566 = vmatpush2.xpose.msra.mxu0 0.0
    %567 = vmatprep.subr.mxu0 0.0
    %568 = vmatpush2.xpose.msra.mxu0 0.0
    %569 = vmatprep.subr.mxu0 0.0
    %570 = vmatpush2.xpose.msra.mxu0 0.0
    %571 = vmatprep.subr.mxu0 0.0
    %572 = vmatpush2.xpose.msra.mxu0 0.0
    %573 = vmatprep.subr.mxu0 0.0
    %574 = vmatpush2.xpose.msra.mxu0 0.0
    %575 = vmatprep.subr.mxu0 0.0
    %576 = vmatpush2.xpose.msra.mxu0 0.0
    %577 = vmatprep.subr.mxu0 0.0
    %578 = vmatpush2.xpose.msra.mxu0 0.0
    %579 = vmatprep.subr.mxu0 0.0
    %580 = vmatpush2.xpose.msra.mxu0 0.0
    %581 = vmatprep.subr.mxu0 0.0
    %582 = vmatpush2.xpose.msra.mxu0 0.0
    %583 = vmatprep.mubr.f32.mxu0 0.0
    %584 = vmatmul.mubr.f32.gmra.mxu0 %v515
    %v585 = vpop.f32.mrf.mxu0
    %v586 = vadd.f32 0.0, %v585
    %v587 = vpop.f32.mrf.mxu0
    %588 = vdwg.mxu0
    %v589 = vsel %vm258, %v508, -inf
    %590 = vmax.xlane.f32.xlu0 %v589
    %v591 = vpop.xlane.xlu0 %590
    %v592 = vsel %vm258, %v586, -inf
    %593 = vmax.xlane.f32.xlu0 %v592
    %v594 = vpop.xlane.xlu0 %593
    %v595 = vsub.f32 %v508, %v591
    %v596 = vsub.f32 %v586, %v594
    %v597 = vmul.f32 %v595, 1.442695
    %v598 = vpow.pop %v597
    %v599 = vmul.f32 %v596, 1.442695
    %v600 = vpow.pop %v599
    %v601 = vsel %vm258, %v598, 0.0
    %602 = vadd.xlane.f32.xlu0 %v601
    %v603 = vpop.xlane.xlu0 %602
    %v604 = vsel %vm258, %v600, 0.0
    %605 = vadd.xlane.f32.xlu0 %v604
    %v606 = vpop.xlane.xlu0 %605
    %v607 = vrcp.pop %v603
    %v608 = vrcp.pop %v606
    %v609 = vmul.f32 %v598, %v607
    %v610 = vmul.f32 %v600, %v608
    %611 = vrot.lane.b32.xlu0 %v171, 112
    %v612 = vpop.permute.xlu0 %611
    %613 = vrot.lane.b32.xlu0 %v250, 112
    %v614 = vpop.permute.xlu0 %613
    %v615 = vsel %vm258, %v612, 0
    %v617 = vsel %vm258, %v614, 0
    %619 = vmatprep.subr.mxu0 0.0
    %620 = vmatpush1.xpose.msra.mxu0 0.0
    %621 = vmatprep.subr.mxu0 0.0
    %622 = vmatpush1.xpose.msra.mxu0 0.0
    %623 = vmatprep.subr.mxu0 0.0
    %624 = vmatpush1.xpose.msra.mxu0 0.0
    %625 = vmatprep.subr.mxu0 0.0
    %626 = vmatpush1.xpose.msra.mxu0 0.0
    %627 = vmatprep.subr.mxu0 0.0
    %628 = vmatpush1.xpose.msra.mxu0 0.0
    %629 = vmatprep.subr.mxu0 0.0
    %630 = vmatpush1.xpose.msra.mxu0 0.0
    %631 = vmatprep.subr.mxu0 0.0
    %632 = vmatpush1.xpose.msra.mxu0 0.0
    %633 = vmatprep.subr.mxu0 0.0
    %634 = vmatpush1.xpose.msra.mxu0 0.0
    %635 = vmatprep.subr.mxu0 0.0
    %636 = vmatpush1.xpose.msra.mxu0 0.0
    %637 = vmatprep.subr.mxu0 0.0
    %638 = vmatpush1.xpose.msra.mxu0 0.0
    %639 = vmatprep.subr.mxu0 0.0
    %640 = vmatpush1.xpose.msra.mxu0 0.0
    %641 = vmatprep.subr.mxu0 0.0
    %642 = vmatpush1.xpose.msra.mxu0 0.0
    %643 = vmatprep.subr.mxu0 0.0
    %644 = vmatpush1.xpose.msra.mxu0 0.0
    %645 = vmatprep.subr.mxu0 0.0
    %646 = vmatpush1.xpose.msra.mxu0 0.0
    %647 = vmatprep.subr.mxu0 0.0
    %648 = vmatpush1.xpose.msra.mxu0 0.0
    %649 = vmatprep.subr.mxu0 0.0
    %650 = vmatpush1.xpose.msra.mxu0 %v617
    %651 = vmatprep.subr.mxu0 0.0
    %652 = vmatpush2.xpose.msra.mxu0 0.0
    %653 = vmatprep.subr.mxu0 0.0
    %654 = vmatpush2.xpose.msra.mxu0 0.0
    %655 = vmatprep.subr.mxu0 0.0
    %656 = vmatpush2.xpose.msra.mxu0 0.0
    %657 = vmatprep.subr.mxu0 0.0
    %658 = vmatpush2.xpose.msra.mxu0 0.0
    %659 = vmatprep.subr.mxu0 0.0
    %660 = vmatpush2.xpose.msra.mxu0 0.0
    %661 = vmatprep.subr.mxu0 0.0
    %662 = vmatpush2.xpose.msra.mxu0 0.0
    %663 = vmatprep.subr.mxu0 0.0
    %664 = vmatpush2.xpose.msra.mxu0 0.0
    %665 = vmatprep.subr.mxu0 0.0
    %666 = vmatpush2.xpose.msra.mxu0 0.0
    %667 = vmatprep.subr.mxu0 0.0
    %668 = vmatpush2.xpose.msra.mxu0 0.0
    %669 = vmatprep.subr.mxu0 0.0
    %670 = vmatpush2.xpose.msra.mxu0 0.0
    %671 = vmatprep.subr.mxu0 0.0
    %672 = vmatpush2.xpose.msra.mxu0 0.0
    %673 = vmatprep.subr.mxu0 0.0
    %674 = vmatpush2.xpose.msra.mxu0 0.0
    %675 = vmatprep.subr.mxu0 0.0
    %676 = vmatpush2.xpose.msra.mxu0 0.0
    %677 = vmatprep.subr.mxu0 0.0
    %678 = vmatpush2.xpose.msra.mxu0 0.0
    %679 = vmatprep.subr.mxu0 0.0
    %680 = vmatpush2.xpose.msra.mxu0 0.0
    %681 = vmatprep.subr.mxu0 0.0
    %682 = vmatpush2.xpose.msra.mxu0 0.0
    %683 = vmatprep.mubr.f32.mxu0 0.0
    %684 = vmatmul.mubr.f32.gmra.mxu0 %v615
    %v685 = vpop.f32.mrf.mxu0
    %v686 = vadd.f32 0.0, %v685
    %v687 = vpop.f32.mrf.mxu0
    %688 = vdwg.mxu0
    %689 = vrot.lane.b32.xlu0 %v172, 112
    %v690 = vpop.permute.xlu0 %689
    %691 = vrot.lane.b32.xlu0 %v255, 112
    %v692 = vpop.permute.xlu0 %691
    %v693 = vsel %vm258, %v690, 0
    %v695 = vsel %vm258, %v692, 0
    %697 = vmatprep.subr.mxu0 0.0
    %698 = vmatpush1.xpose.msra.mxu0 0.0
    %699 = vmatprep.subr.mxu0 0.0
    %700 = vmatpush1.xpose.msra.mxu0 0.0
    %701 = vmatprep.subr.mxu0 0.0
    %702 = vmatpush1.xpose.msra.mxu0 0.0
    %703 = vmatprep.subr.mxu0 0.0
    %704 = vmatpush1.xpose.msra.mxu0 0.0
    %705 = vmatprep.subr.mxu0 0.0
    %706 = vmatpush1.xpose.msra.mxu0 0.0
    %707 = vmatprep.subr.mxu0 0.0
    %708 = vmatpush1.xpose.msra.mxu0 0.0
    %709 = vmatprep.subr.mxu0 0.0
    %710 = vmatpush1.xpose.msra.mxu0 0.0
    %711 = vmatprep.subr.mxu0 0.0
    %712 = vmatpush1.xpose.msra.mxu0 0.0
    %713 = vmatprep.subr.mxu0 0.0
    %714 = vmatpush1.xpose.msra.mxu0 0.0
    %715 = vmatprep.subr.mxu0 0.0
    %716 = vmatpush1.xpose.msra.mxu0 0.0
    %717 = vmatprep.subr.mxu0 0.0
    %718 = vmatpush1.xpose.msra.mxu0 0.0
    %719 = vmatprep.subr.mxu0 0.0
    %720 = vmatpush1.xpose.msra.mxu0 0.0
    %721 = vmatprep.subr.mxu0 0.0
    %722 = vmatpush1.xpose.msra.mxu0 0.0
    %723 = vmatprep.subr.mxu0 0.0
    %724 = vmatpush1.xpose.msra.mxu0 0.0
    %725 = vmatprep.subr.mxu0 0.0
    %726 = vmatpush1.xpose.msra.mxu0 0.0
    %727 = vmatprep.subr.mxu0 0.0
    %728 = vmatpush1.xpose.msra.mxu0 %v695
    %729 = vmatprep.subr.mxu0 0.0
    %730 = vmatpush2.xpose.msra.mxu0 0.0
    %731 = vmatprep.subr.mxu0 0.0
    %732 = vmatpush2.xpose.msra.mxu0 0.0
    %733 = vmatprep.subr.mxu0 0.0
    %734 = vmatpush2.xpose.msra.mxu0 0.0
    %735 = vmatprep.subr.mxu0 0.0
    %736 = vmatpush2.xpose.msra.mxu0 0.0
    %737 = vmatprep.subr.mxu0 0.0
    %738 = vmatpush2.xpose.msra.mxu0 0.0
    %739 = vmatprep.subr.mxu0 0.0
    %740 = vmatpush2.xpose.msra.mxu0 0.0
    %741 = vmatprep.subr.mxu0 0.0
    %742 = vmatpush2.xpose.msra.mxu0 0.0
    %743 = vmatprep.subr.mxu0 0.0
    %744 = vmatpush2.xpose.msra.mxu0 0.0
    %745 = vmatprep.subr.mxu0 0.0
    %746 = vmatpush2.xpose.msra.mxu0 0.0
    %747 = vmatprep.subr.mxu0 0.0
    %748 = vmatpush2.xpose.msra.mxu0 0.0
    %749 = vmatprep.subr.mxu0 0.0
    %750 = vmatpush2.xpose.msra.mxu0 0.0
    %751 = vmatprep.subr.mxu0 0.0
    %752 = vmatpush2.xpose.msra.mxu0 0.0
    %753 = vmatprep.subr.mxu0 0.0
    %754 = vmatpush2.xpose.msra.mxu0 0.0
    %755 = vmatprep.subr.mxu0 0.0
    %756 = vmatpush2.xpose.msra.mxu0 0.0
    %757 = vmatprep.subr.mxu0 0.0
    %758 = vmatpush2.xpose.msra.mxu0 0.0
    %759 = vmatprep.subr.mxu0 0.0
    %760 = vmatpush2.xpose.msra.mxu0 0.0
    %761 = vmatprep.mubr.f32.mxu0 0.0
    %762 = vmatmul.mubr.f32.gmra.mxu0 %v693
    %v763 = vpop.f32.mrf.mxu0
    %v764 = vadd.f32 0.0, %v763
    %v765 = vpop.f32.mrf.mxu0
    %766 = vdwg.mxu0
    %v767 = vsel %vm258, %v686, -inf
    %768 = vmax.xlane.f32.xlu0 %v767
    %v769 = vpop.xlane.xlu0 %768
    %v770 = vsel %vm258, %v764, -inf
    %771 = vmax.xlane.f32.xlu0 %v770
    %v772 = vpop.xlane.xlu0 %771
    %v773 = vsub.f32 %v686, %v769
    %v774 = vsub.f32 %v764, %v772
    %v775 = vmul.f32 %v773, 1.442695
    %v776 = vpow.pop %v775
    %v777 = vmul.f32 %v774, 1.442695
    %v778 = vpow.pop %v777
    %v779 = vsel %vm258, %v776, 0.0
    %780 = vadd.xlane.f32.xlu0 %v779
    %v781 = vpop.xlane.xlu0 %780
    %v782 = vsel %vm258, %v778, 0.0
    %783 = vadd.xlane.f32.xlu0 %v782
    %v784 = vpop.xlane.xlu0 %783
    %v785 = vrcp.pop %v781
    %v786 = vrcp.pop %v784
    %v787 = vmul.f32 %v776, %v785
    %v788 = vmul.f32 %v778, %v786
    %789 = vrot.lane.b32.xlu0 %v171, 104
    %v790 = vpop.permute.xlu0 %789
    %791 = vrot.lane.b32.xlu0 %v250, 104
    %v792 = vpop.permute.xlu0 %791
    %v793 = vsel %vm258, %v790, 0
    %v795 = vsel %vm258, %v792, 0
    %797 = vmatprep.subr.mxu0 0.0
    %798 = vmatpush1.xpose.msra.mxu0 0.0
    %799 = vmatprep.subr.mxu0 0.0
    %800 = vmatpush1.xpose.msra.mxu0 0.0
    %801 = vmatprep.subr.mxu0 0.0
    %802 = vmatpush1.xpose.msra.mxu0 0.0
    %803 = vmatprep.subr.mxu0 0.0
    %804 = vmatpush1.xpose.msra.mxu0 0.0
    %805 = vmatprep.subr.mxu0 0.0
    %806 = vmatpush1.xpose.msra.mxu0 0.0
    %807 = vmatprep.subr.mxu0 0.0
    %808 = vmatpush1.xpose.msra.mxu0 0.0
    %809 = vmatprep.subr.mxu0 0.0
    %810 = vmatpush1.xpose.msra.mxu0 0.0
    %811 = vmatprep.subr.mxu0 0.0
    %812 = vmatpush1.xpose.msra.mxu0 0.0
    %813 = vmatprep.subr.mxu0 0.0
    %814 = vmatpush1.xpose.msra.mxu0 0.0
    %815 = vmatprep.subr.mxu0 0.0
    %816 = vmatpush1.xpose.msra.mxu0 0.0
    %817 = vmatprep.subr.mxu0 0.0
    %818 = vmatpush1.xpose.msra.mxu0 0.0
    %819 = vmatprep.subr.mxu0 0.0
    %820 = vmatpush1.xpose.msra.mxu0 0.0
    %821 = vmatprep.subr.mxu0 0.0
    %822 = vmatpush1.xpose.msra.mxu0 0.0
    %823 = vmatprep.subr.mxu0 0.0
    %824 = vmatpush1.xpose.msra.mxu0 0.0
    %825 = vmatprep.subr.mxu0 0.0
    %826 = vmatpush1.xpose.msra.mxu0 0.0
    %827 = vmatprep.subr.mxu0 0.0
    %828 = vmatpush1.xpose.msra.mxu0 %v795
    %829 = vmatprep.subr.mxu0 0.0
    %830 = vmatpush2.xpose.msra.mxu0 0.0
    %831 = vmatprep.subr.mxu0 0.0
    %832 = vmatpush2.xpose.msra.mxu0 0.0
    %833 = vmatprep.subr.mxu0 0.0
    %834 = vmatpush2.xpose.msra.mxu0 0.0
    %835 = vmatprep.subr.mxu0 0.0
    %836 = vmatpush2.xpose.msra.mxu0 0.0
    %837 = vmatprep.subr.mxu0 0.0
    %838 = vmatpush2.xpose.msra.mxu0 0.0
    %839 = vmatprep.subr.mxu0 0.0
    %840 = vmatpush2.xpose.msra.mxu0 0.0
    %841 = vmatprep.subr.mxu0 0.0
    %842 = vmatpush2.xpose.msra.mxu0 0.0
    %843 = vmatprep.subr.mxu0 0.0
    %844 = vmatpush2.xpose.msra.mxu0 0.0
    %845 = vmatprep.subr.mxu0 0.0
    %846 = vmatpush2.xpose.msra.mxu0 0.0
    %847 = vmatprep.subr.mxu0 0.0
    %848 = vmatpush2.xpose.msra.mxu0 0.0
    %849 = vmatprep.subr.mxu0 0.0
    %850 = vmatpush2.xpose.msra.mxu0 0.0
    %851 = vmatprep.subr.mxu0 0.0
    %852 = vmatpush2.xpose.msra.mxu0 0.0
    %853 = vmatprep.subr.mxu0 0.0
    %854 = vmatpush2.xpose.msra.mxu0 0.0
    %855 = vmatprep.subr.mxu0 0.0
    %856 = vmatpush2.xpose.msra.mxu0 0.0
    %857 = vmatprep.subr.mxu0 0.0
    %858 = vmatpush2.xpose.msra.mxu0 0.0
    %859 = vmatprep.subr.mxu0 0.0
    %860 = vmatpush2.xpose.msra.mxu0 0.0
    %861 = vmatprep.mubr.f32.mxu0 0.0
    %862 = vmatmul.mubr.f32.gmra.mxu0 %v793
    %v863 = vpop.f32.mrf.mxu0
    %v864 = vadd.f32 0.0, %v863
    %v865 = vpop.f32.mrf.mxu0
    %866 = vdwg.mxu0
    %867 = vrot.lane.b32.xlu0 %v172, 104
    %v868 = vpop.permute.xlu0 %867
    %869 = vrot.lane.b32.xlu0 %v255, 104
    %v870 = vpop.permute.xlu0 %869
    %v871 = vsel %vm258, %v868, 0
    %v873 = vsel %vm258, %v870, 0
    %875 = vmatprep.subr.mxu0 0.0
    %876 = vmatpush1.xpose.msra.mxu0 0.0
    %877 = vmatprep.subr.mxu0 0.0
    %878 = vmatpush1.xpose.msra.mxu0 0.0
    %879 = vmatprep.subr.mxu0 0.0
    %880 = vmatpush1.xpose.msra.mxu0 0.0
    %881 = vmatprep.subr.mxu0 0.0
    %882 = vmatpush1.xpose.msra.mxu0 0.0
    %883 = vmatprep.subr.mxu0 0.0
    %884 = vmatpush1.xpose.msra.mxu0 0.0
    %885 = vmatprep.subr.mxu0 0.0
    %886 = vmatpush1.xpose.msra.mxu0 0.0
    %887 = vmatprep.subr.mxu0 0.0
    %888 = vmatpush1.xpose.msra.mxu0 0.0
    %889 = vmatprep.subr.mxu0 0.0
    %890 = vmatpush1.xpose.msra.mxu0 0.0
    %891 = vmatprep.subr.mxu0 0.0
    %892 = vmatpush1.xpose.msra.mxu0 0.0
    %893 = vmatprep.subr.mxu0 0.0
    %894 = vmatpush1.xpose.msra.mxu0 0.0
    %895 = vmatprep.subr.mxu0 0.0
    %896 = vmatpush1.xpose.msra.mxu0 0.0
    %897 = vmatprep.subr.mxu0 0.0
    %898 = vmatpush1.xpose.msra.mxu0 0.0
    %899 = vmatprep.subr.mxu0 0.0
    %900 = vmatpush1.xpose.msra.mxu0 0.0
    %901 = vmatprep.subr.mxu0 0.0
    %902 = vmatpush1.xpose.msra.mxu0 0.0
    %903 = vmatprep.subr.mxu0 0.0
    %904 = vmatpush1.xpose.msra.mxu0 0.0
    %905 = vmatprep.subr.mxu0 0.0
    %906 = vmatpush1.xpose.msra.mxu0 %v873
    %907 = vmatprep.subr.mxu0 0.0
    %908 = vmatpush2.xpose.msra.mxu0 0.0
    %909 = vmatprep.subr.mxu0 0.0
    %910 = vmatpush2.xpose.msra.mxu0 0.0
    %911 = vmatprep.subr.mxu0 0.0
    %912 = vmatpush2.xpose.msra.mxu0 0.0
    %913 = vmatprep.subr.mxu0 0.0
    %914 = vmatpush2.xpose.msra.mxu0 0.0
    %915 = vmatprep.subr.mxu0 0.0
    %916 = vmatpush2.xpose.msra.mxu0 0.0
    %917 = vmatprep.subr.mxu0 0.0
    %918 = vmatpush2.xpose.msra.mxu0 0.0
    %919 = vmatprep.subr.mxu0 0.0
    %920 = vmatpush2.xpose.msra.mxu0 0.0
    %921 = vmatprep.subr.mxu0 0.0
    %922 = vmatpush2.xpose.msra.mxu0 0.0
    %923 = vmatprep.subr.mxu0 0.0
    %924 = vmatpush2.xpose.msra.mxu0 0.0
    %925 = vmatprep.subr.mxu0 0.0
    %926 = vmatpush2.xpose.msra.mxu0 0.0
    %927 = vmatprep.subr.mxu0 0.0
    %928 = vmatpush2.xpose.msra.mxu0 0.0
    %929 = vmatprep.subr.mxu0 0.0
    %930 = vmatpush2.xpose.msra.mxu0 0.0
    %931 = vmatprep.subr.mxu0 0.0
    %932 = vmatpush2.xpose.msra.mxu0 0.0
    %933 = vmatprep.subr.mxu0 0.0
    %934 = vmatpush2.xpose.msra.mxu0 0.0
    %935 = vmatprep.subr.mxu0 0.0
    %936 = vmatpush2.xpose.msra.mxu0 0.0
    %937 = vmatprep.subr.mxu0 0.0
    %938 = vmatpush2.xpose.msra.mxu0 0.0
    %939 = vmatprep.mubr.f32.mxu0 0.0
    %940 = vmatmul.mubr.f32.gmra.mxu0 %v871
    %v941 = vpop.f32.mrf.mxu0
    %v942 = vadd.f32 0.0, %v941
    %v943 = vpop.f32.mrf.mxu0
    %944 = vdwg.mxu0
    %v945 = vsel %vm258, %v864, -inf
    %946 = vmax.xlane.f32.xlu0 %v945
    %v947 = vpop.xlane.xlu0 %946
    %v948 = vsel %vm258, %v942, -inf
    %949 = vmax.xlane.f32.xlu0 %v948
    %v950 = vpop.xlane.xlu0 %949
    %v951 = vsub.f32 %v864, %v947
    %v952 = vsub.f32 %v942, %v950
    %v953 = vmul.f32 %v951, 1.442695
    %v954 = vpow.pop %v953
    %v955 = vmul.f32 %v952, 1.442695
    %v956 = vpow.pop %v955
    %v957 = vsel %vm258, %v954, 0.0
    %958 = vadd.xlane.f32.xlu0 %v957
    %v959 = vpop.xlane.xlu0 %958
    %v960 = vsel %vm258, %v956, 0.0
    %961 = vadd.xlane.f32.xlu0 %v960
    %v962 = vpop.xlane.xlu0 %961
    %v963 = vrcp.pop %v959
    %v964 = vrcp.pop %v962
    %v965 = vmul.f32 %v954, %v963
    %v966 = vmul.f32 %v956, %v964
    %967 = vrot.lane.b32.xlu0 %v171, 96
    %v968 = vpop.permute.xlu0 %967
    %969 = vrot.lane.b32.xlu0 %v250, 96
    %v970 = vpop.permute.xlu0 %969
    %v971 = vsel %vm258, %v968, 0
    %v973 = vsel %vm258, %v970, 0
    %975 = vmatprep.subr.mxu0 0.0
    %976 = vmatpush1.xpose.msra.mxu0 0.0
    %977 = vmatprep.subr.mxu0 0.0
    %978 = vmatpush1.xpose.msra.mxu0 0.0
    %979 = vmatprep.subr.mxu0 0.0
    %980 = vmatpush1.xpose.msra.mxu0 0.0
    %981 = vmatprep.subr.mxu0 0.0
    %982 = vmatpush1.xpose.msra.mxu0 0.0
    %983 = vmatprep.subr.mxu0 0.0
    %984 = vmatpush1.xpose.msra.mxu0 0.0
    %985 = vmatprep.subr.mxu0 0.0
    %986 = vmatpush1.xpose.msra.mxu0 0.0
    %987 = vmatprep.subr.mxu0 0.0
    %988 = vmatpush1.xpose.msra.mxu0 0.0
    %989 = vmatprep.subr.mxu0 0.0
    %990 = vmatpush1.xpose.msra.mxu0 0.0
    %991 = vmatprep.subr.mxu0 0.0
    %992 = vmatpush1.xpose.msra.mxu0 0.0
    %993 = vmatprep.subr.mxu0 0.0
    %994 = vmatpush1.xpose.msra.mxu0 0.0
    %995 = vmatprep.subr.mxu0 0.0
    %996 = vmatpush1.xpose.msra.mxu0 0.0
    %997 = vmatprep.subr.mxu0 0.0
    %998 = vmatpush1.xpose.msra.mxu0 0.0
    %999 = vmatprep.subr.mxu0 0.0
    %1000 = vmatpush1.xpose.msra.mxu0 0.0
    %1001 = vmatprep.subr.mxu0 0.0
    %1002 = vmatpush1.xpose.msra.mxu0 0.0
    %1003 = vmatprep.subr.mxu0 0.0
    %1004 = vmatpush1.xpose.msra.mxu0 0.0
    %1005 = vmatprep.subr.mxu0 0.0
    %1006 = vmatpush1.xpose.msra.mxu0 %v973
    %1007 = vmatprep.subr.mxu0 0.0
    %1008 = vmatpush2.xpose.msra.mxu0 0.0
    %1009 = vmatprep.subr.mxu0 0.0
    %1010 = vmatpush2.xpose.msra.mxu0 0.0
    %1011 = vmatprep.subr.mxu0 0.0
    %1012 = vmatpush2.xpose.msra.mxu0 0.0
    %1013 = vmatprep.subr.mxu0 0.0
    %1014 = vmatpush2.xpose.msra.mxu0 0.0
    %1015 = vmatprep.subr.mxu0 0.0
    %1016 = vmatpush2.xpose.msra.mxu0 0.0
    %1017 = vmatprep.subr.mxu0 0.0
    %1018 = vmatpush2.xpose.msra.mxu0 0.0
    %1019 = vmatprep.subr.mxu0 0.0
    %1020 = vmatpush2.xpose.msra.mxu0 0.0
    %1021 = vmatprep.subr.mxu0 0.0
    %1022 = vmatpush2.xpose.msra.mxu0 0.0
    %1023 = vmatprep.subr.mxu0 0.0
    %1024 = vmatpush2.xpose.msra.mxu0 0.0
    %1025 = vmatprep.subr.mxu0 0.0
    %1026 = vmatpush2.xpose.msra.mxu0 0.0
    %1027 = vmatprep.subr.mxu0 0.0
    %1028 = vmatpush2.xpose.msra.mxu0 0.0
    %1029 = vmatprep.subr.mxu0 0.0
    %1030 = vmatpush2.xpose.msra.mxu0 0.0
    %1031 = vmatprep.subr.mxu0 0.0
    %1032 = vmatpush2.xpose.msra.mxu0 0.0
    %1033 = vmatprep.subr.mxu0 0.0
    %1034 = vmatpush2.xpose.msra.mxu0 0.0
    %1035 = vmatprep.subr.mxu0 0.0
    %1036 = vmatpush2.xpose.msra.mxu0 0.0
    %1037 = vmatprep.subr.mxu0 0.0
    %1038 = vmatpush2.xpose.msra.mxu0 0.0
    %1039 = vmatprep.mubr.f32.mxu0 0.0
    %1040 = vmatmul.mubr.f32.gmra.mxu0 %v971
    %v1041 = vpop.f32.mrf.mxu0
    %v1042 = vadd.f32 0.0, %v1041
    %v1043 = vpop.f32.mrf.mxu0
    %1044 = vdwg.mxu0
    %1045 = vrot.lane.b32.xlu0 %v172, 96
    %v1046 = vpop.permute.xlu0 %1045
    %1047 = vrot.lane.b32.xlu0 %v255, 96
    %v1048 = vpop.permute.xlu0 %1047
    %v1049 = vsel %vm258, %v1046, 0
    %v1051 = vsel %vm258, %v1048, 0
    %1053 = vmatprep.subr.mxu0 0.0
    %1054 = vmatpush1.xpose.msra.mxu0 0.0
    %1055 = vmatprep.subr.mxu0 0.0
    %1056 = vmatpush1.xpose.msra.mxu0 0.0
    %1057 = vmatprep.subr.mxu0 0.0
    %1058 = vmatpush1.xpose.msra.mxu0 0.0
    %1059 = vmatprep.subr.mxu0 0.0
    %1060 = vmatpush1.xpose.msra.mxu0 0.0
    %1061 = vmatprep.subr.mxu0 0.0
    %1062 = vmatpush1.xpose.msra.mxu0 0.0
    %1063 = vmatprep.subr.mxu0 0.0
    %1064 = vmatpush1.xpose.msra.mxu0 0.0
    %1065 = vmatprep.subr.mxu0 0.0
    %1066 = vmatpush1.xpose.msra.mxu0 0.0
    %1067 = vmatprep.subr.mxu0 0.0
    %1068 = vmatpush1.xpose.msra.mxu0 0.0
    %1069 = vmatprep.subr.mxu0 0.0
    %1070 = vmatpush1.xpose.msra.mxu0 0.0
    %1071 = vmatprep.subr.mxu0 0.0
    %1072 = vmatpush1.xpose.msra.mxu0 0.0
    %1073 = vmatprep.subr.mxu0 0.0
    %1074 = vmatpush1.xpose.msra.mxu0 0.0
    %1075 = vmatprep.subr.mxu0 0.0
    %1076 = vmatpush1.xpose.msra.mxu0 0.0
    %1077 = vmatprep.subr.mxu0 0.0
    %1078 = vmatpush1.xpose.msra.mxu0 0.0
    %1079 = vmatprep.subr.mxu0 0.0
    %1080 = vmatpush1.xpose.msra.mxu0 0.0
    %1081 = vmatprep.subr.mxu0 0.0
    %1082 = vmatpush1.xpose.msra.mxu0 0.0
    %1083 = vmatprep.subr.mxu0 0.0
    %1084 = vmatpush1.xpose.msra.mxu0 %v1051
    %1085 = vmatprep.subr.mxu0 0.0
    %1086 = vmatpush2.xpose.msra.mxu0 0.0
    %1087 = vmatprep.subr.mxu0 0.0
    %1088 = vmatpush2.xpose.msra.mxu0 0.0
    %1089 = vmatprep.subr.mxu0 0.0
    %1090 = vmatpush2.xpose.msra.mxu0 0.0
    %1091 = vmatprep.subr.mxu0 0.0
    %1092 = vmatpush2.xpose.msra.mxu0 0.0
    %1093 = vmatprep.subr.mxu0 0.0
    %1094 = vmatpush2.xpose.msra.mxu0 0.0
    %1095 = vmatprep.subr.mxu0 0.0
    %1096 = vmatpush2.xpose.msra.mxu0 0.0
    %1097 = vmatprep.subr.mxu0 0.0
    %1098 = vmatpush2.xpose.msra.mxu0 0.0
    %1099 = vmatprep.subr.mxu0 0.0
    %1100 = vmatpush2.xpose.msra.mxu0 0.0
    %1101 = vmatprep.subr.mxu0 0.0
    %1102 = vmatpush2.xpose.msra.mxu0 0.0
    %1103 = vmatprep.subr.mxu0 0.0
    %1104 = vmatpush2.xpose.msra.mxu0 0.0
    %1105 = vmatprep.subr.mxu0 0.0
    %1106 = vmatpush2.xpose.msra.mxu0 0.0
    %1107 = vmatprep.subr.mxu0 0.0
    %1108 = vmatpush2.xpose.msra.mxu0 0.0
    %1109 = vmatprep.subr.mxu0 0.0
    %1110 = vmatpush2.xpose.msra.mxu0 0.0
    %1111 = vmatprep.subr.mxu0 0.0
    %1112 = vmatpush2.xpose.msra.mxu0 0.0
    %1113 = vmatprep.subr.mxu0 0.0
    %1114 = vmatpush2.xpose.msra.mxu0 0.0
    %1115 = vmatprep.subr.mxu0 0.0
    %1116 = vmatpush2.xpose.msra.mxu0 0.0
    %1117 = vmatprep.mubr.f32.mxu0 0.0
    %1118 = vmatmul.mubr.f32.gmra.mxu0 %v1049
    %v1119 = vpop.f32.mrf.mxu0
    %v1120 = vadd.f32 0.0, %v1119
    %v1121 = vpop.f32.mrf.mxu0
    %1122 = vdwg.mxu0
    %v1123 = vsel %vm258, %v1042, -inf
    %1124 = vmax.xlane.f32.xlu0 %v1123
    %v1125 = vpop.xlane.xlu0 %1124
    %v1126 = vsel %vm258, %v1120, -inf
    %1127 = vmax.xlane.f32.xlu0 %v1126
    %v1128 = vpop.xlane.xlu0 %1127
    %v1129 = vsub.f32 %v1042, %v1125
    %v1130 = vsub.f32 %v1120, %v1128
    %v1131 = vmul.f32 %v1129, 1.442695
    %v1132 = vpow.pop %v1131
    %v1133 = vmul.f32 %v1130, 1.442695
    %v1134 = vpow.pop %v1133
    %v1135 = vsel %vm258, %v1132, 0.0
    %1136 = vadd.xlane.f32.xlu0 %v1135
    %v1137 = vpop.xlane.xlu0 %1136
    %v1138 = vsel %vm258, %v1134, 0.0
    %1139 = vadd.xlane.f32.xlu0 %v1138
    %v1140 = vpop.xlane.xlu0 %1139
    %v1141 = vrcp.pop %v1137
    %v1142 = vrcp.pop %v1140
    %v1143 = vmul.f32 %v1132, %v1141
    %v1144 = vmul.f32 %v1134, %v1142
    %1145 = vrot.lane.b32.xlu0 %v250, 64
    %v1146 = vpop.permute.xlu0 %1145
    %v1149 = vsel %vm258, %v1143, 0
    %1151 = vmatprep.subr.mxu0 0.0
    %1152 = vmatpush1.msra.mxu0 0.0
    %1153 = vmatprep.subr.mxu0 0.0
    %1154 = vmatpush1.msra.mxu0 0.0
    %1155 = vmatprep.subr.mxu0 0.0
    %1156 = vmatpush1.msra.mxu0 0.0
    %1157 = vmatprep.subr.mxu0 0.0
    %1158 = vmatpush1.msra.mxu0 0.0
    %1159 = vmatprep.subr.mxu0 0.0
    %1160 = vmatpush1.msra.mxu0 0.0
    %1161 = vmatprep.subr.mxu0 0.0
    %1162 = vmatpush1.msra.mxu0 0.0
    %1163 = vmatprep.subr.mxu0 0.0
    %1164 = vmatpush1.msra.mxu0 0.0
    %1165 = vmatprep.subr.mxu0 0.0
    %1166 = vmatpush1.msra.mxu0 0.0
    %1167 = vmatprep.subr.mxu0 0.0
    %1168 = vmatpush1.msra.mxu0 0.0
    %1169 = vmatprep.subr.mxu0 0.0
    %1170 = vmatpush1.msra.mxu0 0.0
    %1171 = vmatprep.subr.mxu0 0.0
    %1172 = vmatpush1.msra.mxu0 0.0
    %1173 = vmatprep.subr.mxu0 0.0
    %1174 = vmatpush1.msra.mxu0 0.0
    %1175 = vmatprep.subr.mxu0 0.0
    %1176 = vmatpush1.msra.mxu0 0.0
    %1177 = vmatprep.subr.mxu0 0.0
    %1178 = vmatpush1.msra.mxu0 0.0
    %1179 = vmatprep.subr.mxu0 0.0
    %1180 = vmatpush1.msra.mxu0 0.0
    %1181 = vmatprep.subr.mxu0 0.0
    %1182 = vmatpush1.msra.mxu0 %v1146
    %1183 = vmatprep.subr.mxu0 0.0
    %1184 = vmatpush2.msra.mxu0 0.0
    %1185 = vmatprep.subr.mxu0 0.0
    %1186 = vmatpush2.msra.mxu0 0.0
    %1187 = vmatprep.subr.mxu0 0.0
    %1188 = vmatpush2.msra.mxu0 0.0
    %1189 = vmatprep.subr.mxu0 0.0
    %1190 = vmatpush2.msra.mxu0 0.0
    %1191 = vmatprep.subr.mxu0 0.0
    %1192 = vmatpush2.msra.mxu0 0.0
    %1193 = vmatprep.subr.mxu0 0.0
    %1194 = vmatpush2.msra.mxu0 0.0
    %1195 = vmatprep.subr.mxu0 0.0
    %1196 = vmatpush2.msra.mxu0 0.0
    %1197 = vmatprep.subr.mxu0 0.0
    %1198 = vmatpush2.msra.mxu0 0.0
    %1199 = vmatprep.subr.mxu0 0.0
    %1200 = vmatpush2.msra.mxu0 0.0
    %1201 = vmatprep.subr.mxu0 0.0
    %1202 = vmatpush2.msra.mxu0 0.0
    %1203 = vmatprep.subr.mxu0 0.0
    %1204 = vmatpush2.msra.mxu0 0.0
    %1205 = vmatprep.subr.mxu0 0.0
    %1206 = vmatpush2.msra.mxu0 0.0
    %1207 = vmatprep.subr.mxu0 0.0
    %1208 = vmatpush2.msra.mxu0 0.0
    %1209 = vmatprep.subr.mxu0 0.0
    %1210 = vmatpush2.msra.mxu0 0.0
    %1211 = vmatprep.subr.mxu0 0.0
    %1212 = vmatpush2.msra.mxu0 0.0
    %1213 = vmatprep.subr.mxu0 0.0
    %1214 = vmatpush2.msra.mxu0 0.0
    %1215 = vmatprep.mubr.f32.mxu0 0.0
    %1216 = vmatmul.mubr.f32.gmra.mxu0 %v1149
    %v1217 = vpop.f32.mrf.mxu0
    %v1218 = vadd.f32 0.0, %v1217
    %v1219 = vpop.f32.mrf.mxu0
    %1220 = vdwg.mxu0
    %1221 = vrot.lane.b32.xlu0 %v255, 64
    %v1222 = vpop.permute.xlu0 %1221
    %v1225 = vsel %vm258, %v1144, 0
    %1227 = vmatprep.subr.mxu0 0.0
    %1228 = vmatpush1.msra.mxu0 0.0
    %1229 = vmatprep.subr.mxu0 0.0
    %1230 = vmatpush1.msra.mxu0 0.0
    %1231 = vmatprep.subr.mxu0 0.0
    %1232 = vmatpush1.msra.mxu0 0.0
    %1233 = vmatprep.subr.mxu0 0.0
    %1234 = vmatpush1.msra.mxu0 0.0
    %1235 = vmatprep.subr.mxu0 0.0
    %1236 = vmatpush1.msra.mxu0 0.0
    %1237 = vmatprep.subr.mxu0 0.0
    %1238 = vmatpush1.msra.mxu0 0.0
    %1239 = vmatprep.subr.mxu0 0.0
    %1240 = vmatpush1.msra.mxu0 0.0
    %1241 = vmatprep.subr.mxu0 0.0
    %1242 = vmatpush1.msra.mxu0 0.0
    %1243 = vmatprep.subr.mxu0 0.0
    %1244 = vmatpush1.msra.mxu0 0.0
    %1245 = vmatprep.subr.mxu0 0.0
    %1246 = vmatpush1.msra.mxu0 0.0
    %1247 = vmatprep.subr.mxu0 0.0
    %1248 = vmatpush1.msra.mxu0 0.0
    %1249 = vmatprep.subr.mxu0 0.0
    %1250 = vmatpush1.msra.mxu0 0.0
    %1251 = vmatprep.subr.mxu0 0.0
    %1252 = vmatpush1.msra.mxu0 0.0
    %1253 = vmatprep.subr.mxu0 0.0
    %1254 = vmatpush1.msra.mxu0 0.0
    %1255 = vmatprep.subr.mxu0 0.0
    %1256 = vmatpush1.msra.mxu0 0.0
    %1257 = vmatprep.subr.mxu0 0.0
    %1258 = vmatpush1.msra.mxu0 %v1222
    %1259 = vmatprep.subr.mxu0 0.0
    %1260 = vmatpush2.msra.mxu0 0.0
    %1261 = vmatprep.subr.mxu0 0.0
    %1262 = vmatpush2.msra.mxu0 0.0
    %1263 = vmatprep.subr.mxu0 0.0
    %1264 = vmatpush2.msra.mxu0 0.0
    %1265 = vmatprep.subr.mxu0 0.0
    %1266 = vmatpush2.msra.mxu0 0.0
    %1267 = vmatprep.subr.mxu0 0.0
    %1268 = vmatpush2.msra.mxu0 0.0
    %1269 = vmatprep.subr.mxu0 0.0
    %1270 = vmatpush2.msra.mxu0 0.0
    %1271 = vmatprep.subr.mxu0 0.0
    %1272 = vmatpush2.msra.mxu0 0.0
    %1273 = vmatprep.subr.mxu0 0.0
    %1274 = vmatpush2.msra.mxu0 0.0
    %1275 = vmatprep.subr.mxu0 0.0
    %1276 = vmatpush2.msra.mxu0 0.0
    %1277 = vmatprep.subr.mxu0 0.0
    %1278 = vmatpush2.msra.mxu0 0.0
    %1279 = vmatprep.subr.mxu0 0.0
    %1280 = vmatpush2.msra.mxu0 0.0
    %1281 = vmatprep.subr.mxu0 0.0
    %1282 = vmatpush2.msra.mxu0 0.0
    %1283 = vmatprep.subr.mxu0 0.0
    %1284 = vmatpush2.msra.mxu0 0.0
    %1285 = vmatprep.subr.mxu0 0.0
    %1286 = vmatpush2.msra.mxu0 0.0
    %1287 = vmatprep.subr.mxu0 0.0
    %1288 = vmatpush2.msra.mxu0 0.0
    %1289 = vmatprep.subr.mxu0 0.0
    %1290 = vmatpush2.msra.mxu0 0.0
    %1291 = vmatprep.mubr.f32.mxu0 0.0
    %1292 = vmatmul.mubr.f32.gmra.mxu0 %v1225
    %v1293 = vpop.f32.mrf.mxu0
    %v1294 = vadd.f32 0.0, %v1293
    %v1295 = vpop.f32.mrf.mxu0
    %1296 = vdwg.mxu0
    %1297 = vrot.lane.b32.xlu0 %v171, 88
    %v1298 = vpop.permute.xlu0 %1297
    %1299 = vrot.lane.b32.xlu0 %v250, 88
    %v1300 = vpop.permute.xlu0 %1299
    %v1301 = vsel %vm258, %v1298, 0
    %v1303 = vsel %vm258, %v1300, 0
    %1305 = vmatprep.subr.mxu0 0.0
    %1306 = vmatpush1.xpose.msra.mxu0 0.0
    %1307 = vmatprep.subr.mxu0 0.0
    %1308 = vmatpush1.xpose.msra.mxu0 0.0
    %1309 = vmatprep.subr.mxu0 0.0
    %1310 = vmatpush1.xpose.msra.mxu0 0.0
    %1311 = vmatprep.subr.mxu0 0.0
    %1312 = vmatpush1.xpose.msra.mxu0 0.0
    %1313 = vmatprep.subr.mxu0 0.0
    %1314 = vmatpush1.xpose.msra.mxu0 0.0
    %1315 = vmatprep.subr.mxu0 0.0
    %1316 = vmatpush1.xpose.msra.mxu0 0.0
    %1317 = vmatprep.subr.mxu0 0.0
    %1318 = vmatpush1.xpose.msra.mxu0 0.0
    %1319 = vmatprep.subr.mxu0 0.0
    %1320 = vmatpush1.xpose.msra.mxu0 0.0
    %1321 = vmatprep.subr.mxu0 0.0
    %1322 = vmatpush1.xpose.msra.mxu0 0.0
    %1323 = vmatprep.subr.mxu0 0.0
    %1324 = vmatpush1.xpose.msra.mxu0 0.0
    %1325 = vmatprep.subr.mxu0 0.0
    %1326 = vmatpush1.xpose.msra.mxu0 0.0
    %1327 = vmatprep.subr.mxu0 0.0
    %1328 = vmatpush1.xpose.msra.mxu0 0.0
    %1329 = vmatprep.subr.mxu0 0.0
    %1330 = vmatpush1.xpose.msra.mxu0 0.0
    %1331 = vmatprep.subr.mxu0 0.0
    %1332 = vmatpush1.xpose.msra.mxu0 0.0
    %1333 = vmatprep.subr.mxu0 0.0
    %1334 = vmatpush1.xpose.msra.mxu0 0.0
    %1335 = vmatprep.subr.mxu0 0.0
    %1336 = vmatpush1.xpose.msra.mxu0 %v1303
    %1337 = vmatprep.subr.mxu0 0.0
    %1338 = vmatpush2.xpose.msra.mxu0 0.0
    %1339 = vmatprep.subr.mxu0 0.0
    %1340 = vmatpush2.xpose.msra.mxu0 0.0
    %1341 = vmatprep.subr.mxu0 0.0
    %1342 = vmatpush2.xpose.msra.mxu0 0.0
    %1343 = vmatprep.subr.mxu0 0.0
    %1344 = vmatpush2.xpose.msra.mxu0 0.0
    %1345 = vmatprep.subr.mxu0 0.0
    %1346 = vmatpush2.xpose.msra.mxu0 0.0
    %1347 = vmatprep.subr.mxu0 0.0
    %1348 = vmatpush2.xpose.msra.mxu0 0.0
    %1349 = vmatprep.subr.mxu0 0.0
    %1350 = vmatpush2.xpose.msra.mxu0 0.0
    %1351 = vmatprep.subr.mxu0 0.0
    %1352 = vmatpush2.xpose.msra.mxu0 0.0
    %1353 = vmatprep.subr.mxu0 0.0
    %1354 = vmatpush2.xpose.msra.mxu0 0.0
    %1355 = vmatprep.subr.mxu0 0.0
    %1356 = vmatpush2.xpose.msra.mxu0 0.0
    %1357 = vmatprep.subr.mxu0 0.0
    %1358 = vmatpush2.xpose.msra.mxu0 0.0
    %1359 = vmatprep.subr.mxu0 0.0
    %1360 = vmatpush2.xpose.msra.mxu0 0.0
    %1361 = vmatprep.subr.mxu0 0.0
    %1362 = vmatpush2.xpose.msra.mxu0 0.0
    %1363 = vmatprep.subr.mxu0 0.0
    %1364 = vmatpush2.xpose.msra.mxu0 0.0
    %1365 = vmatprep.subr.mxu0 0.0
    %1366 = vmatpush2.xpose.msra.mxu0 0.0
    %1367 = vmatprep.subr.mxu0 0.0
    %1368 = vmatpush2.xpose.msra.mxu0 0.0
    %1369 = vmatprep.mubr.f32.mxu0 0.0
    %1370 = vmatmul.mubr.f32.gmra.mxu0 %v1301
    %v1371 = vpop.f32.mrf.mxu0
    %v1372 = vadd.f32 0.0, %v1371
    %v1373 = vpop.f32.mrf.mxu0
    %1374 = vdwg.mxu0
    %1375 = vrot.lane.b32.xlu0 %v172, 88
    %v1376 = vpop.permute.xlu0 %1375
    %1377 = vrot.lane.b32.xlu0 %v255, 88
    %v1378 = vpop.permute.xlu0 %1377
    %v1379 = vsel %vm258, %v1376, 0
    %v1381 = vsel %vm258, %v1378, 0
    %1383 = vmatprep.subr.mxu0 0.0
    %1384 = vmatpush1.xpose.msra.mxu0 0.0
    %1385 = vmatprep.subr.mxu0 0.0
    %1386 = vmatpush1.xpose.msra.mxu0 0.0
    %1387 = vmatprep.subr.mxu0 0.0
    %1388 = vmatpush1.xpose.msra.mxu0 0.0
    %1389 = vmatprep.subr.mxu0 0.0
    %1390 = vmatpush1.xpose.msra.mxu0 0.0
    %1391 = vmatprep.subr.mxu0 0.0
    %1392 = vmatpush1.xpose.msra.mxu0 0.0
    %1393 = vmatprep.subr.mxu0 0.0
    %1394 = vmatpush1.xpose.msra.mxu0 0.0
    %1395 = vmatprep.subr.mxu0 0.0
    %1396 = vmatpush1.xpose.msra.mxu0 0.0
    %1397 = vmatprep.subr.mxu0 0.0
    %1398 = vmatpush1.xpose.msra.mxu0 0.0
    %1399 = vmatprep.subr.mxu0 0.0
    %1400 = vmatpush1.xpose.msra.mxu0 0.0
    %1401 = vmatprep.subr.mxu0 0.0
    %1402 = vmatpush1.xpose.msra.mxu0 0.0
    %1403 = vmatprep.subr.mxu0 0.0
    %1404 = vmatpush1.xpose.msra.mxu0 0.0
    %1405 = vmatprep.subr.mxu0 0.0
    %1406 = vmatpush1.xpose.msra.mxu0 0.0
    %1407 = vmatprep.subr.mxu0 0.0
    %1408 = vmatpush1.xpose.msra.mxu0 0.0
    %1409 = vmatprep.subr.mxu0 0.0
    %1410 = vmatpush1.xpose.msra.mxu0 0.0
    %1411 = vmatprep.subr.mxu0 0.0
    %1412 = vmatpush1.xpose.msra.mxu0 0.0
    %1413 = vmatprep.subr.mxu0 0.0
    %1414 = vmatpush1.xpose.msra.mxu0 %v1381
    %1415 = vmatprep.subr.mxu0 0.0
    %1416 = vmatpush2.xpose.msra.mxu0 0.0
    %1417 = vmatprep.subr.mxu0 0.0
    %1418 = vmatpush2.xpose.msra.mxu0 0.0
    %1419 = vmatprep.subr.mxu0 0.0
    %1420 = vmatpush2.xpose.msra.mxu0 0.0
    %1421 = vmatprep.subr.mxu0 0.0
    %1422 = vmatpush2.xpose.msra.mxu0 0.0
    %1423 = vmatprep.subr.mxu0 0.0
    %1424 = vmatpush2.xpose.msra.mxu0 0.0
    %1425 = vmatprep.subr.mxu0 0.0
    %1426 = vmatpush2.xpose.msra.mxu0 0.0
    %1427 = vmatprep.subr.mxu0 0.0
    %1428 = vmatpush2.xpose.msra.mxu0 0.0
    %1429 = vmatprep.subr.mxu0 0.0
    %1430 = vmatpush2.xpose.msra.mxu0 0.0
    %1431 = vmatprep.subr.mxu0 0.0
    %1432 = vmatpush2.xpose.msra.mxu0 0.0
    %1433 = vmatprep.subr.mxu0 0.0
    %1434 = vmatpush2.xpose.msra.mxu0 0.0
    %1435 = vmatprep.subr.mxu0 0.0
    %1436 = vmatpush2.xpose.msra.mxu0 0.0
    %1437 = vmatprep.subr.mxu0 0.0
    %1438 = vmatpush2.xpose.msra.mxu0 0.0
    %1439 = vmatprep.subr.mxu0 0.0
    %1440 = vmatpush2.xpose.msra.mxu0 0.0
    %1441 = vmatprep.subr.mxu0 0.0
    %1442 = vmatpush2.xpose.msra.mxu0 0.0
    %1443 = vmatprep.subr.mxu0 0.0
    %1444 = vmatpush2.xpose.msra.mxu0 0.0
    %1445 = vmatprep.subr.mxu0 0.0
    %1446 = vmatpush2.xpose.msra.mxu0 0.0
    %1447 = vmatprep.mubr.f32.mxu0 0.0
    %1448 = vmatmul.mubr.f32.gmra.mxu0 %v1379
    %v1449 = vpop.f32.mrf.mxu0
    %v1450 = vadd.f32 0.0, %v1449
    %v1451 = vpop.f32.mrf.mxu0
    %1452 = vdwg.mxu0
    %v1453 = vsel %vm258, %v1372, -inf
    %1454 = vmax.xlane.f32.xlu0 %v1453
    %v1455 = vpop.xlane.xlu0 %1454
    %v1456 = vsel %vm258, %v1450, -inf
    %1457 = vmax.xlane.f32.xlu0 %v1456
    %v1458 = vpop.xlane.xlu0 %1457
    %v1459 = vsub.f32 %v1372, %v1455
    %v1460 = vsub.f32 %v1450, %v1458
    %v1461 = vmul.f32 %v1459, 1.442695
    %v1462 = vpow.pop %v1461
    %v1463 = vmul.f32 %v1460, 1.442695
    %v1464 = vpow.pop %v1463
    %v1465 = vsel %vm258, %v1462, 0.0
    %1466 = vadd.xlane.f32.xlu0 %v1465
    %v1467 = vpop.xlane.xlu0 %1466
    %v1468 = vsel %vm258, %v1464, 0.0
    %1469 = vadd.xlane.f32.xlu0 %v1468
    %v1470 = vpop.xlane.xlu0 %1469
    %v1471 = vrcp.pop %v1467
    %v1472 = vrcp.pop %v1470
    %v1473 = vmul.f32 %v1462, %v1471
    %v1474 = vmul.f32 %v1464, %v1472
    %1475 = vrot.lane.b32.xlu0 %v250, 56
    %v1476 = vpop.permute.xlu0 %1475
    %v1479 = vsel %vm258, %v1473, 0
    %1481 = vmatprep.subr.mxu0 0.0
    %1482 = vmatpush1.msra.mxu0 0.0
    %1483 = vmatprep.subr.mxu0 0.0
    %1484 = vmatpush1.msra.mxu0 0.0
    %1485 = vmatprep.subr.mxu0 0.0
    %1486 = vmatpush1.msra.mxu0 0.0
    %1487 = vmatprep.subr.mxu0 0.0
    %1488 = vmatpush1.msra.mxu0 0.0
    %1489 = vmatprep.subr.mxu0 0.0
    %1490 = vmatpush1.msra.mxu0 0.0
    %1491 = vmatprep.subr.mxu0 0.0
    %1492 = vmatpush1.msra.mxu0 0.0
    %1493 = vmatprep.subr.mxu0 0.0
    %1494 = vmatpush1.msra.mxu0 0.0
    %1495 = vmatprep.subr.mxu0 0.0
    %1496 = vmatpush1.msra.mxu0 0.0
    %1497 = vmatprep.subr.mxu0 0.0
    %1498 = vmatpush1.msra.mxu0 0.0
    %1499 = vmatprep.subr.mxu0 0.0
    %1500 = vmatpush1.msra.mxu0 0.0
    %1501 = vmatprep.subr.mxu0 0.0
    %1502 = vmatpush1.msra.mxu0 0.0
    %1503 = vmatprep.subr.mxu0 0.0
    %1504 = vmatpush1.msra.mxu0 0.0
    %1505 = vmatprep.subr.mxu0 0.0
    %1506 = vmatpush1.msra.mxu0 0.0
    %1507 = vmatprep.subr.mxu0 0.0
    %1508 = vmatpush1.msra.mxu0 0.0
    %1509 = vmatprep.subr.mxu0 0.0
    %1510 = vmatpush1.msra.mxu0 0.0
    %1511 = vmatprep.subr.mxu0 0.0
    %1512 = vmatpush1.msra.mxu0 %v1476
    %1513 = vmatprep.subr.mxu0 0.0
    %1514 = vmatpush2.msra.mxu0 0.0
    %1515 = vmatprep.subr.mxu0 0.0
    %1516 = vmatpush2.msra.mxu0 0.0
    %1517 = vmatprep.subr.mxu0 0.0
    %1518 = vmatpush2.msra.mxu0 0.0
    %1519 = vmatprep.subr.mxu0 0.0
    %1520 = vmatpush2.msra.mxu0 0.0
    %1521 = vmatprep.subr.mxu0 0.0
    %1522 = vmatpush2.msra.mxu0 0.0
    %1523 = vmatprep.subr.mxu0 0.0
    %1524 = vmatpush2.msra.mxu0 0.0
    %1525 = vmatprep.subr.mxu0 0.0
    %1526 = vmatpush2.msra.mxu0 0.0
    %1527 = vmatprep.subr.mxu0 0.0
    %1528 = vmatpush2.msra.mxu0 0.0
    %1529 = vmatprep.subr.mxu0 0.0
    %1530 = vmatpush2.msra.mxu0 0.0
    %1531 = vmatprep.subr.mxu0 0.0
    %1532 = vmatpush2.msra.mxu0 0.0
    %1533 = vmatprep.subr.mxu0 0.0
    %1534 = vmatpush2.msra.mxu0 0.0
    %1535 = vmatprep.subr.mxu0 0.0
    %1536 = vmatpush2.msra.mxu0 0.0
    %1537 = vmatprep.subr.mxu0 0.0
    %1538 = vmatpush2.msra.mxu0 0.0
    %1539 = vmatprep.subr.mxu0 0.0
    %1540 = vmatpush2.msra.mxu0 0.0
    %1541 = vmatprep.subr.mxu0 0.0
    %1542 = vmatpush2.msra.mxu0 0.0
    %1543 = vmatprep.subr.mxu0 0.0
    %1544 = vmatpush2.msra.mxu0 0.0
    %1545 = vmatprep.mubr.f32.mxu0 0.0
    %1546 = vmatmul.mubr.f32.gmra.mxu0 %v1479
    %v1547 = vpop.f32.mrf.mxu0
    %v1548 = vadd.f32 0.0, %v1547
    %v1549 = vpop.f32.mrf.mxu0
    %1550 = vdwg.mxu0
    %1551 = vrot.lane.b32.xlu0 %v255, 56
    %v1552 = vpop.permute.xlu0 %1551
    %v1555 = vsel %vm258, %v1474, 0
    %1557 = vmatprep.subr.mxu0 0.0
    %1558 = vmatpush1.msra.mxu0 0.0
    %1559 = vmatprep.subr.mxu0 0.0
    %1560 = vmatpush1.msra.mxu0 0.0
    %1561 = vmatprep.subr.mxu0 0.0
    %1562 = vmatpush1.msra.mxu0 0.0
    %1563 = vmatprep.subr.mxu0 0.0
    %1564 = vmatpush1.msra.mxu0 0.0
    %1565 = vmatprep.subr.mxu0 0.0
    %1566 = vmatpush1.msra.mxu0 0.0
    %1567 = vmatprep.subr.mxu0 0.0
    %1568 = vmatpush1.msra.mxu0 0.0
    %1569 = vmatprep.subr.mxu0 0.0
    %1570 = vmatpush1.msra.mxu0 0.0
    %1571 = vmatprep.subr.mxu0 0.0
    %1572 = vmatpush1.msra.mxu0 0.0
    %1573 = vmatprep.subr.mxu0 0.0
    %1574 = vmatpush1.msra.mxu0 0.0
    %1575 = vmatprep.subr.mxu0 0.0
    %1576 = vmatpush1.msra.mxu0 0.0
    %1577 = vmatprep.subr.mxu0 0.0
    %1578 = vmatpush1.msra.mxu0 0.0
    %1579 = vmatprep.subr.mxu0 0.0
    %1580 = vmatpush1.msra.mxu0 0.0
    %1581 = vmatprep.subr.mxu0 0.0
    %1582 = vmatpush1.msra.mxu0 0.0
    %1583 = vmatprep.subr.mxu0 0.0
    %1584 = vmatpush1.msra.mxu0 0.0
    %1585 = vmatprep.subr.mxu0 0.0
    %1586 = vmatpush1.msra.mxu0 0.0
    %1587 = vmatprep.subr.mxu0 0.0
    %1588 = vmatpush1.msra.mxu0 %v1552
    %1589 = vmatprep.subr.mxu0 0.0
    %1590 = vmatpush2.msra.mxu0 0.0
    %1591 = vmatprep.subr.mxu0 0.0
    %1592 = vmatpush2.msra.mxu0 0.0
    %1593 = vmatprep.subr.mxu0 0.0
    %1594 = vmatpush2.msra.mxu0 0.0
    %1595 = vmatprep.subr.mxu0 0.0
    %1596 = vmatpush2.msra.mxu0 0.0
    %1597 = vmatprep.subr.mxu0 0.0
    %1598 = vmatpush2.msra.mxu0 0.0
    %1599 = vmatprep.subr.mxu0 0.0
    %1600 = vmatpush2.msra.mxu0 0.0
    %1601 = vmatprep.subr.mxu0 0.0
    %1602 = vmatpush2.msra.mxu0 0.0
    %1603 = vmatprep.subr.mxu0 0.0
    %1604 = vmatpush2.msra.mxu0 0.0
    %1605 = vmatprep.subr.mxu0 0.0
    %1606 = vmatpush2.msra.mxu0 0.0
    %1607 = vmatprep.subr.mxu0 0.0
    %1608 = vmatpush2.msra.mxu0 0.0
    %1609 = vmatprep.subr.mxu0 0.0
    %1610 = vmatpush2.msra.mxu0 0.0
    %1611 = vmatprep.subr.mxu0 0.0
    %1612 = vmatpush2.msra.mxu0 0.0
    %1613 = vmatprep.subr.mxu0 0.0
    %1614 = vmatpush2.msra.mxu0 0.0
    %1615 = vmatprep.subr.mxu0 0.0
    %1616 = vmatpush2.msra.mxu0 0.0
    %1617 = vmatprep.subr.mxu0 0.0
    %1618 = vmatpush2.msra.mxu0 0.0
    %1619 = vmatprep.subr.mxu0 0.0
    %1620 = vmatpush2.msra.mxu0 0.0
    %1621 = vmatprep.mubr.f32.mxu0 0.0
    %1622 = vmatmul.mubr.f32.gmra.mxu0 %v1555
    %v1623 = vpop.f32.mrf.mxu0
    %v1624 = vadd.f32 0.0, %v1623
    %v1625 = vpop.f32.mrf.mxu0
    %1626 = vdwg.mxu0
    %1627 = vrot.lane.b32.xlu0 %v171, 80
    %v1628 = vpop.permute.xlu0 %1627
    %1629 = vrot.lane.b32.xlu0 %v250, 80
    %v1630 = vpop.permute.xlu0 %1629
    %v1631 = vsel %vm258, %v1628, 0
    %v1633 = vsel %vm258, %v1630, 0
    %1635 = vmatprep.subr.mxu0 0.0
    %1636 = vmatpush1.xpose.msra.mxu0 0.0
    %1637 = vmatprep.subr.mxu0 0.0
    %1638 = vmatpush1.xpose.msra.mxu0 0.0
    %1639 = vmatprep.subr.mxu0 0.0
    %1640 = vmatpush1.xpose.msra.mxu0 0.0
    %1641 = vmatprep.subr.mxu0 0.0
    %1642 = vmatpush1.xpose.msra.mxu0 0.0
    %1643 = vmatprep.subr.mxu0 0.0
    %1644 = vmatpush1.xpose.msra.mxu0 0.0
    %1645 = vmatprep.subr.mxu0 0.0
    %1646 = vmatpush1.xpose.msra.mxu0 0.0
    %1647 = vmatprep.subr.mxu0 0.0
    %1648 = vmatpush1.xpose.msra.mxu0 0.0
    %1649 = vmatprep.subr.mxu0 0.0
    %1650 = vmatpush1.xpose.msra.mxu0 0.0
    %1651 = vmatprep.subr.mxu0 0.0
    %1652 = vmatpush1.xpose.msra.mxu0 0.0
    %1653 = vmatprep.subr.mxu0 0.0
    %1654 = vmatpush1.xpose.msra.mxu0 0.0
    %1655 = vmatprep.subr.mxu0 0.0
    %1656 = vmatpush1.xpose.msra.mxu0 0.0
    %1657 = vmatprep.subr.mxu0 0.0
    %1658 = vmatpush1.xpose.msra.mxu0 0.0
    %1659 = vmatprep.subr.mxu0 0.0
    %1660 = vmatpush1.xpose.msra.mxu0 0.0
    %1661 = vmatprep.subr.mxu0 0.0
    %1662 = vmatpush1.xpose.msra.mxu0 0.0
    %1663 = vmatprep.subr.mxu0 0.0
    %1664 = vmatpush1.xpose.msra.mxu0 0.0
    %1665 = vmatprep.subr.mxu0 0.0
    %1666 = vmatpush1.xpose.msra.mxu0 %v1633
    %1667 = vmatprep.subr.mxu0 0.0
    %1668 = vmatpush2.xpose.msra.mxu0 0.0
    %1669 = vmatprep.subr.mxu0 0.0
    %1670 = vmatpush2.xpose.msra.mxu0 0.0
    %1671 = vmatprep.subr.mxu0 0.0
    %1672 = vmatpush2.xpose.msra.mxu0 0.0
    %1673 = vmatprep.subr.mxu0 0.0
    %1674 = vmatpush2.xpose.msra.mxu0 0.0
    %1675 = vmatprep.subr.mxu0 0.0
    %1676 = vmatpush2.xpose.msra.mxu0 0.0
    %1677 = vmatprep.subr.mxu0 0.0
    %1678 = vmatpush2.xpose.msra.mxu0 0.0
    %1679 = vmatprep.subr.mxu0 0.0
    %1680 = vmatpush2.xpose.msra.mxu0 0.0
    %1681 = vmatprep.subr.mxu0 0.0
    %1682 = vmatpush2.xpose.msra.mxu0 0.0
    %1683 = vmatprep.subr.mxu0 0.0
    %1684 = vmatpush2.xpose.msra.mxu0 0.0
    %1685 = vmatprep.subr.mxu0 0.0
    %1686 = vmatpush2.xpose.msra.mxu0 0.0
    %1687 = vmatprep.subr.mxu0 0.0
    %1688 = vmatpush2.xpose.msra.mxu0 0.0
    %1689 = vmatprep.subr.mxu0 0.0
    %1690 = vmatpush2.xpose.msra.mxu0 0.0
    %1691 = vmatprep.subr.mxu0 0.0
    %1692 = vmatpush2.xpose.msra.mxu0 0.0
    %1693 = vmatprep.subr.mxu0 0.0
    %1694 = vmatpush2.xpose.msra.mxu0 0.0
    %1695 = vmatprep.subr.mxu0 0.0
    %1696 = vmatpush2.xpose.msra.mxu0 0.0
    %1697 = vmatprep.subr.mxu0 0.0
    %1698 = vmatpush2.xpose.msra.mxu0 0.0
    %1699 = vmatprep.mubr.f32.mxu0 0.0
    %1700 = vmatmul.mubr.f32.gmra.mxu0 %v1631
    %v1701 = vpop.f32.mrf.mxu0
    %v1702 = vadd.f32 0.0, %v1701
    %v1703 = vpop.f32.mrf.mxu0
    %1704 = vdwg.mxu0
    %1705 = vrot.lane.b32.xlu0 %v172, 80
    %v1706 = vpop.permute.xlu0 %1705
    %1707 = vrot.lane.b32.xlu0 %v255, 80
    %v1708 = vpop.permute.xlu0 %1707
    %v1709 = vsel %vm258, %v1706, 0
    %v1711 = vsel %vm258, %v1708, 0
    %1713 = vmatprep.subr.mxu0 0.0
    %1714 = vmatpush1.xpose.msra.mxu0 0.0
    %1715 = vmatprep.subr.mxu0 0.0
    %1716 = vmatpush1.xpose.msra.mxu0 0.0
    %1717 = vmatprep.subr.mxu0 0.0
    %1718 = vmatpush1.xpose.msra.mxu0 0.0
    %1719 = vmatprep.subr.mxu0 0.0
    %1720 = vmatpush1.xpose.msra.mxu0 0.0
    %1721 = vmatprep.subr.mxu0 0.0
    %1722 = vmatpush1.xpose.msra.mxu0 0.0
    %1723 = vmatprep.subr.mxu0 0.0
    %1724 = vmatpush1.xpose.msra.mxu0 0.0
    %1725 = vmatprep.subr.mxu0 0.0
    %1726 = vmatpush1.xpose.msra.mxu0 0.0
    %1727 = vmatprep.subr.mxu0 0.0
    %1728 = vmatpush1.xpose.msra.mxu0 0.0
    %1729 = vmatprep.subr.mxu0 0.0
    %1730 = vmatpush1.xpose.msra.mxu0 0.0
    %1731 = vmatprep.subr.mxu0 0.0
    %1732 = vmatpush1.xpose.msra.mxu0 0.0
    %1733 = vmatprep.subr.mxu0 0.0
    %1734 = vmatpush1.xpose.msra.mxu0 0.0
    %1735 = vmatprep.subr.mxu0 0.0
    %1736 = vmatpush1.xpose.msra.mxu0 0.0
    %1737 = vmatprep.subr.mxu0 0.0
    %1738 = vmatpush1.xpose.msra.mxu0 0.0
    %1739 = vmatprep.subr.mxu0 0.0
    %1740 = vmatpush1.xpose.msra.mxu0 0.0
    %1741 = vmatprep.subr.mxu0 0.0
    %1742 = vmatpush1.xpose.msra.mxu0 0.0
    %1743 = vmatprep.subr.mxu0 0.0
    %1744 = vmatpush1.xpose.msra.mxu0 %v1711
    %1745 = vmatprep.subr.mxu0 0.0
    %1746 = vmatpush2.xpose.msra.mxu0 0.0
    %1747 = vmatprep.subr.mxu0 0.0
    %1748 = vmatpush2.xpose.msra.mxu0 0.0
    %1749 = vmatprep.subr.mxu0 0.0
    %1750 = vmatpush2.xpose.msra.mxu0 0.0
    %1751 = vmatprep.subr.mxu0 0.0
    %1752 = vmatpush2.xpose.msra.mxu0 0.0
    %1753 = vmatprep.subr.mxu0 0.0
    %1754 = vmatpush2.xpose.msra.mxu0 0.0
    %1755 = vmatprep.subr.mxu0 0.0
    %1756 = vmatpush2.xpose.msra.mxu0 0.0
    %1757 = vmatprep.subr.mxu0 0.0
    %1758 = vmatpush2.xpose.msra.mxu0 0.0
    %1759 = vmatprep.subr.mxu0 0.0
    %1760 = vmatpush2.xpose.msra.mxu0 0.0
    %1761 = vmatprep.subr.mxu0 0.0
    %1762 = vmatpush2.xpose.msra.mxu0 0.0
    %1763 = vmatprep.subr.mxu0 0.0
    %1764 = vmatpush2.xpose.msra.mxu0 0.0
    %1765 = vmatprep.subr.mxu0 0.0
    %1766 = vmatpush2.xpose.msra.mxu0 0.0
    %1767 = vmatprep.subr.mxu0 0.0
    %1768 = vmatpush2.xpose.msra.mxu0 0.0
    %1769 = vmatprep.subr.mxu0 0.0
    %1770 = vmatpush2.xpose.msra.mxu0 0.0
    %1771 = vmatprep.subr.mxu0 0.0
    %1772 = vmatpush2.xpose.msra.mxu0 0.0
    %1773 = vmatprep.subr.mxu0 0.0
    %1774 = vmatpush2.xpose.msra.mxu0 0.0
    %1775 = vmatprep.subr.mxu0 0.0
    %1776 = vmatpush2.xpose.msra.mxu0 0.0
    %1777 = vmatprep.mubr.f32.mxu0 0.0
    %1778 = vmatmul.mubr.f32.gmra.mxu0 %v1709
    %v1779 = vpop.f32.mrf.mxu0
    %v1780 = vadd.f32 0.0, %v1779
    %v1781 = vpop.f32.mrf.mxu0
    %1782 = vdwg.mxu0
    %v1783 = vsel %vm258, %v1702, -inf
    %1784 = vmax.xlane.f32.xlu0 %v1783
    %v1785 = vpop.xlane.xlu0 %1784
    %v1786 = vsel %vm258, %v1780, -inf
    %1787 = vmax.xlane.f32.xlu0 %v1786
    %v1788 = vpop.xlane.xlu0 %1787
    %v1789 = vsub.f32 %v1702, %v1785
    %v1790 = vsub.f32 %v1780, %v1788
    %v1791 = vmul.f32 %v1789, 1.442695
    %v1792 = vpow.pop %v1791
    %v1793 = vmul.f32 %v1790, 1.442695
    %v1794 = vpow.pop %v1793
    %v1795 = vsel %vm258, %v1792, 0.0
    %1796 = vadd.xlane.f32.xlu0 %v1795
    %v1797 = vpop.xlane.xlu0 %1796
    %v1798 = vsel %vm258, %v1794, 0.0
    %1799 = vadd.xlane.f32.xlu0 %v1798
    %v1800 = vpop.xlane.xlu0 %1799
    %v1801 = vrcp.pop %v1797
    %v1802 = vrcp.pop %v1800
    %v1803 = vmul.f32 %v1792, %v1801
    %v1804 = vmul.f32 %v1794, %v1802
    %1805 = vrot.lane.b32.xlu0 %v250, 48
    %v1806 = vpop.permute.xlu0 %1805
    %v1809 = vsel %vm258, %v1803, 0
    %1811 = vmatprep.subr.mxu0 0.0
    %1812 = vmatpush1.msra.mxu0 0.0
    %1813 = vmatprep.subr.mxu0 0.0
    %1814 = vmatpush1.msra.mxu0 0.0
    %1815 = vmatprep.subr.mxu0 0.0
    %1816 = vmatpush1.msra.mxu0 0.0
    %1817 = vmatprep.subr.mxu0 0.0
    %1818 = vmatpush1.msra.mxu0 0.0
    %1819 = vmatprep.subr.mxu0 0.0
    %1820 = vmatpush1.msra.mxu0 0.0
    %1821 = vmatprep.subr.mxu0 0.0
    %1822 = vmatpush1.msra.mxu0 0.0
    %1823 = vmatprep.subr.mxu0 0.0
    %1824 = vmatpush1.msra.mxu0 0.0
    %1825 = vmatprep.subr.mxu0 0.0
    %1826 = vmatpush1.msra.mxu0 0.0
    %1827 = vmatprep.subr.mxu0 0.0
    %1828 = vmatpush1.msra.mxu0 0.0
    %1829 = vmatprep.subr.mxu0 0.0
    %1830 = vmatpush1.msra.mxu0 0.0
    %1831 = vmatprep.subr.mxu0 0.0
    %1832 = vmatpush1.msra.mxu0 0.0
    %1833 = vmatprep.subr.mxu0 0.0
    %1834 = vmatpush1.msra.mxu0 0.0
    %1835 = vmatprep.subr.mxu0 0.0
    %1836 = vmatpush1.msra.mxu0 0.0
    %1837 = vmatprep.subr.mxu0 0.0
    %1838 = vmatpush1.msra.mxu0 0.0
    %1839 = vmatprep.subr.mxu0 0.0
    %1840 = vmatpush1.msra.mxu0 0.0
    %1841 = vmatprep.subr.mxu0 0.0
    %1842 = vmatpush1.msra.mxu0 %v1806
    %1843 = vmatprep.subr.mxu0 0.0
    %1844 = vmatpush2.msra.mxu0 0.0
    %1845 = vmatprep.subr.mxu0 0.0
    %1846 = vmatpush2.msra.mxu0 0.0
    %1847 = vmatprep.subr.mxu0 0.0
    %1848 = vmatpush2.msra.mxu0 0.0
    %1849 = vmatprep.subr.mxu0 0.0
    %1850 = vmatpush2.msra.mxu0 0.0
    %1851 = vmatprep.subr.mxu0 0.0
    %1852 = vmatpush2.msra.mxu0 0.0
    %1853 = vmatprep.subr.mxu0 0.0
    %1854 = vmatpush2.msra.mxu0 0.0
    %1855 = vmatprep.subr.mxu0 0.0
    %1856 = vmatpush2.msra.mxu0 0.0
    %1857 = vmatprep.subr.mxu0 0.0
    %1858 = vmatpush2.msra.mxu0 0.0
    %1859 = vmatprep.subr.mxu0 0.0
    %1860 = vmatpush2.msra.mxu0 0.0
    %1861 = vmatprep.subr.mxu0 0.0
    %1862 = vmatpush2.msra.mxu0 0.0
    %1863 = vmatprep.subr.mxu0 0.0
    %1864 = vmatpush2.msra.mxu0 0.0
    %1865 = vmatprep.subr.mxu0 0.0
    %1866 = vmatpush2.msra.mxu0 0.0
    %1867 = vmatprep.subr.mxu0 0.0
    %1868 = vmatpush2.msra.mxu0 0.0
    %1869 = vmatprep.subr.mxu0 0.0
    %1870 = vmatpush2.msra.mxu0 0.0
    %1871 = vmatprep.subr.mxu0 0.0
    %1872 = vmatpush2.msra.mxu0 0.0
    %1873 = vmatprep.subr.mxu0 0.0
    %1874 = vmatpush2.msra.mxu0 0.0
    %1875 = vmatprep.mubr.f32.mxu0 0.0
    %1876 = vmatmul.mubr.f32.gmra.mxu0 %v1809
    %v1877 = vpop.f32.mrf.mxu0
    %v1878 = vadd.f32 0.0, %v1877
    %v1879 = vpop.f32.mrf.mxu0
    %1880 = vdwg.mxu0
    %1881 = vrot.lane.b32.xlu0 %v255, 48
    %v1882 = vpop.permute.xlu0 %1881
    %v1885 = vsel %vm258, %v1804, 0
    %1887 = vmatprep.subr.mxu0 0.0
    %1888 = vmatpush1.msra.mxu0 0.0
    %1889 = vmatprep.subr.mxu0 0.0
    %1890 = vmatpush1.msra.mxu0 0.0
    %1891 = vmatprep.subr.mxu0 0.0
    %1892 = vmatpush1.msra.mxu0 0.0
    %1893 = vmatprep.subr.mxu0 0.0
    %1894 = vmatpush1.msra.mxu0 0.0
    %1895 = vmatprep.subr.mxu0 0.0
    %1896 = vmatpush1.msra.mxu0 0.0
    %1897 = vmatprep.subr.mxu0 0.0
    %1898 = vmatpush1.msra.mxu0 0.0
    %1899 = vmatprep.subr.mxu0 0.0
    %1900 = vmatpush1.msra.mxu0 0.0
    %1901 = vmatprep.subr.mxu0 0.0
    %1902 = vmatpush1.msra.mxu0 0.0
    %1903 = vmatprep.subr.mxu0 0.0
    %1904 = vmatpush1.msra.mxu0 0.0
    %1905 = vmatprep.subr.mxu0 0.0
    %1906 = vmatpush1.msra.mxu0 0.0
    %1907 = vmatprep.subr.mxu0 0.0
    %1908 = vmatpush1.msra.mxu0 0.0
    %1909 = vmatprep.subr.mxu0 0.0
    %1910 = vmatpush1.msra.mxu0 0.0
    %1911 = vmatprep.subr.mxu0 0.0
    %1912 = vmatpush1.msra.mxu0 0.0
    %1913 = vmatprep.subr.mxu0 0.0
    %1914 = vmatpush1.msra.mxu0 0.0
    %1915 = vmatprep.subr.mxu0 0.0
    %1916 = vmatpush1.msra.mxu0 0.0
    %1917 = vmatprep.subr.mxu0 0.0
    %1918 = vmatpush1.msra.mxu0 %v1882
    %1919 = vmatprep.subr.mxu0 0.0
    %1920 = vmatpush2.msra.mxu0 0.0
    %1921 = vmatprep.subr.mxu0 0.0
    %1922 = vmatpush2.msra.mxu0 0.0
    %1923 = vmatprep.subr.mxu0 0.0
    %1924 = vmatpush2.msra.mxu0 0.0
    %1925 = vmatprep.subr.mxu0 0.0
    %1926 = vmatpush2.msra.mxu0 0.0
    %1927 = vmatprep.subr.mxu0 0.0
    %1928 = vmatpush2.msra.mxu0 0.0
    %1929 = vmatprep.subr.mxu0 0.0
    %1930 = vmatpush2.msra.mxu0 0.0
    %1931 = vmatprep.subr.mxu0 0.0
    %1932 = vmatpush2.msra.mxu0 0.0
    %1933 = vmatprep.subr.mxu0 0.0
    %1934 = vmatpush2.msra.mxu0 0.0
    %1935 = vmatprep.subr.mxu0 0.0
    %1936 = vmatpush2.msra.mxu0 0.0
    %1937 = vmatprep.subr.mxu0 0.0
    %1938 = vmatpush2.msra.mxu0 0.0
    %1939 = vmatprep.subr.mxu0 0.0
    %1940 = vmatpush2.msra.mxu0 0.0
    %1941 = vmatprep.subr.mxu0 0.0
    %1942 = vmatpush2.msra.mxu0 0.0
    %1943 = vmatprep.subr.mxu0 0.0
    %1944 = vmatpush2.msra.mxu0 0.0
    %1945 = vmatprep.subr.mxu0 0.0
    %1946 = vmatpush2.msra.mxu0 0.0
    %1947 = vmatprep.subr.mxu0 0.0
    %1948 = vmatpush2.msra.mxu0 0.0
    %1949 = vmatprep.subr.mxu0 0.0
    %1950 = vmatpush2.msra.mxu0 0.0
    %1951 = vmatprep.mubr.f32.mxu0 0.0
    %1952 = vmatmul.mubr.f32.gmra.mxu0 %v1885
    %v1953 = vpop.f32.mrf.mxu0
    %v1954 = vadd.f32 0.0, %v1953
    %v1955 = vpop.f32.mrf.mxu0
    %1956 = vdwg.mxu0
    %1957 = vrot.lane.b32.xlu0 %v171, 72
    %v1958 = vpop.permute.xlu0 %1957
    %1959 = vrot.lane.b32.xlu0 %v250, 72
    %v1960 = vpop.permute.xlu0 %1959
    %v1961 = vsel %vm258, %v1958, 0
    %v1963 = vsel %vm258, %v1960, 0
    %1965 = vmatprep.subr.mxu0 0.0
    %1966 = vmatpush1.xpose.msra.mxu0 0.0
    %1967 = vmatprep.subr.mxu0 0.0
    %1968 = vmatpush1.xpose.msra.mxu0 0.0
    %1969 = vmatprep.subr.mxu0 0.0
    %1970 = vmatpush1.xpose.msra.mxu0 0.0
    %1971 = vmatprep.subr.mxu0 0.0
    %1972 = vmatpush1.xpose.msra.mxu0 0.0
    %1973 = vmatprep.subr.mxu0 0.0
    %1974 = vmatpush1.xpose.msra.mxu0 0.0
    %1975 = vmatprep.subr.mxu0 0.0
    %1976 = vmatpush1.xpose.msra.mxu0 0.0
    %1977 = vmatprep.subr.mxu0 0.0
    %1978 = vmatpush1.xpose.msra.mxu0 0.0
    %1979 = vmatprep.subr.mxu0 0.0
    %1980 = vmatpush1.xpose.msra.mxu0 0.0
    %1981 = vmatprep.subr.mxu0 0.0
    %1982 = vmatpush1.xpose.msra.mxu0 0.0
    %1983 = vmatprep.subr.mxu0 0.0
    %1984 = vmatpush1.xpose.msra.mxu0 0.0
    %1985 = vmatprep.subr.mxu0 0.0
    %1986 = vmatpush1.xpose.msra.mxu0 0.0
    %1987 = vmatprep.subr.mxu0 0.0
    %1988 = vmatpush1.xpose.msra.mxu0 0.0
    %1989 = vmatprep.subr.mxu0 0.0
    %1990 = vmatpush1.xpose.msra.mxu0 0.0
    %1991 = vmatprep.subr.mxu0 0.0
    %1992 = vmatpush1.xpose.msra.mxu0 0.0
    %1993 = vmatprep.subr.mxu0 0.0
    %1994 = vmatpush1.xpose.msra.mxu0 0.0
    %1995 = vmatprep.subr.mxu0 0.0
    %1996 = vmatpush1.xpose.msra.mxu0 %v1963
    %1997 = vmatprep.subr.mxu0 0.0
    %1998 = vmatpush2.xpose.msra.mxu0 0.0
    %1999 = vmatprep.subr.mxu0 0.0
    %2000 = vmatpush2.xpose.msra.mxu0 0.0
    %2001 = vmatprep.subr.mxu0 0.0
    %2002 = vmatpush2.xpose.msra.mxu0 0.0
    %2003 = vmatprep.subr.mxu0 0.0
    %2004 = vmatpush2.xpose.msra.mxu0 0.0
    %2005 = vmatprep.subr.mxu0 0.0
    %2006 = vmatpush2.xpose.msra.mxu0 0.0
    %2007 = vmatprep.subr.mxu0 0.0
    %2008 = vmatpush2.xpose.msra.mxu0 0.0
    %2009 = vmatprep.subr.mxu0 0.0
    %2010 = vmatpush2.xpose.msra.mxu0 0.0
    %2011 = vmatprep.subr.mxu0 0.0
    %2012 = vmatpush2.xpose.msra.mxu0 0.0
    %2013 = vmatprep.subr.mxu0 0.0
    %2014 = vmatpush2.xpose.msra.mxu0 0.0
    %2015 = vmatprep.subr.mxu0 0.0
    %2016 = vmatpush2.xpose.msra.mxu0 0.0
    %2017 = vmatprep.subr.mxu0 0.0
    %2018 = vmatpush2.xpose.msra.mxu0 0.0
    %2019 = vmatprep.subr.mxu0 0.0
    %2020 = vmatpush2.xpose.msra.mxu0 0.0
    %2021 = vmatprep.subr.mxu0 0.0
    %2022 = vmatpush2.xpose.msra.mxu0 0.0
    %2023 = vmatprep.subr.mxu0 0.0
    %2024 = vmatpush2.xpose.msra.mxu0 0.0
    %2025 = vmatprep.subr.mxu0 0.0
    %2026 = vmatpush2.xpose.msra.mxu0 0.0
    %2027 = vmatprep.subr.mxu0 0.0
    %2028 = vmatpush2.xpose.msra.mxu0 0.0
    %2029 = vmatprep.mubr.f32.mxu0 0.0
    %2030 = vmatmul.mubr.f32.gmra.mxu0 %v1961
    %v2031 = vpop.f32.mrf.mxu0
    %v2032 = vadd.f32 0.0, %v2031
    %v2033 = vpop.f32.mrf.mxu0
    %2034 = vdwg.mxu0
    %2035 = vrot.lane.b32.xlu0 %v172, 72
    %v2036 = vpop.permute.xlu0 %2035
    %2037 = vrot.lane.b32.xlu0 %v255, 72
    %v2038 = vpop.permute.xlu0 %2037
    %v2039 = vsel %vm258, %v2036, 0
    %v2041 = vsel %vm258, %v2038, 0
    %2043 = vmatprep.subr.mxu0 0.0
    %2044 = vmatpush1.xpose.msra.mxu0 0.0
    %2045 = vmatprep.subr.mxu0 0.0
    %2046 = vmatpush1.xpose.msra.mxu0 0.0
    %2047 = vmatprep.subr.mxu0 0.0
    %2048 = vmatpush1.xpose.msra.mxu0 0.0
    %2049 = vmatprep.subr.mxu0 0.0
    %2050 = vmatpush1.xpose.msra.mxu0 0.0
    %2051 = vmatprep.subr.mxu0 0.0
    %2052 = vmatpush1.xpose.msra.mxu0 0.0
    %2053 = vmatprep.subr.mxu0 0.0
    %2054 = vmatpush1.xpose.msra.mxu0 0.0
    %2055 = vmatprep.subr.mxu0 0.0
    %2056 = vmatpush1.xpose.msra.mxu0 0.0
    %2057 = vmatprep.subr.mxu0 0.0
    %2058 = vmatpush1.xpose.msra.mxu0 0.0
    %2059 = vmatprep.subr.mxu0 0.0
    %2060 = vmatpush1.xpose.msra.mxu0 0.0
    %2061 = vmatprep.subr.mxu0 0.0
    %2062 = vmatpush1.xpose.msra.mxu0 0.0
    %2063 = vmatprep.subr.mxu0 0.0
    %2064 = vmatpush1.xpose.msra.mxu0 0.0
    %2065 = vmatprep.subr.mxu0 0.0
    %2066 = vmatpush1.xpose.msra.mxu0 0.0
    %2067 = vmatprep.subr.mxu0 0.0
    %2068 = vmatpush1.xpose.msra.mxu0 0.0
    %2069 = vmatprep.subr.mxu0 0.0
    %2070 = vmatpush1.xpose.msra.mxu0 0.0
    %2071 = vmatprep.subr.mxu0 0.0
    %2072 = vmatpush1.xpose.msra.mxu0 0.0
    %2073 = vmatprep.subr.mxu0 0.0
    %2074 = vmatpush1.xpose.msra.mxu0 %v2041
    %2075 = vmatprep.subr.mxu0 0.0
    %2076 = vmatpush2.xpose.msra.mxu0 0.0
    %2077 = vmatprep.subr.mxu0 0.0
    %2078 = vmatpush2.xpose.msra.mxu0 0.0
    %2079 = vmatprep.subr.mxu0 0.0
    %2080 = vmatpush2.xpose.msra.mxu0 0.0
    %2081 = vmatprep.subr.mxu0 0.0
    %2082 = vmatpush2.xpose.msra.mxu0 0.0
    %2083 = vmatprep.subr.mxu0 0.0
    %2084 = vmatpush2.xpose.msra.mxu0 0.0
    %2085 = vmatprep.subr.mxu0 0.0
    %2086 = vmatpush2.xpose.msra.mxu0 0.0
    %2087 = vmatprep.subr.mxu0 0.0
    %2088 = vmatpush2.xpose.msra.mxu0 0.0
    %2089 = vmatprep.subr.mxu0 0.0
    %2090 = vmatpush2.xpose.msra.mxu0 0.0
    %2091 = vmatprep.subr.mxu0 0.0
    %2092 = vmatpush2.xpose.msra.mxu0 0.0
    %2093 = vmatprep.subr.mxu0 0.0
    %2094 = vmatpush2.xpose.msra.mxu0 0.0
    %2095 = vmatprep.subr.mxu0 0.0
    %2096 = vmatpush2.xpose.msra.mxu0 0.0
    %2097 = vmatprep.subr.mxu0 0.0
    %2098 = vmatpush2.xpose.msra.mxu0 0.0
    %2099 = vmatprep.subr.mxu0 0.0
    %2100 = vmatpush2.xpose.msra.mxu0 0.0
    %2101 = vmatprep.subr.mxu0 0.0
    %2102 = vmatpush2.xpose.msra.mxu0 0.0
    %2103 = vmatprep.subr.mxu0 0.0
    %2104 = vmatpush2.xpose.msra.mxu0 0.0
    %2105 = vmatprep.subr.mxu0 0.0
    %2106 = vmatpush2.xpose.msra.mxu0 0.0
    %2107 = vmatprep.mubr.f32.mxu0 0.0
    %2108 = vmatmul.mubr.f32.gmra.mxu0 %v2039
    %v2109 = vpop.f32.mrf.mxu0
    %v2110 = vadd.f32 0.0, %v2109
    %v2111 = vpop.f32.mrf.mxu0
    %2112 = vdwg.mxu0
    %v2113 = vsel %vm258, %v2032, -inf
    %2114 = vmax.xlane.f32.xlu0 %v2113
    %v2115 = vpop.xlane.xlu0 %2114
    %v2116 = vsel %vm258, %v2110, -inf
    %2117 = vmax.xlane.f32.xlu0 %v2116
    %v2118 = vpop.xlane.xlu0 %2117
    %v2119 = vsub.f32 %v2032, %v2115
    %v2120 = vsub.f32 %v2110, %v2118
    %v2121 = vmul.f32 %v2119, 1.442695
    %v2122 = vpow.pop %v2121
    %v2123 = vmul.f32 %v2120, 1.442695
    %v2124 = vpow.pop %v2123
    %v2125 = vsel %vm258, %v2122, 0.0
    %2126 = vadd.xlane.f32.xlu0 %v2125
    %v2127 = vpop.xlane.xlu0 %2126
    %v2128 = vsel %vm258, %v2124, 0.0
    %2129 = vadd.xlane.f32.xlu0 %v2128
    %v2130 = vpop.xlane.xlu0 %2129
    %v2131 = vrcp.pop %v2127
    %v2132 = vrcp.pop %v2130
    %v2133 = vmul.f32 %v2122, %v2131
    %v2134 = vmul.f32 %v2124, %v2132
    %2135 = vrot.lane.b32.xlu0 %v250, 40
    %v2136 = vpop.permute.xlu0 %2135
    %v2139 = vsel %vm258, %v2133, 0
    %2141 = vmatprep.subr.mxu0 0.0
    %2142 = vmatpush1.msra.mxu0 0.0
    %2143 = vmatprep.subr.mxu0 0.0
    %2144 = vmatpush1.msra.mxu0 0.0
    %2145 = vmatprep.subr.mxu0 0.0
    %2146 = vmatpush1.msra.mxu0 0.0
    %2147 = vmatprep.subr.mxu0 0.0
    %2148 = vmatpush1.msra.mxu0 0.0
    %2149 = vmatprep.subr.mxu0 0.0
    %2150 = vmatpush1.msra.mxu0 0.0
    %2151 = vmatprep.subr.mxu0 0.0
    %2152 = vmatpush1.msra.mxu0 0.0
    %2153 = vmatprep.subr.mxu0 0.0
    %2154 = vmatpush1.msra.mxu0 0.0
    %2155 = vmatprep.subr.mxu0 0.0
    %2156 = vmatpush1.msra.mxu0 0.0
    %2157 = vmatprep.subr.mxu0 0.0
    %2158 = vmatpush1.msra.mxu0 0.0
    %2159 = vmatprep.subr.mxu0 0.0
    %2160 = vmatpush1.msra.mxu0 0.0
    %2161 = vmatprep.subr.mxu0 0.0
    %2162 = vmatpush1.msra.mxu0 0.0
    %2163 = vmatprep.subr.mxu0 0.0
    %2164 = vmatpush1.msra.mxu0 0.0
    %2165 = vmatprep.subr.mxu0 0.0
    %2166 = vmatpush1.msra.mxu0 0.0
    %2167 = vmatprep.subr.mxu0 0.0
    %2168 = vmatpush1.msra.mxu0 0.0
    %2169 = vmatprep.subr.mxu0 0.0
    %2170 = vmatpush1.msra.mxu0 0.0
    %2171 = vmatprep.subr.mxu0 0.0
    %2172 = vmatpush1.msra.mxu0 %v2136
    %2173 = vmatprep.subr.mxu0 0.0
    %2174 = vmatpush2.msra.mxu0 0.0
    %2175 = vmatprep.subr.mxu0 0.0
    %2176 = vmatpush2.msra.mxu0 0.0
    %2177 = vmatprep.subr.mxu0 0.0
    %2178 = vmatpush2.msra.mxu0 0.0
    %2179 = vmatprep.subr.mxu0 0.0
    %2180 = vmatpush2.msra.mxu0 0.0
    %2181 = vmatprep.subr.mxu0 0.0
    %2182 = vmatpush2.msra.mxu0 0.0
    %2183 = vmatprep.subr.mxu0 0.0
    %2184 = vmatpush2.msra.mxu0 0.0
    %2185 = vmatprep.subr.mxu0 0.0
    %2186 = vmatpush2.msra.mxu0 0.0
    %2187 = vmatprep.subr.mxu0 0.0
    %2188 = vmatpush2.msra.mxu0 0.0
    %2189 = vmatprep.subr.mxu0 0.0
    %2190 = vmatpush2.msra.mxu0 0.0
    %2191 = vmatprep.subr.mxu0 0.0
    %2192 = vmatpush2.msra.mxu0 0.0
    %2193 = vmatprep.subr.mxu0 0.0
    %2194 = vmatpush2.msra.mxu0 0.0
    %2195 = vmatprep.subr.mxu0 0.0
    %2196 = vmatpush2.msra.mxu0 0.0
    %2197 = vmatprep.subr.mxu0 0.0
    %2198 = vmatpush2.msra.mxu0 0.0
    %2199 = vmatprep.subr.mxu0 0.0
    %2200 = vmatpush2.msra.mxu0 0.0
    %2201 = vmatprep.subr.mxu0 0.0
    %2202 = vmatpush2.msra.mxu0 0.0
    %2203 = vmatprep.subr.mxu0 0.0
    %2204 = vmatpush2.msra.mxu0 0.0
    %2205 = vmatprep.mubr.f32.mxu0 0.0
    %2206 = vmatmul.mubr.f32.gmra.mxu0 %v2139
    %v2207 = vpop.f32.mrf.mxu0
    %v2208 = vadd.f32 0.0, %v2207
    %v2209 = vpop.f32.mrf.mxu0
    %2210 = vdwg.mxu0
    %2211 = vrot.lane.b32.xlu0 %v255, 40
    %v2212 = vpop.permute.xlu0 %2211
    %v2215 = vsel %vm258, %v2134, 0
    %2217 = vmatprep.subr.mxu0 0.0
    %2218 = vmatpush1.msra.mxu0 0.0
    %2219 = vmatprep.subr.mxu0 0.0
    %2220 = vmatpush1.msra.mxu0 0.0
    %2221 = vmatprep.subr.mxu0 0.0
    %2222 = vmatpush1.msra.mxu0 0.0
    %2223 = vmatprep.subr.mxu0 0.0
    %2224 = vmatpush1.msra.mxu0 0.0
    %2225 = vmatprep.subr.mxu0 0.0
    %2226 = vmatpush1.msra.mxu0 0.0
    %2227 = vmatprep.subr.mxu0 0.0
    %2228 = vmatpush1.msra.mxu0 0.0
    %2229 = vmatprep.subr.mxu0 0.0
    %2230 = vmatpush1.msra.mxu0 0.0
    %2231 = vmatprep.subr.mxu0 0.0
    %2232 = vmatpush1.msra.mxu0 0.0
    %2233 = vmatprep.subr.mxu0 0.0
    %2234 = vmatpush1.msra.mxu0 0.0
    %2235 = vmatprep.subr.mxu0 0.0
    %2236 = vmatpush1.msra.mxu0 0.0
    %2237 = vmatprep.subr.mxu0 0.0
    %2238 = vmatpush1.msra.mxu0 0.0
    %2239 = vmatprep.subr.mxu0 0.0
    %2240 = vmatpush1.msra.mxu0 0.0
    %2241 = vmatprep.subr.mxu0 0.0
    %2242 = vmatpush1.msra.mxu0 0.0
    %2243 = vmatprep.subr.mxu0 0.0
    %2244 = vmatpush1.msra.mxu0 0.0
    %2245 = vmatprep.subr.mxu0 0.0
    %2246 = vmatpush1.msra.mxu0 0.0
    %2247 = vmatprep.subr.mxu0 0.0
    %2248 = vmatpush1.msra.mxu0 %v2212
    %2249 = vmatprep.subr.mxu0 0.0
    %2250 = vmatpush2.msra.mxu0 0.0
    %2251 = vmatprep.subr.mxu0 0.0
    %2252 = vmatpush2.msra.mxu0 0.0
    %2253 = vmatprep.subr.mxu0 0.0
    %2254 = vmatpush2.msra.mxu0 0.0
    %2255 = vmatprep.subr.mxu0 0.0
    %2256 = vmatpush2.msra.mxu0 0.0
    %2257 = vmatprep.subr.mxu0 0.0
    %2258 = vmatpush2.msra.mxu0 0.0
    %2259 = vmatprep.subr.mxu0 0.0
    %2260 = vmatpush2.msra.mxu0 0.0
    %2261 = vmatprep.subr.mxu0 0.0
    %2262 = vmatpush2.msra.mxu0 0.0
    %2263 = vmatprep.subr.mxu0 0.0
    %2264 = vmatpush2.msra.mxu0 0.0
    %2265 = vmatprep.subr.mxu0 0.0
    %2266 = vmatpush2.msra.mxu0 0.0
    %2267 = vmatprep.subr.mxu0 0.0
    %2268 = vmatpush2.msra.mxu0 0.0
    %2269 = vmatprep.subr.mxu0 0.0
    %2270 = vmatpush2.msra.mxu0 0.0
    %2271 = vmatprep.subr.mxu0 0.0
    %2272 = vmatpush2.msra.mxu0 0.0
    %2273 = vmatprep.subr.mxu0 0.0
    %2274 = vmatpush2.msra.mxu0 0.0
    %2275 = vmatprep.subr.mxu0 0.0
    %2276 = vmatpush2.msra.mxu0 0.0
    %2277 = vmatprep.subr.mxu0 0.0
    %2278 = vmatpush2.msra.mxu0 0.0
    %2279 = vmatprep.subr.mxu0 0.0
    %2280 = vmatpush2.msra.mxu0 0.0
    %2281 = vmatprep.mubr.f32.mxu0 0.0
    %2282 = vmatmul.mubr.f32.gmra.mxu0 %v2215
    %v2283 = vpop.f32.mrf.mxu0
    %v2284 = vadd.f32 0.0, %v2283
    %v2285 = vpop.f32.mrf.mxu0
    %2286 = vdwg.mxu0
    %2289 = vrot.lane.b32.xlu0 %v609, 8
    %v2290 = vpop.permute.xlu0 %2289
    %2291 = vrot.lane.b32.xlu0 %v610, 8
    %v2292 = vpop.permute.xlu0 %2291
    %2297 = vrot.lane.b32.xlu0 %v787, 16
    %v2298 = vpop.permute.xlu0 %2297
    %2299 = vrot.lane.b32.xlu0 %v788, 16
    %v2300 = vpop.permute.xlu0 %2299
    %2305 = vrot.lane.b32.xlu0 %v965, 24
    %v2306 = vpop.permute.xlu0 %2305
    %2307 = vrot.lane.b32.xlu0 %v966, 24
    %v2308 = vpop.permute.xlu0 %2307
    %2311 = vrot.lane.b32.xlu0 %v1143, 32
    %v2312 = vpop.permute.xlu0 %2311
    %2313 = vrot.lane.b32.xlu0 %v1144, 32
    %v2314 = vpop.permute.xlu0 %2313
    %2317 = vrot.lane.b32.xlu0 %v1473, 40
    %v2318 = vpop.permute.xlu0 %2317
    %2319 = vrot.lane.b32.xlu0 %v1474, 40
    %v2320 = vpop.permute.xlu0 %2319
    %2323 = vrot.lane.b32.xlu0 %v1803, 48
    %v2324 = vpop.permute.xlu0 %2323
    %2325 = vrot.lane.b32.xlu0 %v1804, 48
    %v2326 = vpop.permute.xlu0 %2325
    %2329 = vrot.lane.b32.xlu0 %v2133, 56
    %v2330 = vpop.permute.xlu0 %2329
    %2331 = vrot.lane.b32.xlu0 %v2134, 56
    %v2332 = vpop.permute.xlu0 %2331
    %v2335 = vsel %vm258, %v431, %v2290
    %v2336 = vsel %vm258, %v432, %v2292
    %vm2337 = vcmask 130048
    %v2338 = vsel %vm2337, %v2335, %v2298
    %v2339 = vsel %vm2337, %v2336, %v2300
    %vm2340 = vcmask 195584
    %v2341 = vsel %vm2340, %v2338, %v2306
    %v2342 = vsel %vm2340, %v2339, %v2308
    %v2343 = vsel %vm89, %v2341, %v2312
    %v2344 = vsel %vm89, %v2342, %v2314
    %vm2345 = vcmask 326656
    %v2346 = vsel %vm2345, %v2343, %v2318
    %v2347 = vsel %vm2345, %v2344, %v2320
    %vm2348 = vcmask 392192
    %v2349 = vsel %vm2348, %v2346, %v2324
    %v2350 = vsel %vm2348, %v2347, %v2326
    %vm2351 = vcmask 457728
    %v2352 = vsel %vm2351, %v2349, %v2330
    %v2353 = vsel %vm2351, %v2350, %v2332
    %vm2354 = vcmask 523264
    %2355 = vst.msk [vmem:[#allocation9] sm:$0xff] %vm2354, %v2352
    %2356 = vst.msk [vmem:[#allocation9 + $0x8] sm:$0xff] %vm2354, %v2353
    %2359 = vrot.lane.b32.xlu0 %v1548, 8
    %v2360 = vpop.permute.xlu0 %2359
    %2361 = vrot.lane.b32.xlu0 %v1624, 8
    %v2362 = vpop.permute.xlu0 %2361
    %2367 = vrot.lane.b32.xlu0 %v1878, 16
    %v2368 = vpop.permute.xlu0 %2367
    %2369 = vrot.lane.b32.xlu0 %v1954, 16
    %v2370 = vpop.permute.xlu0 %2369
    %2375 = vrot.lane.b32.xlu0 %v2208, 24
    %v2376 = vpop.permute.xlu0 %2375
    %2377 = vrot.lane.b32.xlu0 %v2284, 24
    %v2378 = vpop.permute.xlu0 %2377
    %v2381 = vsel %vm258, %v1218, %v2360
    %v2382 = vsel %vm258, %v1294, %v2362
    %v2383 = vsel %vm2337, %v2381, %v2368
    %v2384 = vsel %vm2337, %v2382, %v2370
    %v2385 = vsel %vm2340, %v2383, %v2376
    %v2386 = vsel %vm2340, %v2384, %v2378
    %v2387 = vlaneseq
    %v2388 = vshrl.u32 %v2387, 7
    %v2389 = vsub.s32 2, %v2388
    %v2390 = vrot.slane %v83, %v2389
    %v2392 = vsel %vm89, %v2385, 0
    %v2395 = vsel %vm89, %v2386, 0
    %2397 = vmatprep.subr.mxu0 0.0
    %2398 = vmatpush1.msra.mxu0 0.0
    %2399 = vmatprep.subr.mxu0 0.0
    %2400 = vmatpush1.msra.mxu0 0.0
    %2401 = vmatprep.subr.mxu0 0.0
    %2402 = vmatpush1.msra.mxu0 0.0
    %2403 = vmatprep.subr.mxu0 0.0
    %2404 = vmatpush1.msra.mxu0 0.0
    %2405 = vmatprep.subr.mxu0 0.0
    %2406 = vmatpush1.msra.mxu0 0.0
    %2407 = vmatprep.subr.mxu0 0.0
    %2408 = vmatpush1.msra.mxu0 0.0
    %2409 = vmatprep.subr.mxu0 0.0
    %2410 = vmatpush1.msra.mxu0 0.0
    %2411 = vmatprep.subr.mxu0 0.0
    %2412 = vmatpush1.msra.mxu0 0.0
    %2413 = vmatprep.subr.mxu0 0.0
    %2414 = vmatpush1.msra.mxu0 0.0
    %2415 = vmatprep.subr.mxu0 0.0
    %2416 = vmatpush1.msra.mxu0 0.0
    %2417 = vmatprep.subr.mxu0 0.0
    %2418 = vmatpush1.msra.mxu0 0.0
    %2419 = vmatprep.subr.mxu0 0.0
    %2420 = vmatpush1.msra.mxu0 0.0
    %2421 = vmatprep.subr.mxu0 0.0
    %2422 = vmatpush1.msra.mxu0 %v74
    %2423 = vmatprep.subr.mxu0 0.0
    %2424 = vmatpush1.msra.mxu0 %v73
    %2425 = vmatprep.subr.mxu0 0.0
    %2426 = vmatpush1.msra.mxu0 %v72
    %2427 = vmatprep.subr.mxu0 0.0
    %2428 = vmatpush1.msra.mxu0 %v71
    %2429 = vmatprep.subr.mxu0 0.0
    %2430 = vmatpush2.msra.mxu0 0.0
    %2431 = vmatprep.subr.mxu0 0.0
    %2432 = vmatpush2.msra.mxu0 0.0
    %2433 = vmatprep.subr.mxu0 0.0
    %2434 = vmatpush2.msra.mxu0 0.0
    %2435 = vmatprep.subr.mxu0 0.0
    %2436 = vmatpush2.msra.mxu0 0.0
    %2437 = vmatprep.subr.mxu0 0.0
    %2438 = vmatpush2.msra.mxu0 0.0
    %2439 = vmatprep.subr.mxu0 0.0
    %2440 = vmatpush2.msra.mxu0 0.0
    %2441 = vmatprep.subr.mxu0 0.0
    %2442 = vmatpush2.msra.mxu0 0.0
    %2443 = vmatprep.subr.mxu0 0.0
    %2444 = vmatpush2.msra.mxu0 0.0
    %2445 = vmatprep.subr.mxu0 0.0
    %2446 = vmatpush2.msra.mxu0 0.0
    %2447 = vmatprep.subr.mxu0 0.0
    %2448 = vmatpush2.msra.mxu0 0.0
    %2449 = vmatprep.subr.mxu0 0.0
    %2450 = vmatpush2.msra.mxu0 0.0
    %2451 = vmatprep.subr.mxu0 0.0
    %2452 = vmatpush2.msra.mxu0 0.0
    %2453 = vmatprep.subr.mxu0 0.0
    %2454 = vmatpush2.msra.mxu0 0.0
    %2455 = vmatprep.subr.mxu0 0.0
    %2456 = vmatpush2.msra.mxu0 0.0
    %2457 = vmatprep.subr.mxu0 0.0
    %2458 = vmatpush2.msra.mxu0 0.0
    %2459 = vmatprep.subr.mxu0 0.0
    %2460 = vmatpush2.msra.mxu0 0.0
    %2461 = vmatprep.mubr.f32.mxu0 0.0
    %2462 = vmatmul.mubr.f32.gmra.mxu0 %v2392
    %v2463 = vpop.f32.mrf.mxu0
    %v2464 = vadd.f32 %v2390, %v2463
    %v2465 = vpop.f32.mrf.mxu0
    %2466 = vmatprep.mubr.f32.mxu0 0.0
    %2467 = vmatmul.mubr.f32.gmra.mxu0 %v2395
    %v2468 = vpop.f32.mrf.mxu0
    %v2469 = vadd.f32 %v2390, %v2468
    %v2470 = vpop.f32.mrf.mxu0
    %2471 = vdwg.mxu0
    %v2472 = vadd.f32 %v59, %v2464
    %v2473 = vadd.f32 %v60, %v2469
    %v2474 = vsel %vm89, %v2472, 0.0
    %2475 = vadd.xlane.f32.xlu0 %v2474
    %v2476 = vpop.xlane.xlu0 %2475
    %v2477 = vsel %vm89, %v2473, 0.0
    %2478 = vadd.xlane.f32.xlu0 %v2477
    %v2479 = vpop.xlane.xlu0 %2478
    %v2480 = vrcp.pop 32.0
    %v2481 = vmul.f32 %v2476, %v2480
    %v2482 = vmul.f32 %v2479, %v2480
    %v2483 = vsub.f32 %v2472, %v2481
    %v2484 = vsub.f32 %v2473, %v2482
    %v2485 = vmul.f32 %v2483, %v2483
    %v2486 = vmul.f32 %v2484, %v2484
    %v2487 = vsel %vm89, %v2485, 0.0
    %2488 = vadd.xlane.f32.xlu0 %v2487
    %v2489 = vpop.xlane.xlu0 %2488
    %v2490 = vsel %vm89, %v2486, 0.0
    %2491 = vadd.xlane.f32.xlu0 %v2490
    %v2492 = vpop.xlane.xlu0 %2491
    %v2493 = vmul.f32 %v2489, %v2480
    %v2494 = vmul.f32 %v2492, %v2480
    %v2495 = vadd.f32 %v2493, 1e-05
    %v2496 = vadd.f32 %v2494, 1e-05
    %v2497 = vrsqrt.pop %v2495
    %v2498 = vrsqrt.pop %v2496
    %v2499 = vmul.f32 %v2483, %v2497
    %v2500 = vmul.f32 %v2484, %v2498
    %v2501 = vlaneseq
    %v2502 = vshrl.u32 %v2501, 7
    %v2503 = vsub.s32 5, %v2502
    %v2504 = vrot.slane %v83, %v2503
    %v2505 = vmul.f32 %v2499, %v2504
    %v2506 = vmul.f32 %v2500, %v2504
    %v2507 = vlaneseq
    %v2508 = vshrl.u32 %v2507, 7
    %v2509 = vsub.s32 6, %v2508
    %v2510 = vrot.slane %v83, %v2509
    %v2511 = vadd.f32 %v2505, %v2510
    %v2512 = vadd.f32 %v2506, %v2510
    %v2513 = vlaneseq
    %v2514 = vshrl.u32 %v2513, 7
    %v2515 = vsub.s32 3, %v2514
    %v2516 = vrot.slane %v83, %v2515
    %2521 = vrot.lane.b32.xlu0 %v67, 64
    %v2522 = vpop.permute.xlu0 %2521
    %2523 = vrot.lane.b32.xlu0 %v68, 64
    %v2524 = vpop.permute.xlu0 %2523
    %2525 = vrot.lane.b32.xlu0 %v69, 64
    %v2526 = vpop.permute.xlu0 %2525
    %2527 = vrot.lane.b32.xlu0 %v70, 64
    %v2528 = vpop.permute.xlu0 %2527
    %v2534 = vsel %vm89, %v2511, 0
    %v2537 = vsel %vm89, %v2512, 0
    %2539 = vmatprep.subr.mxu0 0.0
    %2540 = vmatpush1.msra.mxu0 0.0
    %2541 = vmatprep.subr.mxu0 0.0
    %2542 = vmatpush1.msra.mxu0 0.0
    %2543 = vmatprep.subr.mxu0 0.0
    %2544 = vmatpush1.msra.mxu0 0.0
    %2545 = vmatprep.subr.mxu0 0.0
    %2546 = vmatpush1.msra.mxu0 0.0
    %2547 = vmatprep.subr.mxu0 0.0
    %2548 = vmatpush1.msra.mxu0 0.0
    %2549 = vmatprep.subr.mxu0 0.0
    %2550 = vmatpush1.msra.mxu0 0.0
    %2551 = vmatprep.subr.mxu0 0.0
    %2552 = vmatpush1.msra.mxu0 0.0
    %2553 = vmatprep.subr.mxu0 0.0
    %2554 = vmatpush1.msra.mxu0 0.0
    %2555 = vmatprep.subr.mxu0 0.0
    %2556 = vmatpush1.msra.mxu0 0.0
    %2557 = vmatprep.subr.mxu0 0.0
    %2558 = vmatpush1.msra.mxu0 0.0
    %2559 = vmatprep.subr.mxu0 0.0
    %2560 = vmatpush1.msra.mxu0 0.0
    %2561 = vmatprep.subr.mxu0 0.0
    %2562 = vmatpush1.msra.mxu0 0.0
    %2563 = vmatprep.subr.mxu0 0.0
    %2564 = vmatpush1.msra.mxu0 %v2528
    %2565 = vmatprep.subr.mxu0 0.0
    %2566 = vmatpush1.msra.mxu0 %v2526
    %2567 = vmatprep.subr.mxu0 0.0
    %2568 = vmatpush1.msra.mxu0 %v2524
    %2569 = vmatprep.subr.mxu0 0.0
    %2570 = vmatpush1.msra.mxu0 %v2522
    %2571 = vmatprep.subr.mxu0 0.0
    %2572 = vmatpush2.msra.mxu0 0.0
    %2573 = vmatprep.subr.mxu0 0.0
    %2574 = vmatpush2.msra.mxu0 0.0
    %2575 = vmatprep.subr.mxu0 0.0
    %2576 = vmatpush2.msra.mxu0 0.0
    %2577 = vmatprep.subr.mxu0 0.0
    %2578 = vmatpush2.msra.mxu0 0.0
    %2579 = vmatprep.subr.mxu0 0.0
    %2580 = vmatpush2.msra.mxu0 0.0
    %2581 = vmatprep.subr.mxu0 0.0
    %2582 = vmatpush2.msra.mxu0 0.0
    %2583 = vmatprep.subr.mxu0 0.0
    %2584 = vmatpush2.msra.mxu0 0.0
    %2585 = vmatprep.subr.mxu0 0.0
    %2586 = vmatpush2.msra.mxu0 0.0
    %2587 = vmatprep.subr.mxu0 0.0
    %2588 = vmatpush2.msra.mxu0 0.0
    %2589 = vmatprep.subr.mxu0 0.0
    %2590 = vmatpush2.msra.mxu0 0.0
    %2591 = vmatprep.subr.mxu0 0.0
    %2592 = vmatpush2.msra.mxu0 0.0
    %2593 = vmatprep.subr.mxu0 0.0
    %2594 = vmatpush2.msra.mxu0 0.0
    %2595 = vmatprep.subr.mxu0 0.0
    %2596 = vmatpush2.msra.mxu0 0.0
    %2597 = vmatprep.subr.mxu0 0.0
    %2598 = vmatpush2.msra.mxu0 0.0
    %2599 = vmatprep.subr.mxu0 0.0
    %2600 = vmatpush2.msra.mxu0 0.0
    %2601 = vmatprep.subr.mxu0 0.0
    %2602 = vmatpush2.msra.mxu0 0.0
    %2603 = vmatprep.mubr.f32.mxu0 0.0
    %2604 = vmatmul.mubr.f32.gmra.mxu0 %v2534
    %v2605 = vpop.f32.mrf.mxu0
    %v2606 = vadd.f32 %v2516, %v2605
    %v2607 = vpop.f32.mrf.mxu0
    %2608 = vmatprep.mubr.f32.mxu0 0.0
    %2609 = vmatmul.mubr.f32.gmra.mxu0 %v2537
    %v2610 = vpop.f32.mrf.mxu0
    %v2611 = vadd.f32 %v2516, %v2610
    %v2612 = vpop.f32.mrf.mxu0
    %2613 = vdwg.mxu0
    %v2614 = vmax.f32 %v2606, 0.0
    %v2615 = vmax.f32 %v2611, 0.0
    %v2616 = vlaneseq
    %v2617 = vshrl.u32 %v2616, 7
    %v2618 = vsub.s32 4, %v2617
    %v2619 = vrot.slane %v83, %v2618
    %v2621 = vsel %vm2354, %v2614, 0
    %v2624 = vsel %vm2354, %v2615, 0
    %2626 = vmatprep.subr.mxu0 0.0
    %2627 = vmatpush1.msra.mxu0 0.0
    %2628 = vmatprep.subr.mxu0 0.0
    %2629 = vmatpush1.msra.mxu0 0.0
    %2630 = vmatprep.subr.mxu0 0.0
    %2631 = vmatpush1.msra.mxu0 0.0
    %2632 = vmatprep.subr.mxu0 0.0
    %2633 = vmatpush1.msra.mxu0 0.0
    %2634 = vmatprep.subr.mxu0 0.0
    %2635 = vmatpush1.msra.mxu0 0.0
    %2636 = vmatprep.subr.mxu0 0.0
    %2637 = vmatpush1.msra.mxu0 0.0
    %2638 = vmatprep.subr.mxu0 0.0
    %2639 = vmatpush1.msra.mxu0 0.0
    %2640 = vmatprep.subr.mxu0 0.0
    %2641 = vmatpush1.msra.mxu0 0.0
    %2642 = vmatprep.subr.mxu0 0.0
    %2643 = vmatpush1.msra.mxu0 %v82
    %2644 = vmatprep.subr.mxu0 0.0
    %2645 = vmatpush1.msra.mxu0 %v81
    %2646 = vmatprep.subr.mxu0 0.0
    %2647 = vmatpush1.msra.mxu0 %v80
    %2648 = vmatprep.subr.mxu0 0.0
    %2649 = vmatpush1.msra.mxu0 %v79
    %2650 = vmatprep.subr.mxu0 0.0
    %2651 = vmatpush1.msra.mxu0 %v78
    %2652 = vmatprep.subr.mxu0 0.0
    %2653 = vmatpush1.msra.mxu0 %v77
    %2654 = vmatprep.subr.mxu0 0.0
    %2655 = vmatpush1.msra.mxu0 %v76
    %2656 = vmatprep.subr.mxu0 0.0
    %2657 = vmatpush1.msra.mxu0 %v75
    %2658 = vmatprep.subr.mxu0 0.0
    %2659 = vmatpush2.msra.mxu0 0.0
    %2660 = vmatprep.subr.mxu0 0.0
    %2661 = vmatpush2.msra.mxu0 0.0
    %2662 = vmatprep.subr.mxu0 0.0
    %2663 = vmatpush2.msra.mxu0 0.0
    %2664 = vmatprep.subr.mxu0 0.0
    %2665 = vmatpush2.msra.mxu0 0.0
    %2666 = vmatprep.subr.mxu0 0.0
    %2667 = vmatpush2.msra.mxu0 0.0
    %2668 = vmatprep.subr.mxu0 0.0
    %2669 = vmatpush2.msra.mxu0 0.0
    %2670 = vmatprep.subr.mxu0 0.0
    %2671 = vmatpush2.msra.mxu0 0.0
    %2672 = vmatprep.subr.mxu0 0.0
    %2673 = vmatpush2.msra.mxu0 0.0
    %2674 = vmatprep.subr.mxu0 0.0
    %2675 = vmatpush2.msra.mxu0 0.0
    %2676 = vmatprep.subr.mxu0 0.0
    %2677 = vmatpush2.msra.mxu0 0.0
    %2678 = vmatprep.subr.mxu0 0.0
    %2679 = vmatpush2.msra.mxu0 0.0
    %2680 = vmatprep.subr.mxu0 0.0
    %2681 = vmatpush2.msra.mxu0 0.0
    %2682 = vmatprep.subr.mxu0 0.0
    %2683 = vmatpush2.msra.mxu0 0.0
    %2684 = vmatprep.subr.mxu0 0.0
    %2685 = vmatpush2.msra.mxu0 0.0
    %2686 = vmatprep.subr.mxu0 0.0
    %2687 = vmatpush2.msra.mxu0 0.0
    %2688 = vmatprep.subr.mxu0 0.0
    %2689 = vmatpush2.msra.mxu0 0.0
    %2690 = vmatprep.mubr.f32.mxu0 0.0
    %2691 = vmatmul.mubr.f32.gmra.mxu0 %v2621
    %v2692 = vpop.f32.mrf.mxu0
    %v2693 = vadd.f32 %v2619, %v2692
    %v2694 = vpop.f32.mrf.mxu0
    %2695 = vmatprep.mubr.f32.mxu0 0.0
    %2696 = vmatmul.mubr.f32.gmra.mxu0 %v2624
    %v2697 = vpop.f32.mrf.mxu0
    %v2698 = vadd.f32 %v2619, %v2697
    %v2699 = vpop.f32.mrf.mxu0
    %2700 = vdwg.mxu0
    %v2701 = vadd.f32 %v2511, %v2693
    %v2702 = vadd.f32 %v2512, %v2698
    %v2703 = vsel %vm89, %v2701, 0.0
    %2704 = vadd.xlane.f32.xlu0 %v2703
    %v2705 = vpop.xlane.xlu0 %2704
    %v2706 = vsel %vm89, %v2702, 0.0
    %2707 = vadd.xlane.f32.xlu0 %v2706
    %v2708 = vpop.xlane.xlu0 %2707
    %v2709 = vmul.f32 %v2705, %v2480
    %v2710 = vmul.f32 %v2708, %v2480
    %v2711 = vsub.f32 %v2701, %v2709
    %v2712 = vsub.f32 %v2702, %v2710
    %v2713 = vmul.f32 %v2711, %v2711
    %v2714 = vmul.f32 %v2712, %v2712
    %v2715 = vsel %vm89, %v2713, 0.0
    %2716 = vadd.xlane.f32.xlu0 %v2715
    %v2717 = vpop.xlane.xlu0 %2716
    %v2718 = vsel %vm89, %v2714, 0.0
    %2719 = vadd.xlane.f32.xlu0 %v2718
    %v2720 = vpop.xlane.xlu0 %2719
    %v2721 = vmul.f32 %v2717, %v2480
    %v2722 = vmul.f32 %v2720, %v2480
    %v2723 = vadd.f32 %v2721, 1e-05
    %v2724 = vadd.f32 %v2722, 1e-05
    %v2725 = vrsqrt.pop %v2723
    %v2726 = vrsqrt.pop %v2724
    %v2727 = vmul.f32 %v2711, %v2725
    %v2728 = vmul.f32 %v2712, %v2726
    %v2729 = vlaneseq
    %v2730 = vshrl.u32 %v2729, 7
    %v2731 = vsub.s32 7, %v2730
    %v2732 = vrot.slane %v83, %v2731
    %v2733 = vmul.f32 %v2727, %v2732
    %v2734 = vmul.f32 %v2728, %v2732
    %v2735 = vlaneseq
    %v2736 = vshrl.u32 %v2735, 7
    %v2737 = vsub.s32 0, %v2736
    %v2738 = vrot.slane %v84, %v2737
    %v2739 = vadd.f32 %v2733, %v2738
    %v2740 = vadd.f32 %v2734, %v2738
    %v2741 = vsel %vm89, %v2739, 0.0
    %2742 = vadd.xlane.f32.xlu0 %v2741
    %v2743 = vpop.xlane.xlu0 %2742
    %v2744 = vsel %vm89, %v2740, 0.0
    %2745 = vadd.xlane.f32.xlu0 %v2744
    %v2746 = vpop.xlane.xlu0 %2745
    %v2747 = vmul.f32 %v2743, %v2480
    %v2748 = vmul.f32 %v2746, %v2480
    %v2749 = vsub.f32 %v2739, %v2747
    %v2750 = vsub.f32 %v2740, %v2748
    %v2751 = vmul.f32 %v2749, %v2749
    %v2752 = vmul.f32 %v2750, %v2750
    %v2753 = vsel %vm89, %v2751, 0.0
    %2754 = vadd.xlane.f32.xlu0 %v2753
    %v2755 = vpop.xlane.xlu0 %2754
    %v2756 = vsel %vm89, %v2752, 0.0
    %2757 = vadd.xlane.f32.xlu0 %v2756
    %v2758 = vpop.xlane.xlu0 %2757
    %v2759 = vmul.f32 %v2755, %v2480
    %v2760 = vmul.f32 %v2758, %v2480
    %v2761 = vadd.f32 %v2759, 1e-05
    %v2762 = vadd.f32 %v2760, 1e-05
    %v2763 = vrsqrt.pop %v2761
    %v2764 = vrsqrt.pop %v2762
    %v2765 = vmul.f32 %v2749, %v2763
    %v2766 = vmul.f32 %v2750, %v2764
    %v2767 = vlaneseq
    %v2768 = vshrl.u32 %v2767, 7
    %v2769 = vsub.s32 1, %v2768
    %v2770 = vrot.slane %v84, %v2769
    %v2771 = vmul.f32 %v2765, %v2770
    %v2772 = vmul.f32 %v2766, %v2770
    %v2773 = vlaneseq
    %v2774 = vshrl.u32 %v2773, 7
    %v2775 = vsub.s32 2, %v2774
    %v2776 = vrot.slane %v84, %v2775
    %v2777 = vadd.f32 %v2771, %v2776
    %v2778 = vadd.f32 %v2772, %v2776
    %2779 = vst.msk [vmem:[#allocation8] sm:$0xff] %vm89, %v2777
    %2780 = vst.msk [vmem:[#allocation8 + $0x8] sm:$0xff] %vm89, %v2778
    // Predicated region
    $region26: #{tpu_custom_call.1} parent=1 // pred_check
      _
    $region27: #{tpu_custom_call.1} parent=1 // pred_check_branch
      %2782 = sbr.rel (0) target = $region29
    $region28: #{tpu_custom_call.1} parent=1 // pred_region
      %s2784 = ssub.s32 256, 256
      %2785 = vsyncadd [#allocation4], %s2784
      %s2786 = sshll.u32 [#allocation8], 4
      %s2787 = int_to_ptr.vmem [resolvable:$true] %s2786
      %2792 = dma.vmem_to_hbm [thread:$0]  %s2787, 256, %s3, [#allocation4], 128, 128, 8
    $region29: #{tpu_custom_call.1} parent=1 // pred_fallthru
      _
    // Predicated region
    $region30: #{tpu_custom_call.1} parent=1 // pred_check
      _
    $region31: #{tpu_custom_call.1} parent=1 // pred_check_branch
      %2794 = sbr.rel (0) target = $region33
    $region32: #{tpu_custom_call.1} parent=1 // pred_region
      %s2796 = ssub.s32 256, 256
      %2797 = vsyncadd [#allocation10], %s2796
      %s2798 = sshll.u32 [#allocation9], 4
      %s2799 = int_to_ptr.vmem [resolvable:$true] %s2798
      %2804 = dma.vmem_to_hbm [thread:$0]  %s2799, 256, %s4, [#allocation10], 128, 128, 8
    $region33: #{tpu_custom_call.1} parent=1 // pred_fallthru
      _
    // Predicated region
    $region34: #{tpu_custom_call.1} parent=1 // pred_check
      _
    $region35: #{tpu_custom_call.1} parent=1 // pred_check_branch
      %2806 = sbr.rel (0) target = $region37
    $region36: #{tpu_custom_call.1} parent=1 // pred_region
      %2807 = dma.done [#allocation4], 256
    $region37: #{tpu_custom_call.1} parent=1 // pred_fallthru
      _
    // Predicated region
    $region38: #{tpu_custom_call.1} parent=1 // pred_check
      _
    $region39: #{tpu_custom_call.1} parent=1 // pred_check_branch
      %2809 = sbr.rel (0) target = $region41
    $region40: #{tpu_custom_call.1} parent=1 // pred_region
      %2810 = dma.done [#allocation10], 256
    $region41: #{tpu_custom_call.1} parent=1 // pred_fallthru
      _
    %2811 = vsyncpa [#allocation3], 1
    %2812 = vsyncpa [#allocation6], 1
    %2813 = vsyncpa [#allocation4], 1
    %2814 = vsyncpa [#allocation10], 1

</llo_original>
